<compile_context>
chip_gen: v5e
topology: v5e:2x2
jax: 0.10.0
libtpu: 0.0.40
codegen_flags: <defaults>
</compile_context>

<pallas_src>
import functools

import jax
import jax.numpy as jnp
import numpy as np
from jax.experimental import pallas as pl
from jax.experimental.pallas import tpu as pltpu


# ----------------------------------------------------------------------------
# Positional weight matrix construction (parameter glue, plain JAX, vmappable)
# ----------------------------------------------------------------------------
def build_pos_weights(w6, N, K, query=True):
    """Replicates ScaledDotProductAttention.get_attn_weight.

    w6: (6,) [same_sample, same_class, diff_class, stoquery, querytos, query]
    returns (N*K+1, N*K+1)  (or (N*K, N*K) if query=False)
    """
    NK = N * K
    L = NK + 1
    idx = jnp.arange(L)
    is_qrow = (idx[:, None] == NK)
    is_qcol = (idx[None, :] == NK)
    cls = jnp.minimum(idx, NK - 1) // K
    W = jnp.where(cls[:, None] == cls[None, :], w6[1], w6[2])   # same / diff class
    W = jnp.where(idx[:, None] == idx[None, :], w6[0], W)       # diagonal -> same sample
    W = jnp.where(is_qcol, w6[3], W)                            # support -> query (last col)
    W = jnp.where(is_qrow, w6[4], W)                            # query -> support (last row)
    W = jnp.where(is_qrow & is_qcol, w6[5], W)                  # query -> query
    if not query:
        W = W[:NK, :NK]
    return W


# ----------------------------------------------------------------------------
# Fused Pallas kernel: whole encoder (all layers, all heads) in one invocation
# ----------------------------------------------------------------------------
def encoder_kernel(x_ref, w_ref, o_ref, *, nlayers, n_head, n_batch, d_k,
                   inv_temp, l_valid):
    # x_ref: (B, Lp, D) activations (rows >= l_valid are zero padding), D = n_head*d_k
    # w_ref: (nlayers, n_head*B, Lp, Lp) pre-tanh'ed positional weights (padding = 0)
    # o_ref: (B, Lp, D)
    B = n_batch
    Lp = x_ref.shape[1]
    x = x_ref[...]                                   # single VMEM load of the whole slab

    # Head split ONCE: heads are independent across layers (no output projection),
    # so stack them on a leading batch axis, n = h*B + b  ->  (n_head*B, Lp, d_k).
    xh = jnp.concatenate(
        [x[:, :, h * d_k:(h + 1) * d_k] for h in range(n_head)], axis=0)

    # Additive mask for the padded key column(s) so no softmax mass leaks there.
    key_ids = jax.lax.broadcasted_iota(jnp.int32, (1, 1, Lp), 2)
    neg_mask = jnp.where(key_ids < l_valid, 0.0, -1e30).astype(jnp.float32)

    for layer in range(nlayers):                     # static unroll (nlayers small)
        # One batched q.k^T over all heads & batches (full f32 precision).
        s = jnp.einsum('nqd,nkd->nqk', xh, xh,
                       preferred_element_type=jnp.float32,
                       precision=jax.lax.Precision.HIGHEST) * inv_temp
        s = s + neg_mask
        # softmax over keys (torch Softmax(dim=2)) -- exact division.
        m = jnp.max(s, axis=-1, keepdims=True)
        e = jnp.exp(s - m)
        attn = e / jnp.sum(e, axis=-1, keepdims=True)
        # positional tanh weighting: one full-slab elementwise multiply per layer.
        attn = attn * w_ref[layer]
        # One batched attn @ v over all heads & batches.
        xh = jnp.einsum('nqk,nkd->nqd', attn, xh,
                        preferred_element_type=jnp.float32,
                        precision=jax.lax.Precision.HIGHEST)

    # Merge heads back onto the lane axis ONCE (matches torch.cat(..., dim=-1)).
    out = jnp.concatenate(
        [xh[h * B:(h + 1) * B] for h in range(n_head)], axis=-1)
    o_ref[...] = out.astype(o_ref.dtype)


def encoder_forward(samples, attn_weights, N, K, n_head, d_k, nlayers, query=True):
    """Replicates Encoder.forward.

    samples: (B, L, D) with L = N*K+1 (query token last) and D = n_head*d_k
    attn_weights: (nlayers, n_head, 6)
    returns (output, attentions=[], pre_residual)
    """
    B, L, D = samples.shape
    assert D == n_head * d_k

    # Precompute tanh(W_pos) for every (layer, head) once, in float32.
    build = functools.partial(build_pos_weights, N=N, K=K, query=query)
    tanh_w = jnp.tanh(jax.vmap(jax.vmap(build))(attn_weights)).astype(jnp.float32)
    assert tanh_w.shape == (nlayers, n_head, L, L)

    # Pad sequence length to a full 8-sublane multiple; padded activation rows
    # and padded W rows/cols are zero (the kernel masks the padded key column).
    Lp = ((L + 7) // 8) * 8
    pad = Lp - L
    x_pad = jnp.pad(samples.astype(jnp.float32), ((0, 0), (0, pad), (0, 0)))
    w_pad = jnp.pad(tanh_w, ((0, 0), (0, 0), (0, pad), (0, pad)))
    # Pack per (head, batch) so the kernel multiplies one full slab per layer:
    # index n = h*B + b matches the kernel's head-stacked activation layout.
    w_packed = jnp.repeat(w_pad, B, axis=1)          # (nlayers, n_head*B, Lp, Lp)

    inv_temp = float(1.0 / np.sqrt(d_k))
    kernel = functools.partial(encoder_kernel, nlayers=nlayers, n_head=n_head,
                               n_batch=B, d_k=d_k, inv_temp=inv_temp, l_valid=L)

    n_bh = n_head * B
    cost = pl.CostEstimate(
        flops=nlayers * (2 * (2 * n_bh * Lp * Lp * d_k) + 6 * n_bh * Lp * Lp),
        transcendentals=nlayers * n_bh * Lp * Lp,
        bytes_accessed=4 * (x_pad.size + w_packed.size + B * Lp * D),
    )

    out_pad = pl.pallas_call(
        kernel,
        out_shape=jax.ShapeDtypeStruct((B, Lp, D), jnp.float32),
        # Whole arrays resident in VMEM; no grid -> single kernel step, single
        # HBM read / single HBM write, no per-head / per-layer launch overhead.
        # (v7x only: a grid=(B,) "parallel" split could use the second TC.)
        in_specs=[pl.BlockSpec(memory_space=pltpu.MemorySpace.VMEM),
                  pl.BlockSpec(memory_space=pltpu.MemorySpace.VMEM)],
        out_specs=pl.BlockSpec(memory_space=pltpu.MemorySpace.VMEM),
        cost_estimate=cost,
    )(x_pad, w_packed)

    out = out_pad[:, :L, :].astype(samples.dtype)    # drop padded query rows
    attentions = []          # torch Encoder.forward never appends to it
    pre_residual = out       # MultiHeadAttention: pre_residual == output
    return out, attentions, pre_residual


# ----------------------------------------------------------------------------
# Pure-JAX reference (exact softmax, full-precision matmuls) for correctness
# ----------------------------------------------------------------------------
def encoder_reference(samples, attn_weights, N, K, n_head, d_k, nlayers, query=True):
    x = samples
    for layer in range(nlayers):
        B, L, D = x.shape
        xh = x.reshape(B, L, n_head, d_k).transpose(2, 0, 1, 3)
        outs = []
        for h in range(n_head):
            qh = xh[h]
            scores = jnp.einsum('bqd,bkd->bqk', qh, qh,
                                precision=jax.lax.Precision.HIGHEST) / np.sqrt(d_k)
            attn = jax.nn.softmax(scores, axis=-1)
            W = build_pos_weights(attn_weights[layer, h], N, K, query)
            attn = jnp.tanh(W)[None] * attn
            outs.append(jnp.einsum('bqk,bkd->bqd', attn, qh,
                                   precision=jax.lax.Precision.HIGHEST))
        x = jnp.concatenate(outs, axis=-1)
    return x


# ----------------------------------------------------------------------------
if __name__ == "__main__":
    # N-way K-shot episode -> sequence length L = N*K + 1 (query token last)
    B = 2          # batch of episodes
    N, K = 2, 3    # 2-way 3-shot
    L = N * K + 1  # 7
    n_head = 4
    d_k = d_v = 8
    d_model = n_head * d_k   # 32
    nlayers = 2

    key = jax.random.PRNGKey(0)
    k_x, k_w = jax.random.split(key)

    samples = jax.random.normal(k_x, (B, L, d_model), dtype=jnp.float32)

    # Deterministic xavier_uniform-style init (tanh gain) for the (6,) attn_weight
    # of each head in each layer (fan_in=1, fan_out=6). attn_bias is unused -> omitted.
    gain = 5.0 / 3.0
    bound = gain * np.sqrt(6.0 / (1 + 6))
    attn_weights = jax.random.uniform(
        k_w, (nlayers, n_head, 6), minval=-bound, maxval=bound, dtype=jnp.float32)

    out, attentions, pre_residual = encoder_forward(
        samples, attn_weights, N, K, n_head, d_k, nlayers, query=True)
    out = jax.block_until_ready(out)
    pre_residual = jax.block_until_ready(pre_residual)

    ref = encoder_reference(samples, attn_weights, N, K, n_head, d_k, nlayers, query=True)
    # Exact softmax division + HIGHEST-precision matmuls on both sides -> tight tolerance.
    np.testing.assert_allclose(np.asarray(out), np.asarray(ref), rtol=1e-4, atol=1e-5)
    assert out.shape == (B, L, d_model)
    assert attentions == []

    print("KERNEL_OK")
</pallas_src>

<mosaic_0001>
module attributes {stable_mosaic.version = 11 : i64} {
  func.func @encoder_kernel(%arg0: memref<2x8x32xf32, #tpu.memory_space<vmem>>, %arg1: memref<2x8x8x8xf32, #tpu.memory_space<vmem>>, %arg2: memref<2x8x32xf32, #tpu.memory_space<vmem>>) attributes {dimension_semantics = [], scalar_prefetch = 0 : i64, scratch_operands = 0 : i64, tpu.core_type = #tpu.core_type<tc>} {
    %c0 = arith.constant 0 : index
    %c0_0 = arith.constant 0 : index
    %c0_1 = arith.constant 0 : index
    %0 = vector.load %arg0[%c0, %c0_0, %c0_1] : memref<2x8x32xf32, #tpu.memory_space<vmem>>, vector<2x8x32xf32>
    %1 = vector.extract_strided_slice %0 {offsets = [0, 0, 0], sizes = [2, 8, 8], strides = [1, 1, 1]} : vector<2x8x32xf32> to vector<2x8x8xf32>
    %2 = vector.extract_strided_slice %0 {offsets = [0, 0, 8], sizes = [2, 8, 8], strides = [1, 1, 1]} : vector<2x8x32xf32> to vector<2x8x8xf32>
    %3 = vector.extract_strided_slice %0 {offsets = [0, 0, 16], sizes = [2, 8, 8], strides = [1, 1, 1]} : vector<2x8x32xf32> to vector<2x8x8xf32>
    %4 = vector.extract_strided_slice %0 {offsets = [0, 0, 24], sizes = [2, 8, 8], strides = [1, 1, 1]} : vector<2x8x32xf32> to vector<2x8x8xf32>
    %5 = tpu.concatenate %1, %2, %3, %4 in 0 : vector<2x8x8xf32>, vector<2x8x8xf32>, vector<2x8x8xf32>, vector<2x8x8xf32> -> vector<8x8x8xf32>
    %6 = tpu.iota {dimensions = array<i32: 2>} : vector<1x1x8xi32>
    %c7_i32 = arith.constant 7 : i32
    %7 = vector.broadcast %c7_i32 : i32 to vector<1x1x8xi32>
    %8 = arith.cmpi slt, %6, %7 : vector<1x1x8xi32>
    %cst = arith.constant 0.000000e+00 : f32
    %cst_2 = arith.constant -1.000000e+30 : f32
    %9 = vector.broadcast %cst : f32 to vector<1x1x8xf32>
    %10 = vector.broadcast %cst_2 : f32 to vector<1x1x8xf32>
    %11 = arith.select %8, %9, %10 : vector<1x1x8xi1>, vector<1x1x8xf32>
    "tpu.trace_start"() <{level = 10 : i32, message = "nqd,nkd->nqk"}> : () -> ()
    %cst_3 = arith.constant dense<0.000000e+00> : vector<8x8x8xf32>
    %12 = tpu.matmul %5, %5, %cst_3 {dimension_numbers = #tpu.dot_dimension_numbers<[2], [2], [1], [1], [0, 0, 0, 1, 1, 1], [0], [0]>, precision = #tpu.contract_precision<fp32>} : vector<8x8x8xf32>, vector<8x8x8xf32>, vector<8x8x8xf32> -> vector<8x8x8xf32>
    "tpu.trace_stop"() : () -> ()
    %cst_4 = arith.constant 0.353553385 : f32
    %13 = vector.broadcast %cst_4 : f32 to vector<8x8x8xf32>
    %14 = arith.mulf %12, %13 : vector<8x8x8xf32>
    %15 = vector.broadcast %11 : vector<1x1x8xf32> to vector<8x8x8xf32>
    %16 = arith.addf %14, %15 : vector<8x8x8xf32>
    %cst_5 = arith.constant dense<0xFF800000> : vector<8x8xf32>
    %17 = vector.multi_reduction <maximumf>, %16, %cst_5 [2] : vector<8x8x8xf32> to vector<8x8xf32>
    %18 = vector.shape_cast %17 : vector<8x8xf32> to vector<8x8x1xf32>
    %19 = vector.broadcast %18 : vector<8x8x1xf32> to vector<8x8x8xf32>
    %20 = arith.subf %16, %19 : vector<8x8x8xf32>
    %21 = math.exp %20 : vector<8x8x8xf32>
    %cst_6 = arith.constant dense<0.000000e+00> : vector<8x8xf32>
    %22 = vector.multi_reduction <add>, %21, %cst_6 [2] : vector<8x8x8xf32> to vector<8x8xf32>
    %23 = vector.shape_cast %22 : vector<8x8xf32> to vector<8x8x1xf32>
    %24 = vector.broadcast %23 : vector<8x8x1xf32> to vector<8x8x8xf32>
    %25 = arith.divf %21, %24 : vector<8x8x8xf32>
    %c0_7 = arith.constant 0 : index
    %c0_8 = arith.constant 0 : index
    %c0_9 = arith.constant 0 : index
    %c0_10 = arith.constant 0 : index
    %26 = vector.load %arg1[%c0_7, %c0_8, %c0_9, %c0_10] : memref<2x8x8x8xf32, #tpu.memory_space<vmem>>, vector<1x8x8x8xf32>
    %27 = vector.shape_cast %26 : vector<1x8x8x8xf32> to vector<8x8x8xf32>
    %28 = arith.mulf %25, %27 : vector<8x8x8xf32>
    "tpu.trace_start"() <{level = 10 : i32, message = "nqk,nkd->nqd"}> : () -> ()
    %cst_11 = arith.constant dense<0.000000e+00> : vector<8x8x8xf32>
    %29 = tpu.matmul %28, %5, %cst_11 {dimension_numbers = #tpu.dot_dimension_numbers<[2], [1], [1], [2], [0, 0, 0, 1, 1, 2], [0], [0]>, precision = #tpu.contract_precision<fp32>} : vector<8x8x8xf32>, vector<8x8x8xf32>, vector<8x8x8xf32> -> vector<8x8x8xf32>
    "tpu.trace_stop"() : () -> ()
    "tpu.trace_start"() <{level = 10 : i32, message = "nqd,nkd->nqk"}> : () -> ()
    %cst_12 = arith.constant dense<0.000000e+00> : vector<8x8x8xf32>
    %30 = tpu.matmul %29, %29, %cst_12 {dimension_numbers = #tpu.dot_dimension_numbers<[2], [2], [1], [1], [0, 0, 0, 1, 1, 1], [0], [0]>, precision = #tpu.contract_precision<fp32>} : vector<8x8x8xf32>, vector<8x8x8xf32>, vector<8x8x8xf32> -> vector<8x8x8xf32>
    "tpu.trace_stop"() : () -> ()
    %cst_13 = arith.constant 0.353553385 : f32
    %31 = vector.broadcast %cst_13 : f32 to vector<8x8x8xf32>
    %32 = arith.mulf %30, %31 : vector<8x8x8xf32>
    %33 = vector.broadcast %11 : vector<1x1x8xf32> to vector<8x8x8xf32>
    %34 = arith.addf %32, %33 : vector<8x8x8xf32>
    %cst_14 = arith.constant dense<0xFF800000> : vector<8x8xf32>
    %35 = vector.multi_reduction <maximumf>, %34, %cst_14 [2] : vector<8x8x8xf32> to vector<8x8xf32>
    %36 = vector.shape_cast %35 : vector<8x8xf32> to vector<8x8x1xf32>
    %37 = vector.broadcast %36 : vector<8x8x1xf32> to vector<8x8x8xf32>
    %38 = arith.subf %34, %37 : vector<8x8x8xf32>
    %39 = math.exp %38 : vector<8x8x8xf32>
    %cst_15 = arith.constant dense<0.000000e+00> : vector<8x8xf32>
    %40 = vector.multi_reduction <add>, %39, %cst_15 [2] : vector<8x8x8xf32> to vector<8x8xf32>
    %41 = vector.shape_cast %40 : vector<8x8xf32> to vector<8x8x1xf32>
    %42 = vector.broadcast %41 : vector<8x8x1xf32> to vector<8x8x8xf32>
    %43 = arith.divf %39, %42 : vector<8x8x8xf32>
    %c1 = arith.constant 1 : index
    %c0_16 = arith.constant 0 : index
    %c0_17 = arith.constant 0 : index
    %c0_18 = arith.constant 0 : index
    %44 = vector.load %arg1[%c1, %c0_16, %c0_17, %c0_18] : memref<2x8x8x8xf32, #tpu.memory_space<vmem>>, vector<1x8x8x8xf32>
    %45 = vector.shape_cast %44 : vector<1x8x8x8xf32> to vector<8x8x8xf32>
    %46 = arith.mulf %43, %45 : vector<8x8x8xf32>
    "tpu.trace_start"() <{level = 10 : i32, message = "nqk,nkd->nqd"}> : () -> ()
    %cst_19 = arith.constant dense<0.000000e+00> : vector<8x8x8xf32>
    %47 = tpu.matmul %46, %29, %cst_19 {dimension_numbers = #tpu.dot_dimension_numbers<[2], [1], [1], [2], [0, 0, 0, 1, 1, 2], [0], [0]>, precision = #tpu.contract_precision<fp32>} : vector<8x8x8xf32>, vector<8x8x8xf32>, vector<8x8x8xf32> -> vector<8x8x8xf32>
    "tpu.trace_stop"() : () -> ()
    %48 = vector.extract_strided_slice %47 {offsets = [0, 0, 0], sizes = [2, 8, 8], strides = [1, 1, 1]} : vector<8x8x8xf32> to vector<2x8x8xf32>
    %49 = vector.extract_strided_slice %47 {offsets = [2, 0, 0], sizes = [2, 8, 8], strides = [1, 1, 1]} : vector<8x8x8xf32> to vector<2x8x8xf32>
    %50 = vector.extract_strided_slice %47 {offsets = [4, 0, 0], sizes = [2, 8, 8], strides = [1, 1, 1]} : vector<8x8x8xf32> to vector<2x8x8xf32>
    %51 = vector.extract_strided_slice %47 {offsets = [6, 0, 0], sizes = [2, 8, 8], strides = [1, 1, 1]} : vector<8x8x8xf32> to vector<2x8x8xf32>
    %52 = tpu.concatenate %48, %49, %50, %51 in 2 : vector<2x8x8xf32>, vector<2x8x8xf32>, vector<2x8x8xf32>, vector<2x8x8xf32> -> vector<2x8x32xf32>
    %c0_20 = arith.constant 0 : index
    %c0_21 = arith.constant 0 : index
    %c0_22 = arith.constant 0 : index
    %53 = vector.load %arg2[%c0_20, %c0_21, %c0_22] : memref<2x8x32xf32, #tpu.memory_space<vmem>>, vector<2x8x32xf32>
    tpu.vector_store %arg2[%c0_20, %c0_21, %c0_22], %52 {strides = array<i32>} : memref<2x8x32xf32, #tpu.memory_space<vmem>>, vector<2x8x32xf32>,
    return
  }
}

</mosaic_0001>

<llo_original>
// kernel: tpu_custom_call.1
$region0: #{tpu_custom_call.1}
  #allocation0 [shape = 'u32[]', space=smem, size = 0x4, offset = 0x4, fixed_abs, tag = 'smem constant byte address 0x4 - core index']
  #allocation1 [shape = 'u32[72,128]{1,0:T(1,128)}', space=vmem, size = 0x9000, scoped, tag = 'internal scratch']
  %s0 = inlined_call_operand.hbm [shape: f32[2,8,32], index: 0, kind: input, shape index: {}]
  %s1 = inlined_call_operand.hbm [shape: f32[2,8,8,8], index: 1, kind: input, shape index: {}]
  %s2 = inlined_call_operand.hbm [shape: f32[2,8,32], index: 2, kind: output, shape index: {}]
  %s3 = sld [smem:[#allocation0]]
  $region26: #{tpu_custom_call.1} parent=0
    _
  %s5 = ssub.s32 1, %s3
  %s6 = scalar_select 0, %s5, %s3
  $region1: #{tpu_custom_call.1} parent=0
    #allocation2 [shape = 'u8[8192]{0}', space=vmem, size = 0x2000, scoped, tag = 'input window, operand 0, single buffered']
    #allocation3 [shape = 's32[1]{0}', space=sflag, size = 0x4, scoped, tag = 'scoped memory for tpu_custom_call.1']
    #allocation4 [shape = 's32[1]{0}', space=sflag, size = 0x4, scoped, tag = 'scoped memory for tpu_custom_call.1']
    #allocation5 [shape = 'u8[65536]{0}', space=vmem, size = 0x10000, scoped, tag = 'input window, operand 1, single buffered']
    #allocation6 [shape = 's32[1]{0}', space=sflag, size = 0x4, scoped, tag = 'scoped memory for tpu_custom_call.1']
    #allocation7 [shape = 'u8[8192]{0}', space=vmem, size = 0x2000, scoped, tag = 'output window, operand 0, single buffered']
    %7 = vsyncpa [#allocation3], 0
    %8 = vsyncpa [#allocation6], 0
    %9 = vsyncpa [#allocation4], 0
    // Predicated region
    $region2: #{tpu_custom_call.1} parent=1 // pred_check
      _
    $region3: #{tpu_custom_call.1} parent=1 // pred_check_branch
      %11 = sbr.rel (0) target = $region5
    $region4: #{tpu_custom_call.1} parent=1 // pred_region
      %13 = vsyncadd [#allocation3], 0
      %s14 = sshll.u32 %s0, 4
      %s15 = int_to_ptr.hbm [resolvable:$true] %s14
      %s16 = sshll.u32 [#allocation2], 4
      %s17 = int_to_ptr.vmem [resolvable:$true] %s16
      %22 = dma.hbm_to_vmem [thread:$0]  %s15, 256, %s17, [#allocation3], 128, 128, 8
    $region5: #{tpu_custom_call.1} parent=1 // pred_fallthru
      _
    // Predicated region
    $region6: #{tpu_custom_call.1} parent=1 // pred_check
      _
    $region7: #{tpu_custom_call.1} parent=1 // pred_check_branch
      %24 = sbr.rel (0) target = $region9
    $region8: #{tpu_custom_call.1} parent=1 // pred_region
      %26 = vsyncadd [#allocation6], 0
      %s27 = sshll.u32 %s1, 4
      %s28 = int_to_ptr.hbm [resolvable:$true] %s27
      %s29 = sshll.u32 [#allocation5], 4
      %s30 = int_to_ptr.vmem [resolvable:$true] %s29
      %35 = dma.hbm_to_vmem [thread:$0]  %s28, 2048, %s30, [#allocation6], 128, 128, 8
    $region9: #{tpu_custom_call.1} parent=1 // pred_fallthru
      _
    // Predicated region
    $region10: #{tpu_custom_call.1} parent=1 // pred_check
      _
    $region11: #{tpu_custom_call.1} parent=1 // pred_check_branch
      %37 = sbr.rel (0) target = $region13
    $region12: #{tpu_custom_call.1} parent=1 // pred_region
      %39 = dma.done [#allocation3], 256
    $region13: #{tpu_custom_call.1} parent=1 // pred_fallthru
      _
    // Predicated region
    $region14: #{tpu_custom_call.1} parent=1 // pred_check
      _
    $region15: #{tpu_custom_call.1} parent=1 // pred_check_branch
      %41 = sbr.rel (0) target = $region17
    $region16: #{tpu_custom_call.1} parent=1 // pred_region
      %43 = dma.done [#allocation6], 2048
    $region17: #{tpu_custom_call.1} parent=1 // pred_fallthru
      _
    %v44 = vld [vmem:[#allocation2] sm:$0xff]
    %v45 = vld [vmem:[#allocation2 + $0x8] sm:$0xff]
    %48 = vrot.lane.b32.xlu0 %v44, 120
    %v49 = vpop.permute.xlu0 %48
    %50 = vrot.lane.b32.xlu0 %v45, 120
    %v51 = vpop.permute.xlu0 %50
    %54 = vrot.lane.b32.xlu0 %v44, 112
    %v55 = vpop.permute.xlu0 %54
    %56 = vrot.lane.b32.xlu0 %v45, 112
    %v57 = vpop.permute.xlu0 %56
    %60 = vrot.lane.b32.xlu0 %v44, 104
    %v61 = vpop.permute.xlu0 %60
    %62 = vrot.lane.b32.xlu0 %v45, 104
    %v63 = vpop.permute.xlu0 %62
    %v66 = vlaneseq
    %v67 = vand.u32 %v66, 127
    %vm68 = vcmp.lt.s32.totalorder %v67, 7
    %v69 = vsel %vm68, 0.0, -1e+30
    %vm70 = vcmask 64512
    %v71 = vsel %vm70, %v44, 0
    %73 = vmatpush.xpose.msra.mxu0 0.0
    %74 = vmatpush.xpose.msra.mxu0 0.0
    %75 = vmatpush.xpose.msra.mxu0 0.0
    %76 = vmatpush.xpose.msra.mxu0 0.0
    %77 = vmatpush.xpose.msra.mxu0 0.0
    %78 = vmatpush.xpose.msra.mxu0 0.0
    %79 = vmatpush.xpose.msra.mxu0 0.0
    %80 = vmatpush.xpose.msra.mxu0 0.0
    %81 = vmatpush.xpose.msra.mxu0 0.0
    %82 = vmatpush.xpose.msra.mxu0 0.0
    %83 = vmatpush.xpose.msra.mxu0 0.0
    %84 = vmatpush.xpose.msra.mxu0 0.0
    %85 = vmatpush.xpose.msra.mxu0 0.0
    %86 = vmatpush.xpose.msra.mxu0 0.0
    %87 = vmatpush.xpose.msra.mxu0 0.0
    %v88 = vand.u32 %v71, 4294901760
    %89 = vmatpush.xpose.msra.mxu0 %v88
    %v90 = vand.u32 %v71, 4294901760
    %v91 = vsub.f32 %v71, %v90
    %v92 = vand.u32 %v91, 4294901760
    %v93 = vsub.f32 %v91, %v92
    %v94 = vand.u32 %v93, 4294901760
    %95 = vmatmul.f32.gmra.mxu0 %v94
    %v96 = vpop.f32.mrf.mxu0
    %v97 = vadd.f32 0.0, %v96
    %98 = vdwg.mxu0
    %99 = vmatpush.xpose.msra.mxu0 0.0
    %100 = vmatpush.xpose.msra.mxu0 0.0
    %101 = vmatpush.xpose.msra.mxu0 0.0
    %102 = vmatpush.xpose.msra.mxu0 0.0
    %103 = vmatpush.xpose.msra.mxu0 0.0
    %104 = vmatpush.xpose.msra.mxu0 0.0
    %105 = vmatpush.xpose.msra.mxu0 0.0
    %106 = vmatpush.xpose.msra.mxu0 0.0
    %107 = vmatpush.xpose.msra.mxu0 0.0
    %108 = vmatpush.xpose.msra.mxu0 0.0
    %109 = vmatpush.xpose.msra.mxu0 0.0
    %110 = vmatpush.xpose.msra.mxu0 0.0
    %111 = vmatpush.xpose.msra.mxu0 0.0
    %112 = vmatpush.xpose.msra.mxu0 0.0
    %113 = vmatpush.xpose.msra.mxu0 0.0
    %v114 = vand.u32 %v71, 4294901760
    %v115 = vsub.f32 %v71, %v114
    %v116 = vand.u32 %v115, 4294901760
    %v117 = vsub.f32 %v115, %v116
    %v118 = vand.u32 %v117, 4294901760
    %119 = vmatpush.xpose.msra.mxu0 %v118
    %v120 = vand.u32 %v71, 4294901760
    %121 = vmatmul.f32.gmra.mxu0 %v120
    %v122 = vpop.f32.mrf.mxu0
    %v123 = vadd.f32 %v97, %v122
    %124 = vdwg.mxu0
    %125 = vmatpush.xpose.msra.mxu0 0.0
    %126 = vmatpush.xpose.msra.mxu0 0.0
    %127 = vmatpush.xpose.msra.mxu0 0.0
    %128 = vmatpush.xpose.msra.mxu0 0.0
    %129 = vmatpush.xpose.msra.mxu0 0.0
    %130 = vmatpush.xpose.msra.mxu0 0.0
    %131 = vmatpush.xpose.msra.mxu0 0.0
    %132 = vmatpush.xpose.msra.mxu0 0.0
    %133 = vmatpush.xpose.msra.mxu0 0.0
    %134 = vmatpush.xpose.msra.mxu0 0.0
    %135 = vmatpush.xpose.msra.mxu0 0.0
    %136 = vmatpush.xpose.msra.mxu0 0.0
    %137 = vmatpush.xpose.msra.mxu0 0.0
    %138 = vmatpush.xpose.msra.mxu0 0.0
    %139 = vmatpush.xpose.msra.mxu0 0.0
    %v140 = vand.u32 %v71, 4294901760
    %v141 = vsub.f32 %v71, %v140
    %142 = vmatpush.xpose.msra.mxu0 %v141
    %v143 = vand.u32 %v71, 4294901760
    %v144 = vsub.f32 %v71, %v143
    %145 = vmatmul.f32.gmra.mxu0 %v144
    %v146 = vpop.f32.mrf.mxu0
    %v147 = vadd.f32 %v123, %v146
    %148 = vdwg.mxu0
    %149 = vmatpush.xpose.msra.mxu0 0.0
    %150 = vmatpush.xpose.msra.mxu0 0.0
    %151 = vmatpush.xpose.msra.mxu0 0.0
    %152 = vmatpush.xpose.msra.mxu0 0.0
    %153 = vmatpush.xpose.msra.mxu0 0.0
    %154 = vmatpush.xpose.msra.mxu0 0.0
    %155 = vmatpush.xpose.msra.mxu0 0.0
    %156 = vmatpush.xpose.msra.mxu0 0.0
    %157 = vmatpush.xpose.msra.mxu0 0.0
    %158 = vmatpush.xpose.msra.mxu0 0.0
    %159 = vmatpush.xpose.msra.mxu0 0.0
    %160 = vmatpush.xpose.msra.mxu0 0.0
    %161 = vmatpush.xpose.msra.mxu0 0.0
    %162 = vmatpush.xpose.msra.mxu0 0.0
    %163 = vmatpush.xpose.msra.mxu0 0.0
    %v164 = vand.u32 %v71, 4294901760
    %165 = vmatpush.xpose.msra.mxu0 %v164
    %v166 = vand.u32 %v71, 4294901760
    %v167 = vsub.f32 %v71, %v166
    %v168 = vand.u32 %v167, 4294901760
    %169 = vmatmul.f32.gmra.mxu0 %v168
    %v170 = vpop.f32.mrf.mxu0
    %v171 = vadd.f32 %v147, %v170
    %172 = vdwg.mxu0
    %173 = vmatpush.xpose.msra.mxu0 0.0
    %174 = vmatpush.xpose.msra.mxu0 0.0
    %175 = vmatpush.xpose.msra.mxu0 0.0
    %176 = vmatpush.xpose.msra.mxu0 0.0
    %177 = vmatpush.xpose.msra.mxu0 0.0
    %178 = vmatpush.xpose.msra.mxu0 0.0
    %179 = vmatpush.xpose.msra.mxu0 0.0
    %180 = vmatpush.xpose.msra.mxu0 0.0
    %181 = vmatpush.xpose.msra.mxu0 0.0
    %182 = vmatpush.xpose.msra.mxu0 0.0
    %183 = vmatpush.xpose.msra.mxu0 0.0
    %184 = vmatpush.xpose.msra.mxu0 0.0
    %185 = vmatpush.xpose.msra.mxu0 0.0
    %186 = vmatpush.xpose.msra.mxu0 0.0
    %187 = vmatpush.xpose.msra.mxu0 0.0
    %v188 = vand.u32 %v71, 4294901760
    %v189 = vsub.f32 %v71, %v188
    %v190 = vand.u32 %v189, 4294901760
    %191 = vmatpush.xpose.msra.mxu0 %v190
    %v192 = vand.u32 %v71, 4294901760
    %193 = vmatmul.f32.gmra.mxu0 %v192
    %v194 = vpop.f32.mrf.mxu0
    %v195 = vadd.f32 %v171, %v194
    %196 = vdwg.mxu0
    %197 = vmatpush.xpose.msra.mxu0 0.0
    %198 = vmatpush.xpose.msra.mxu0 0.0
    %199 = vmatpush.xpose.msra.mxu0 0.0
    %200 = vmatpush.xpose.msra.mxu0 0.0
    %201 = vmatpush.xpose.msra.mxu0 0.0
    %202 = vmatpush.xpose.msra.mxu0 0.0
    %203 = vmatpush.xpose.msra.mxu0 0.0
    %204 = vmatpush.xpose.msra.mxu0 0.0
    %205 = vmatpush.xpose.msra.mxu0 0.0
    %206 = vmatpush.xpose.msra.mxu0 0.0
    %207 = vmatpush.xpose.msra.mxu0 0.0
    %208 = vmatpush.xpose.msra.mxu0 0.0
    %209 = vmatpush.xpose.msra.mxu0 0.0
    %210 = vmatpush.xpose.msra.mxu0 0.0
    %211 = vmatpush.xpose.msra.mxu0 0.0
    %v212 = vand.u32 %v71, 4294901760
    %213 = vmatpush.xpose.msra.mxu0 %v212
    %v214 = vand.u32 %v71, 4294901760
    %215 = vmatmul.f32.gmra.mxu0 %v214
    %v216 = vpop.f32.mrf.mxu0
    %v217 = vadd.f32 %v195, %v216
    %218 = vdwg.mxu0
    %v219 = vsel %vm70, %v45, 0
    %221 = vmatpush.xpose.msra.mxu0 0.0
    %222 = vmatpush.xpose.msra.mxu0 0.0
    %223 = vmatpush.xpose.msra.mxu0 0.0
    %224 = vmatpush.xpose.msra.mxu0 0.0
    %225 = vmatpush.xpose.msra.mxu0 0.0
    %226 = vmatpush.xpose.msra.mxu0 0.0
    %227 = vmatpush.xpose.msra.mxu0 0.0
    %228 = vmatpush.xpose.msra.mxu0 0.0
    %229 = vmatpush.xpose.msra.mxu0 0.0
    %230 = vmatpush.xpose.msra.mxu0 0.0
    %231 = vmatpush.xpose.msra.mxu0 0.0
    %232 = vmatpush.xpose.msra.mxu0 0.0
    %233 = vmatpush.xpose.msra.mxu0 0.0
    %234 = vmatpush.xpose.msra.mxu0 0.0
    %235 = vmatpush.xpose.msra.mxu0 0.0
    %v236 = vand.u32 %v219, 4294901760
    %237 = vmatpush.xpose.msra.mxu0 %v236
    %v238 = vand.u32 %v219, 4294901760
    %v239 = vsub.f32 %v219, %v238
    %v240 = vand.u32 %v239, 4294901760
    %v241 = vsub.f32 %v239, %v240
    %v242 = vand.u32 %v241, 4294901760
    %243 = vmatmul.f32.gmra.mxu0 %v242
    %v244 = vpop.f32.mrf.mxu0
    %v245 = vadd.f32 0.0, %v244
    %246 = vdwg.mxu0
    %247 = vmatpush.xpose.msra.mxu0 0.0
    %248 = vmatpush.xpose.msra.mxu0 0.0
    %249 = vmatpush.xpose.msra.mxu0 0.0
    %250 = vmatpush.xpose.msra.mxu0 0.0
    %251 = vmatpush.xpose.msra.mxu0 0.0
    %252 = vmatpush.xpose.msra.mxu0 0.0
    %253 = vmatpush.xpose.msra.mxu0 0.0
    %254 = vmatpush.xpose.msra.mxu0 0.0
    %255 = vmatpush.xpose.msra.mxu0 0.0
    %256 = vmatpush.xpose.msra.mxu0 0.0
    %257 = vmatpush.xpose.msra.mxu0 0.0
    %258 = vmatpush.xpose.msra.mxu0 0.0
    %259 = vmatpush.xpose.msra.mxu0 0.0
    %260 = vmatpush.xpose.msra.mxu0 0.0
    %261 = vmatpush.xpose.msra.mxu0 0.0
    %v262 = vand.u32 %v219, 4294901760
    %v263 = vsub.f32 %v219, %v262
    %v264 = vand.u32 %v263, 4294901760
    %v265 = vsub.f32 %v263, %v264
    %v266 = vand.u32 %v265, 4294901760
    %267 = vmatpush.xpose.msra.mxu0 %v266
    %v268 = vand.u32 %v219, 4294901760
    %269 = vmatmul.f32.gmra.mxu0 %v268
    %v270 = vpop.f32.mrf.mxu0
    %v271 = vadd.f32 %v245, %v270
    %272 = vdwg.mxu0
    %273 = vmatpush.xpose.msra.mxu0 0.0
    %274 = vmatpush.xpose.msra.mxu0 0.0
    %275 = vmatpush.xpose.msra.mxu0 0.0
    %276 = vmatpush.xpose.msra.mxu0 0.0
    %277 = vmatpush.xpose.msra.mxu0 0.0
    %278 = vmatpush.xpose.msra.mxu0 0.0
    %279 = vmatpush.xpose.msra.mxu0 0.0
    %280 = vmatpush.xpose.msra.mxu0 0.0
    %281 = vmatpush.xpose.msra.mxu0 0.0
    %282 = vmatpush.xpose.msra.mxu0 0.0
    %283 = vmatpush.xpose.msra.mxu0 0.0
    %284 = vmatpush.xpose.msra.mxu0 0.0
    %285 = vmatpush.xpose.msra.mxu0 0.0
    %286 = vmatpush.xpose.msra.mxu0 0.0
    %287 = vmatpush.xpose.msra.mxu0 0.0
    %v288 = vand.u32 %v219, 4294901760
    %v289 = vsub.f32 %v219, %v288
    %290 = vmatpush.xpose.msra.mxu0 %v289
    %v291 = vand.u32 %v219, 4294901760
    %v292 = vsub.f32 %v219, %v291
    %293 = vmatmul.f32.gmra.mxu0 %v292
    %v294 = vpop.f32.mrf.mxu0
    %v295 = vadd.f32 %v271, %v294
    %296 = vdwg.mxu0
    %297 = vmatpush.xpose.msra.mxu0 0.0
    %298 = vmatpush.xpose.msra.mxu0 0.0
    %299 = vmatpush.xpose.msra.mxu0 0.0
    %300 = vmatpush.xpose.msra.mxu0 0.0
    %301 = vmatpush.xpose.msra.mxu0 0.0
    %302 = vmatpush.xpose.msra.mxu0 0.0
    %303 = vmatpush.xpose.msra.mxu0 0.0
    %304 = vmatpush.xpose.msra.mxu0 0.0
    %305 = vmatpush.xpose.msra.mxu0 0.0
    %306 = vmatpush.xpose.msra.mxu0 0.0
    %307 = vmatpush.xpose.msra.mxu0 0.0
    %308 = vmatpush.xpose.msra.mxu0 0.0
    %309 = vmatpush.xpose.msra.mxu0 0.0
    %310 = vmatpush.xpose.msra.mxu0 0.0
    %311 = vmatpush.xpose.msra.mxu0 0.0
    %v312 = vand.u32 %v219, 4294901760
    %313 = vmatpush.xpose.msra.mxu0 %v312
    %v314 = vand.u32 %v219, 4294901760
    %v315 = vsub.f32 %v219, %v314
    %v316 = vand.u32 %v315, 4294901760
    %317 = vmatmul.f32.gmra.mxu0 %v316
    %v318 = vpop.f32.mrf.mxu0
    %v319 = vadd.f32 %v295, %v318
    %320 = vdwg.mxu0
    %321 = vmatpush.xpose.msra.mxu0 0.0
    %322 = vmatpush.xpose.msra.mxu0 0.0
    %323 = vmatpush.xpose.msra.mxu0 0.0
    %324 = vmatpush.xpose.msra.mxu0 0.0
    %325 = vmatpush.xpose.msra.mxu0 0.0
    %326 = vmatpush.xpose.msra.mxu0 0.0
    %327 = vmatpush.xpose.msra.mxu0 0.0
    %328 = vmatpush.xpose.msra.mxu0 0.0
    %329 = vmatpush.xpose.msra.mxu0 0.0
    %330 = vmatpush.xpose.msra.mxu0 0.0
    %331 = vmatpush.xpose.msra.mxu0 0.0
    %332 = vmatpush.xpose.msra.mxu0 0.0
    %333 = vmatpush.xpose.msra.mxu0 0.0
    %334 = vmatpush.xpose.msra.mxu0 0.0
    %335 = vmatpush.xpose.msra.mxu0 0.0
    %v336 = vand.u32 %v219, 4294901760
    %v337 = vsub.f32 %v219, %v336
    %v338 = vand.u32 %v337, 4294901760
    %339 = vmatpush.xpose.msra.mxu0 %v338
    %v340 = vand.u32 %v219, 4294901760
    %341 = vmatmul.f32.gmra.mxu0 %v340
    %v342 = vpop.f32.mrf.mxu0
    %v343 = vadd.f32 %v319, %v342
    %344 = vdwg.mxu0
    %345 = vmatpush.xpose.msra.mxu0 0.0
    %346 = vmatpush.xpose.msra.mxu0 0.0
    %347 = vmatpush.xpose.msra.mxu0 0.0
    %348 = vmatpush.xpose.msra.mxu0 0.0
    %349 = vmatpush.xpose.msra.mxu0 0.0
    %350 = vmatpush.xpose.msra.mxu0 0.0
    %351 = vmatpush.xpose.msra.mxu0 0.0
    %352 = vmatpush.xpose.msra.mxu0 0.0
    %353 = vmatpush.xpose.msra.mxu0 0.0
    %354 = vmatpush.xpose.msra.mxu0 0.0
    %355 = vmatpush.xpose.msra.mxu0 0.0
    %356 = vmatpush.xpose.msra.mxu0 0.0
    %357 = vmatpush.xpose.msra.mxu0 0.0
    %358 = vmatpush.xpose.msra.mxu0 0.0
    %359 = vmatpush.xpose.msra.mxu0 0.0
    %v360 = vand.u32 %v219, 4294901760
    %361 = vmatpush.xpose.msra.mxu0 %v360
    %v362 = vand.u32 %v219, 4294901760
    %363 = vmatmul.f32.gmra.mxu0 %v362
    %v364 = vpop.f32.mrf.mxu0
    %v365 = vadd.f32 %v343, %v364
    %366 = vdwg.mxu0
    %v367 = vsel %vm70, %v49, 0
    %369 = vmatpush.xpose.msra.mxu0 0.0
    %370 = vmatpush.xpose.msra.mxu0 0.0
    %371 = vmatpush.xpose.msra.mxu0 0.0
    %372 = vmatpush.xpose.msra.mxu0 0.0
    %373 = vmatpush.xpose.msra.mxu0 0.0
    %374 = vmatpush.xpose.msra.mxu0 0.0
    %375 = vmatpush.xpose.msra.mxu0 0.0
    %376 = vmatpush.xpose.msra.mxu0 0.0
    %377 = vmatpush.xpose.msra.mxu0 0.0
    %378 = vmatpush.xpose.msra.mxu0 0.0
    %379 = vmatpush.xpose.msra.mxu0 0.0
    %380 = vmatpush.xpose.msra.mxu0 0.0
    %381 = vmatpush.xpose.msra.mxu0 0.0
    %382 = vmatpush.xpose.msra.mxu0 0.0
    %383 = vmatpush.xpose.msra.mxu0 0.0
    %v384 = vand.u32 %v367, 4294901760
    %385 = vmatpush.xpose.msra.mxu0 %v384
    %v386 = vand.u32 %v367, 4294901760
    %v387 = vsub.f32 %v367, %v386
    %v388 = vand.u32 %v387, 4294901760
    %v389 = vsub.f32 %v387, %v388
    %v390 = vand.u32 %v389, 4294901760
    %391 = vmatmul.f32.gmra.mxu0 %v390
    %v392 = vpop.f32.mrf.mxu0
    %v393 = vadd.f32 0.0, %v392
    %394 = vdwg.mxu0
    %395 = vmatpush.xpose.msra.mxu0 0.0
    %396 = vmatpush.xpose.msra.mxu0 0.0
    %397 = vmatpush.xpose.msra.mxu0 0.0
    %398 = vmatpush.xpose.msra.mxu0 0.0
    %399 = vmatpush.xpose.msra.mxu0 0.0
    %400 = vmatpush.xpose.msra.mxu0 0.0
    %401 = vmatpush.xpose.msra.mxu0 0.0
    %402 = vmatpush.xpose.msra.mxu0 0.0
    %403 = vmatpush.xpose.msra.mxu0 0.0
    %404 = vmatpush.xpose.msra.mxu0 0.0
    %405 = vmatpush.xpose.msra.mxu0 0.0
    %406 = vmatpush.xpose.msra.mxu0 0.0
    %407 = vmatpush.xpose.msra.mxu0 0.0
    %408 = vmatpush.xpose.msra.mxu0 0.0
    %409 = vmatpush.xpose.msra.mxu0 0.0
    %v410 = vand.u32 %v367, 4294901760
    %v411 = vsub.f32 %v367, %v410
    %v412 = vand.u32 %v411, 4294901760
    %v413 = vsub.f32 %v411, %v412
    %v414 = vand.u32 %v413, 4294901760
    %415 = vmatpush.xpose.msra.mxu0 %v414
    %v416 = vand.u32 %v367, 4294901760
    %417 = vmatmul.f32.gmra.mxu0 %v416
    %v418 = vpop.f32.mrf.mxu0
    %v419 = vadd.f32 %v393, %v418
    %420 = vdwg.mxu0
    %421 = vmatpush.xpose.msra.mxu0 0.0
    %422 = vmatpush.xpose.msra.mxu0 0.0
    %423 = vmatpush.xpose.msra.mxu0 0.0
    %424 = vmatpush.xpose.msra.mxu0 0.0
    %425 = vmatpush.xpose.msra.mxu0 0.0
    %426 = vmatpush.xpose.msra.mxu0 0.0
    %427 = vmatpush.xpose.msra.mxu0 0.0
    %428 = vmatpush.xpose.msra.mxu0 0.0
    %429 = vmatpush.xpose.msra.mxu0 0.0
    %430 = vmatpush.xpose.msra.mxu0 0.0
    %431 = vmatpush.xpose.msra.mxu0 0.0
    %432 = vmatpush.xpose.msra.mxu0 0.0
    %433 = vmatpush.xpose.msra.mxu0 0.0
    %434 = vmatpush.xpose.msra.mxu0 0.0
    %435 = vmatpush.xpose.msra.mxu0 0.0
    %v436 = vand.u32 %v367, 4294901760
    %v437 = vsub.f32 %v367, %v436
    %438 = vmatpush.xpose.msra.mxu0 %v437
    %v439 = vand.u32 %v367, 4294901760
    %v440 = vsub.f32 %v367, %v439
    %441 = vmatmul.f32.gmra.mxu0 %v440
    %v442 = vpop.f32.mrf.mxu0
    %v443 = vadd.f32 %v419, %v442
    %444 = vdwg.mxu0
    %445 = vmatpush.xpose.msra.mxu0 0.0
    %446 = vmatpush.xpose.msra.mxu0 0.0
    %447 = vmatpush.xpose.msra.mxu0 0.0
    %448 = vmatpush.xpose.msra.mxu0 0.0
    %449 = vmatpush.xpose.msra.mxu0 0.0
    %450 = vmatpush.xpose.msra.mxu0 0.0
    %451 = vmatpush.xpose.msra.mxu0 0.0
    %452 = vmatpush.xpose.msra.mxu0 0.0
    %453 = vmatpush.xpose.msra.mxu0 0.0
    %454 = vmatpush.xpose.msra.mxu0 0.0
    %455 = vmatpush.xpose.msra.mxu0 0.0
    %456 = vmatpush.xpose.msra.mxu0 0.0
    %457 = vmatpush.xpose.msra.mxu0 0.0
    %458 = vmatpush.xpose.msra.mxu0 0.0
    %459 = vmatpush.xpose.msra.mxu0 0.0
    %v460 = vand.u32 %v367, 4294901760
    %461 = vmatpush.xpose.msra.mxu0 %v460
    %v462 = vand.u32 %v367, 4294901760
    %v463 = vsub.f32 %v367, %v462
    %v464 = vand.u32 %v463, 4294901760
    %465 = vmatmul.f32.gmra.mxu0 %v464
    %v466 = vpop.f32.mrf.mxu0
    %v467 = vadd.f32 %v443, %v466
    %468 = vdwg.mxu0
    %469 = vmatpush.xpose.msra.mxu0 0.0
    %470 = vmatpush.xpose.msra.mxu0 0.0
    %471 = vmatpush.xpose.msra.mxu0 0.0
    %472 = vmatpush.xpose.msra.mxu0 0.0
    %473 = vmatpush.xpose.msra.mxu0 0.0
    %474 = vmatpush.xpose.msra.mxu0 0.0
    %475 = vmatpush.xpose.msra.mxu0 0.0
    %476 = vmatpush.xpose.msra.mxu0 0.0
    %477 = vmatpush.xpose.msra.mxu0 0.0
    %478 = vmatpush.xpose.msra.mxu0 0.0
    %479 = vmatpush.xpose.msra.mxu0 0.0
    %480 = vmatpush.xpose.msra.mxu0 0.0
    %481 = vmatpush.xpose.msra.mxu0 0.0
    %482 = vmatpush.xpose.msra.mxu0 0.0
    %483 = vmatpush.xpose.msra.mxu0 0.0
    %v484 = vand.u32 %v367, 4294901760
    %v485 = vsub.f32 %v367, %v484
    %v486 = vand.u32 %v485, 4294901760
    %487 = vmatpush.xpose.msra.mxu0 %v486
    %v488 = vand.u32 %v367, 4294901760
    %489 = vmatmul.f32.gmra.mxu0 %v488
    %v490 = vpop.f32.mrf.mxu0
    %v491 = vadd.f32 %v467, %v490
    %492 = vdwg.mxu0
    %493 = vmatpush.xpose.msra.mxu0 0.0
    %494 = vmatpush.xpose.msra.mxu0 0.0
    %495 = vmatpush.xpose.msra.mxu0 0.0
    %496 = vmatpush.xpose.msra.mxu0 0.0
    %497 = vmatpush.xpose.msra.mxu0 0.0
    %498 = vmatpush.xpose.msra.mxu0 0.0
    %499 = vmatpush.xpose.msra.mxu0 0.0
    %500 = vmatpush.xpose.msra.mxu0 0.0
    %501 = vmatpush.xpose.msra.mxu0 0.0
    %502 = vmatpush.xpose.msra.mxu0 0.0
    %503 = vmatpush.xpose.msra.mxu0 0.0
    %504 = vmatpush.xpose.msra.mxu0 0.0
    %505 = vmatpush.xpose.msra.mxu0 0.0
    %506 = vmatpush.xpose.msra.mxu0 0.0
    %507 = vmatpush.xpose.msra.mxu0 0.0
    %v508 = vand.u32 %v367, 4294901760
    %509 = vmatpush.xpose.msra.mxu0 %v508
    %v510 = vand.u32 %v367, 4294901760
    %511 = vmatmul.f32.gmra.mxu0 %v510
    %v512 = vpop.f32.mrf.mxu0
    %v513 = vadd.f32 %v491, %v512
    %514 = vdwg.mxu0
    %v515 = vsel %vm70, %v51, 0
    %517 = vmatpush.xpose.msra.mxu0 0.0
    %518 = vmatpush.xpose.msra.mxu0 0.0
    %519 = vmatpush.xpose.msra.mxu0 0.0
    %520 = vmatpush.xpose.msra.mxu0 0.0
    %521 = vmatpush.xpose.msra.mxu0 0.0
    %522 = vmatpush.xpose.msra.mxu0 0.0
    %523 = vmatpush.xpose.msra.mxu0 0.0
    %524 = vmatpush.xpose.msra.mxu0 0.0
    %525 = vmatpush.xpose.msra.mxu0 0.0
    %526 = vmatpush.xpose.msra.mxu0 0.0
    %527 = vmatpush.xpose.msra.mxu0 0.0
    %528 = vmatpush.xpose.msra.mxu0 0.0
    %529 = vmatpush.xpose.msra.mxu0 0.0
    %530 = vmatpush.xpose.msra.mxu0 0.0
    %531 = vmatpush.xpose.msra.mxu0 0.0
    %v532 = vand.u32 %v515, 4294901760
    %533 = vmatpush.xpose.msra.mxu0 %v532
    %v534 = vand.u32 %v515, 4294901760
    %v535 = vsub.f32 %v515, %v534
    %v536 = vand.u32 %v535, 4294901760
    %v537 = vsub.f32 %v535, %v536
    %v538 = vand.u32 %v537, 4294901760
    %539 = vmatmul.f32.gmra.mxu0 %v538
    %v540 = vpop.f32.mrf.mxu0
    %v541 = vadd.f32 0.0, %v540
    %542 = vdwg.mxu0
    %543 = vmatpush.xpose.msra.mxu0 0.0
    %544 = vmatpush.xpose.msra.mxu0 0.0
    %545 = vmatpush.xpose.msra.mxu0 0.0
    %546 = vmatpush.xpose.msra.mxu0 0.0
    %547 = vmatpush.xpose.msra.mxu0 0.0
    %548 = vmatpush.xpose.msra.mxu0 0.0
    %549 = vmatpush.xpose.msra.mxu0 0.0
    %550 = vmatpush.xpose.msra.mxu0 0.0
    %551 = vmatpush.xpose.msra.mxu0 0.0
    %552 = vmatpush.xpose.msra.mxu0 0.0
    %553 = vmatpush.xpose.msra.mxu0 0.0
    %554 = vmatpush.xpose.msra.mxu0 0.0
    %555 = vmatpush.xpose.msra.mxu0 0.0
    %556 = vmatpush.xpose.msra.mxu0 0.0
    %557 = vmatpush.xpose.msra.mxu0 0.0
    %v558 = vand.u32 %v515, 4294901760
    %v559 = vsub.f32 %v515, %v558
    %v560 = vand.u32 %v559, 4294901760
    %v561 = vsub.f32 %v559, %v560
    %v562 = vand.u32 %v561, 4294901760
    %563 = vmatpush.xpose.msra.mxu0 %v562
    %v564 = vand.u32 %v515, 4294901760
    %565 = vmatmul.f32.gmra.mxu0 %v564
    %v566 = vpop.f32.mrf.mxu0
    %v567 = vadd.f32 %v541, %v566
    %568 = vdwg.mxu0
    %569 = vmatpush.xpose.msra.mxu0 0.0
    %570 = vmatpush.xpose.msra.mxu0 0.0
    %571 = vmatpush.xpose.msra.mxu0 0.0
    %572 = vmatpush.xpose.msra.mxu0 0.0
    %573 = vmatpush.xpose.msra.mxu0 0.0
    %574 = vmatpush.xpose.msra.mxu0 0.0
    %575 = vmatpush.xpose.msra.mxu0 0.0
    %576 = vmatpush.xpose.msra.mxu0 0.0
    %577 = vmatpush.xpose.msra.mxu0 0.0
    %578 = vmatpush.xpose.msra.mxu0 0.0
    %579 = vmatpush.xpose.msra.mxu0 0.0
    %580 = vmatpush.xpose.msra.mxu0 0.0
    %581 = vmatpush.xpose.msra.mxu0 0.0
    %582 = vmatpush.xpose.msra.mxu0 0.0
    %583 = vmatpush.xpose.msra.mxu0 0.0
    %v584 = vand.u32 %v515, 4294901760
    %v585 = vsub.f32 %v515, %v584
    %586 = vmatpush.xpose.msra.mxu0 %v585
    %v587 = vand.u32 %v515, 4294901760
    %v588 = vsub.f32 %v515, %v587
    %589 = vmatmul.f32.gmra.mxu0 %v588
    %v590 = vpop.f32.mrf.mxu0
    %v591 = vadd.f32 %v567, %v590
    %592 = vdwg.mxu0
    %593 = vmatpush.xpose.msra.mxu0 0.0
    %594 = vmatpush.xpose.msra.mxu0 0.0
    %595 = vmatpush.xpose.msra.mxu0 0.0
    %596 = vmatpush.xpose.msra.mxu0 0.0
    %597 = vmatpush.xpose.msra.mxu0 0.0
    %598 = vmatpush.xpose.msra.mxu0 0.0
    %599 = vmatpush.xpose.msra.mxu0 0.0
    %600 = vmatpush.xpose.msra.mxu0 0.0
    %601 = vmatpush.xpose.msra.mxu0 0.0
    %602 = vmatpush.xpose.msra.mxu0 0.0
    %603 = vmatpush.xpose.msra.mxu0 0.0
    %604 = vmatpush.xpose.msra.mxu0 0.0
    %605 = vmatpush.xpose.msra.mxu0 0.0
    %606 = vmatpush.xpose.msra.mxu0 0.0
    %607 = vmatpush.xpose.msra.mxu0 0.0
    %v608 = vand.u32 %v515, 4294901760
    %609 = vmatpush.xpose.msra.mxu0 %v608
    %v610 = vand.u32 %v515, 4294901760
    %v611 = vsub.f32 %v515, %v610
    %v612 = vand.u32 %v611, 4294901760
    %613 = vmatmul.f32.gmra.mxu0 %v612
    %v614 = vpop.f32.mrf.mxu0
    %v615 = vadd.f32 %v591, %v614
    %616 = vdwg.mxu0
    %617 = vmatpush.xpose.msra.mxu0 0.0
    %618 = vmatpush.xpose.msra.mxu0 0.0
    %619 = vmatpush.xpose.msra.mxu0 0.0
    %620 = vmatpush.xpose.msra.mxu0 0.0
    %621 = vmatpush.xpose.msra.mxu0 0.0
    %622 = vmatpush.xpose.msra.mxu0 0.0
    %623 = vmatpush.xpose.msra.mxu0 0.0
    %624 = vmatpush.xpose.msra.mxu0 0.0
    %625 = vmatpush.xpose.msra.mxu0 0.0
    %626 = vmatpush.xpose.msra.mxu0 0.0
    %627 = vmatpush.xpose.msra.mxu0 0.0
    %628 = vmatpush.xpose.msra.mxu0 0.0
    %629 = vmatpush.xpose.msra.mxu0 0.0
    %630 = vmatpush.xpose.msra.mxu0 0.0
    %631 = vmatpush.xpose.msra.mxu0 0.0
    %v632 = vand.u32 %v515, 4294901760
    %v633 = vsub.f32 %v515, %v632
    %v634 = vand.u32 %v633, 4294901760
    %635 = vmatpush.xpose.msra.mxu0 %v634
    %v636 = vand.u32 %v515, 4294901760
    %637 = vmatmul.f32.gmra.mxu0 %v636
    %v638 = vpop.f32.mrf.mxu0
    %v639 = vadd.f32 %v615, %v638
    %640 = vdwg.mxu0
    %641 = vmatpush.xpose.msra.mxu0 0.0
    %642 = vmatpush.xpose.msra.mxu0 0.0
    %643 = vmatpush.xpose.msra.mxu0 0.0
    %644 = vmatpush.xpose.msra.mxu0 0.0
    %645 = vmatpush.xpose.msra.mxu0 0.0
    %646 = vmatpush.xpose.msra.mxu0 0.0
    %647 = vmatpush.xpose.msra.mxu0 0.0
    %648 = vmatpush.xpose.msra.mxu0 0.0
    %649 = vmatpush.xpose.msra.mxu0 0.0
    %650 = vmatpush.xpose.msra.mxu0 0.0
    %651 = vmatpush.xpose.msra.mxu0 0.0
    %652 = vmatpush.xpose.msra.mxu0 0.0
    %653 = vmatpush.xpose.msra.mxu0 0.0
    %654 = vmatpush.xpose.msra.mxu0 0.0
    %655 = vmatpush.xpose.msra.mxu0 0.0
    %v656 = vand.u32 %v515, 4294901760
    %657 = vmatpush.xpose.msra.mxu0 %v656
    %v658 = vand.u32 %v515, 4294901760
    %659 = vmatmul.f32.gmra.mxu0 %v658
    %v660 = vpop.f32.mrf.mxu0
    %v661 = vadd.f32 %v639, %v660
    %662 = vdwg.mxu0
    %v663 = vsel %vm70, %v55, 0
    %665 = vmatpush.xpose.msra.mxu0 0.0
    %666 = vmatpush.xpose.msra.mxu0 0.0
    %667 = vmatpush.xpose.msra.mxu0 0.0
    %668 = vmatpush.xpose.msra.mxu0 0.0
    %669 = vmatpush.xpose.msra.mxu0 0.0
    %670 = vmatpush.xpose.msra.mxu0 0.0
    %671 = vmatpush.xpose.msra.mxu0 0.0
    %672 = vmatpush.xpose.msra.mxu0 0.0
    %673 = vmatpush.xpose.msra.mxu0 0.0
    %674 = vmatpush.xpose.msra.mxu0 0.0
    %675 = vmatpush.xpose.msra.mxu0 0.0
    %676 = vmatpush.xpose.msra.mxu0 0.0
    %677 = vmatpush.xpose.msra.mxu0 0.0
    %678 = vmatpush.xpose.msra.mxu0 0.0
    %679 = vmatpush.xpose.msra.mxu0 0.0
    %v680 = vand.u32 %v663, 4294901760
    %681 = vmatpush.xpose.msra.mxu0 %v680
    %v682 = vand.u32 %v663, 4294901760
    %v683 = vsub.f32 %v663, %v682
    %v684 = vand.u32 %v683, 4294901760
    %v685 = vsub.f32 %v683, %v684
    %v686 = vand.u32 %v685, 4294901760
    %687 = vmatmul.f32.gmra.mxu0 %v686
    %v688 = vpop.f32.mrf.mxu0
    %v689 = vadd.f32 0.0, %v688
    %690 = vdwg.mxu0
    %691 = vmatpush.xpose.msra.mxu0 0.0
    %692 = vmatpush.xpose.msra.mxu0 0.0
    %693 = vmatpush.xpose.msra.mxu0 0.0
    %694 = vmatpush.xpose.msra.mxu0 0.0
    %695 = vmatpush.xpose.msra.mxu0 0.0
    %696 = vmatpush.xpose.msra.mxu0 0.0
    %697 = vmatpush.xpose.msra.mxu0 0.0
    %698 = vmatpush.xpose.msra.mxu0 0.0
    %699 = vmatpush.xpose.msra.mxu0 0.0
    %700 = vmatpush.xpose.msra.mxu0 0.0
    %701 = vmatpush.xpose.msra.mxu0 0.0
    %702 = vmatpush.xpose.msra.mxu0 0.0
    %703 = vmatpush.xpose.msra.mxu0 0.0
    %704 = vmatpush.xpose.msra.mxu0 0.0
    %705 = vmatpush.xpose.msra.mxu0 0.0
    %v706 = vand.u32 %v663, 4294901760
    %v707 = vsub.f32 %v663, %v706
    %v708 = vand.u32 %v707, 4294901760
    %v709 = vsub.f32 %v707, %v708
    %v710 = vand.u32 %v709, 4294901760
    %711 = vmatpush.xpose.msra.mxu0 %v710
    %v712 = vand.u32 %v663, 4294901760
    %713 = vmatmul.f32.gmra.mxu0 %v712
    %v714 = vpop.f32.mrf.mxu0
    %v715 = vadd.f32 %v689, %v714
    %716 = vdwg.mxu0
    %717 = vmatpush.xpose.msra.mxu0 0.0
    %718 = vmatpush.xpose.msra.mxu0 0.0
    %719 = vmatpush.xpose.msra.mxu0 0.0
    %720 = vmatpush.xpose.msra.mxu0 0.0
    %721 = vmatpush.xpose.msra.mxu0 0.0
    %722 = vmatpush.xpose.msra.mxu0 0.0
    %723 = vmatpush.xpose.msra.mxu0 0.0
    %724 = vmatpush.xpose.msra.mxu0 0.0
    %725 = vmatpush.xpose.msra.mxu0 0.0
    %726 = vmatpush.xpose.msra.mxu0 0.0
    %727 = vmatpush.xpose.msra.mxu0 0.0
    %728 = vmatpush.xpose.msra.mxu0 0.0
    %729 = vmatpush.xpose.msra.mxu0 0.0
    %730 = vmatpush.xpose.msra.mxu0 0.0
    %731 = vmatpush.xpose.msra.mxu0 0.0
    %v732 = vand.u32 %v663, 4294901760
    %v733 = vsub.f32 %v663, %v732
    %734 = vmatpush.xpose.msra.mxu0 %v733
    %v735 = vand.u32 %v663, 4294901760
    %v736 = vsub.f32 %v663, %v735
    %737 = vmatmul.f32.gmra.mxu0 %v736
    %v738 = vpop.f32.mrf.mxu0
    %v739 = vadd.f32 %v715, %v738
    %740 = vdwg.mxu0
    %741 = vmatpush.xpose.msra.mxu0 0.0
    %742 = vmatpush.xpose.msra.mxu0 0.0
    %743 = vmatpush.xpose.msra.mxu0 0.0
    %744 = vmatpush.xpose.msra.mxu0 0.0
    %745 = vmatpush.xpose.msra.mxu0 0.0
    %746 = vmatpush.xpose.msra.mxu0 0.0
    %747 = vmatpush.xpose.msra.mxu0 0.0
    %748 = vmatpush.xpose.msra.mxu0 0.0
    %749 = vmatpush.xpose.msra.mxu0 0.0
    %750 = vmatpush.xpose.msra.mxu0 0.0
    %751 = vmatpush.xpose.msra.mxu0 0.0
    %752 = vmatpush.xpose.msra.mxu0 0.0
    %753 = vmatpush.xpose.msra.mxu0 0.0
    %754 = vmatpush.xpose.msra.mxu0 0.0
    %755 = vmatpush.xpose.msra.mxu0 0.0
    %v756 = vand.u32 %v663, 4294901760
    %757 = vmatpush.xpose.msra.mxu0 %v756
    %v758 = vand.u32 %v663, 4294901760
    %v759 = vsub.f32 %v663, %v758
    %v760 = vand.u32 %v759, 4294901760
    %761 = vmatmul.f32.gmra.mxu0 %v760
    %v762 = vpop.f32.mrf.mxu0
    %v763 = vadd.f32 %v739, %v762
    %764 = vdwg.mxu0
    %765 = vmatpush.xpose.msra.mxu0 0.0
    %766 = vmatpush.xpose.msra.mxu0 0.0
    %767 = vmatpush.xpose.msra.mxu0 0.0
    %768 = vmatpush.xpose.msra.mxu0 0.0
    %769 = vmatpush.xpose.msra.mxu0 0.0
    %770 = vmatpush.xpose.msra.mxu0 0.0
    %771 = vmatpush.xpose.msra.mxu0 0.0
    %772 = vmatpush.xpose.msra.mxu0 0.0
    %773 = vmatpush.xpose.msra.mxu0 0.0
    %774 = vmatpush.xpose.msra.mxu0 0.0
    %775 = vmatpush.xpose.msra.mxu0 0.0
    %776 = vmatpush.xpose.msra.mxu0 0.0
    %777 = vmatpush.xpose.msra.mxu0 0.0
    %778 = vmatpush.xpose.msra.mxu0 0.0
    %779 = vmatpush.xpose.msra.mxu0 0.0
    %v780 = vand.u32 %v663, 4294901760
    %v781 = vsub.f32 %v663, %v780
    %v782 = vand.u32 %v781, 4294901760
    %783 = vmatpush.xpose.msra.mxu0 %v782
    %v784 = vand.u32 %v663, 4294901760
    %785 = vmatmul.f32.gmra.mxu0 %v784
    %v786 = vpop.f32.mrf.mxu0
    %v787 = vadd.f32 %v763, %v786
    %788 = vdwg.mxu0
    %789 = vmatpush.xpose.msra.mxu0 0.0
    %790 = vmatpush.xpose.msra.mxu0 0.0
    %791 = vmatpush.xpose.msra.mxu0 0.0
    %792 = vmatpush.xpose.msra.mxu0 0.0
    %793 = vmatpush.xpose.msra.mxu0 0.0
    %794 = vmatpush.xpose.msra.mxu0 0.0
    %795 = vmatpush.xpose.msra.mxu0 0.0
    %796 = vmatpush.xpose.msra.mxu0 0.0
    %797 = vmatpush.xpose.msra.mxu0 0.0
    %798 = vmatpush.xpose.msra.mxu0 0.0
    %799 = vmatpush.xpose.msra.mxu0 0.0
    %800 = vmatpush.xpose.msra.mxu0 0.0
    %801 = vmatpush.xpose.msra.mxu0 0.0
    %802 = vmatpush.xpose.msra.mxu0 0.0
    %803 = vmatpush.xpose.msra.mxu0 0.0
    %v804 = vand.u32 %v663, 4294901760
    %805 = vmatpush.xpose.msra.mxu0 %v804
    %v806 = vand.u32 %v663, 4294901760
    %807 = vmatmul.f32.gmra.mxu0 %v806
    %v808 = vpop.f32.mrf.mxu0
    %v809 = vadd.f32 %v787, %v808
    %810 = vdwg.mxu0
    %v811 = vsel %vm70, %v57, 0
    %813 = vmatpush.xpose.msra.mxu0 0.0
    %814 = vmatpush.xpose.msra.mxu0 0.0
    %815 = vmatpush.xpose.msra.mxu0 0.0
    %816 = vmatpush.xpose.msra.mxu0 0.0
    %817 = vmatpush.xpose.msra.mxu0 0.0
    %818 = vmatpush.xpose.msra.mxu0 0.0
    %819 = vmatpush.xpose.msra.mxu0 0.0
    %820 = vmatpush.xpose.msra.mxu0 0.0
    %821 = vmatpush.xpose.msra.mxu0 0.0
    %822 = vmatpush.xpose.msra.mxu0 0.0
    %823 = vmatpush.xpose.msra.mxu0 0.0
    %824 = vmatpush.xpose.msra.mxu0 0.0
    %825 = vmatpush.xpose.msra.mxu0 0.0
    %826 = vmatpush.xpose.msra.mxu0 0.0
    %827 = vmatpush.xpose.msra.mxu0 0.0
    %v828 = vand.u32 %v811, 4294901760
    %829 = vmatpush.xpose.msra.mxu0 %v828
    %v830 = vand.u32 %v811, 4294901760
    %v831 = vsub.f32 %v811, %v830
    %v832 = vand.u32 %v831, 4294901760
    %v833 = vsub.f32 %v831, %v832
    %v834 = vand.u32 %v833, 4294901760
    %835 = vmatmul.f32.gmra.mxu0 %v834
    %v836 = vpop.f32.mrf.mxu0
    %v837 = vadd.f32 0.0, %v836
    %838 = vdwg.mxu0
    %839 = vmatpush.xpose.msra.mxu0 0.0
    %840 = vmatpush.xpose.msra.mxu0 0.0
    %841 = vmatpush.xpose.msra.mxu0 0.0
    %842 = vmatpush.xpose.msra.mxu0 0.0
    %843 = vmatpush.xpose.msra.mxu0 0.0
    %844 = vmatpush.xpose.msra.mxu0 0.0
    %845 = vmatpush.xpose.msra.mxu0 0.0
    %846 = vmatpush.xpose.msra.mxu0 0.0
    %847 = vmatpush.xpose.msra.mxu0 0.0
    %848 = vmatpush.xpose.msra.mxu0 0.0
    %849 = vmatpush.xpose.msra.mxu0 0.0
    %850 = vmatpush.xpose.msra.mxu0 0.0
    %851 = vmatpush.xpose.msra.mxu0 0.0
    %852 = vmatpush.xpose.msra.mxu0 0.0
    %853 = vmatpush.xpose.msra.mxu0 0.0
    %v854 = vand.u32 %v811, 4294901760
    %v855 = vsub.f32 %v811, %v854
    %v856 = vand.u32 %v855, 4294901760
    %v857 = vsub.f32 %v855, %v856
    %v858 = vand.u32 %v857, 4294901760
    %859 = vmatpush.xpose.msra.mxu0 %v858
    %v860 = vand.u32 %v811, 4294901760
    %861 = vmatmul.f32.gmra.mxu0 %v860
    %v862 = vpop.f32.mrf.mxu0
    %v863 = vadd.f32 %v837, %v862
    %864 = vdwg.mxu0
    %865 = vmatpush.xpose.msra.mxu0 0.0
    %866 = vmatpush.xpose.msra.mxu0 0.0
    %867 = vmatpush.xpose.msra.mxu0 0.0
    %868 = vmatpush.xpose.msra.mxu0 0.0
    %869 = vmatpush.xpose.msra.mxu0 0.0
    %870 = vmatpush.xpose.msra.mxu0 0.0
    %871 = vmatpush.xpose.msra.mxu0 0.0
    %872 = vmatpush.xpose.msra.mxu0 0.0
    %873 = vmatpush.xpose.msra.mxu0 0.0
    %874 = vmatpush.xpose.msra.mxu0 0.0
    %875 = vmatpush.xpose.msra.mxu0 0.0
    %876 = vmatpush.xpose.msra.mxu0 0.0
    %877 = vmatpush.xpose.msra.mxu0 0.0
    %878 = vmatpush.xpose.msra.mxu0 0.0
    %879 = vmatpush.xpose.msra.mxu0 0.0
    %v880 = vand.u32 %v811, 4294901760
    %v881 = vsub.f32 %v811, %v880
    %882 = vmatpush.xpose.msra.mxu0 %v881
    %v883 = vand.u32 %v811, 4294901760
    %v884 = vsub.f32 %v811, %v883
    %885 = vmatmul.f32.gmra.mxu0 %v884
    %v886 = vpop.f32.mrf.mxu0
    %v887 = vadd.f32 %v863, %v886
    %888 = vdwg.mxu0
    %889 = vmatpush.xpose.msra.mxu0 0.0
    %890 = vmatpush.xpose.msra.mxu0 0.0
    %891 = vmatpush.xpose.msra.mxu0 0.0
    %892 = vmatpush.xpose.msra.mxu0 0.0
    %893 = vmatpush.xpose.msra.mxu0 0.0
    %894 = vmatpush.xpose.msra.mxu0 0.0
    %895 = vmatpush.xpose.msra.mxu0 0.0
    %896 = vmatpush.xpose.msra.mxu0 0.0
    %897 = vmatpush.xpose.msra.mxu0 0.0
    %898 = vmatpush.xpose.msra.mxu0 0.0
    %899 = vmatpush.xpose.msra.mxu0 0.0
    %900 = vmatpush.xpose.msra.mxu0 0.0
    %901 = vmatpush.xpose.msra.mxu0 0.0
    %902 = vmatpush.xpose.msra.mxu0 0.0
    %903 = vmatpush.xpose.msra.mxu0 0.0
    %v904 = vand.u32 %v811, 4294901760
    %905 = vmatpush.xpose.msra.mxu0 %v904
    %v906 = vand.u32 %v811, 4294901760
    %v907 = vsub.f32 %v811, %v906
    %v908 = vand.u32 %v907, 4294901760
    %909 = vmatmul.f32.gmra.mxu0 %v908
    %v910 = vpop.f32.mrf.mxu0
    %v911 = vadd.f32 %v887, %v910
    %912 = vdwg.mxu0
    %913 = vmatpush.xpose.msra.mxu0 0.0
    %914 = vmatpush.xpose.msra.mxu0 0.0
    %915 = vmatpush.xpose.msra.mxu0 0.0
    %916 = vmatpush.xpose.msra.mxu0 0.0
    %917 = vmatpush.xpose.msra.mxu0 0.0
    %918 = vmatpush.xpose.msra.mxu0 0.0
    %919 = vmatpush.xpose.msra.mxu0 0.0
    %920 = vmatpush.xpose.msra.mxu0 0.0
    %921 = vmatpush.xpose.msra.mxu0 0.0
    %922 = vmatpush.xpose.msra.mxu0 0.0
    %923 = vmatpush.xpose.msra.mxu0 0.0
    %924 = vmatpush.xpose.msra.mxu0 0.0
    %925 = vmatpush.xpose.msra.mxu0 0.0
    %926 = vmatpush.xpose.msra.mxu0 0.0
    %927 = vmatpush.xpose.msra.mxu0 0.0
    %v928 = vand.u32 %v811, 4294901760
    %v929 = vsub.f32 %v811, %v928
    %v930 = vand.u32 %v929, 4294901760
    %931 = vmatpush.xpose.msra.mxu0 %v930
    %v932 = vand.u32 %v811, 4294901760
    %933 = vmatmul.f32.gmra.mxu0 %v932
    %v934 = vpop.f32.mrf.mxu0
    %v935 = vadd.f32 %v911, %v934
    %936 = vdwg.mxu0
    %937 = vmatpush.xpose.msra.mxu0 0.0
    %938 = vmatpush.xpose.msra.mxu0 0.0
    %939 = vmatpush.xpose.msra.mxu0 0.0
    %940 = vmatpush.xpose.msra.mxu0 0.0
    %941 = vmatpush.xpose.msra.mxu0 0.0
    %942 = vmatpush.xpose.msra.mxu0 0.0
    %943 = vmatpush.xpose.msra.mxu0 0.0
    %944 = vmatpush.xpose.msra.mxu0 0.0
    %945 = vmatpush.xpose.msra.mxu0 0.0
    %946 = vmatpush.xpose.msra.mxu0 0.0
    %947 = vmatpush.xpose.msra.mxu0 0.0
    %948 = vmatpush.xpose.msra.mxu0 0.0
    %949 = vmatpush.xpose.msra.mxu0 0.0
    %950 = vmatpush.xpose.msra.mxu0 0.0
    %951 = vmatpush.xpose.msra.mxu0 0.0
    %v952 = vand.u32 %v811, 4294901760
    %953 = vmatpush.xpose.msra.mxu0 %v952
    %v954 = vand.u32 %v811, 4294901760
    %955 = vmatmul.f32.gmra.mxu0 %v954
    %v956 = vpop.f32.mrf.mxu0
    %v957 = vadd.f32 %v935, %v956
    %958 = vdwg.mxu0
    %v959 = vsel %vm70, %v61, 0
    %961 = vmatpush.xpose.msra.mxu0 0.0
    %962 = vmatpush.xpose.msra.mxu0 0.0
    %963 = vmatpush.xpose.msra.mxu0 0.0
    %964 = vmatpush.xpose.msra.mxu0 0.0
    %965 = vmatpush.xpose.msra.mxu0 0.0
    %966 = vmatpush.xpose.msra.mxu0 0.0
    %967 = vmatpush.xpose.msra.mxu0 0.0
    %968 = vmatpush.xpose.msra.mxu0 0.0
    %969 = vmatpush.xpose.msra.mxu0 0.0
    %970 = vmatpush.xpose.msra.mxu0 0.0
    %971 = vmatpush.xpose.msra.mxu0 0.0
    %972 = vmatpush.xpose.msra.mxu0 0.0
    %973 = vmatpush.xpose.msra.mxu0 0.0
    %974 = vmatpush.xpose.msra.mxu0 0.0
    %975 = vmatpush.xpose.msra.mxu0 0.0
    %v976 = vand.u32 %v959, 4294901760
    %977 = vmatpush.xpose.msra.mxu0 %v976
    %v978 = vand.u32 %v959, 4294901760
    %v979 = vsub.f32 %v959, %v978
    %v980 = vand.u32 %v979, 4294901760
    %v981 = vsub.f32 %v979, %v980
    %v982 = vand.u32 %v981, 4294901760
    %983 = vmatmul.f32.gmra.mxu0 %v982
    %v984 = vpop.f32.mrf.mxu0
    %v985 = vadd.f32 0.0, %v984
    %986 = vdwg.mxu0
    %987 = vmatpush.xpose.msra.mxu0 0.0
    %988 = vmatpush.xpose.msra.mxu0 0.0
    %989 = vmatpush.xpose.msra.mxu0 0.0
    %990 = vmatpush.xpose.msra.mxu0 0.0
    %991 = vmatpush.xpose.msra.mxu0 0.0
    %992 = vmatpush.xpose.msra.mxu0 0.0
    %993 = vmatpush.xpose.msra.mxu0 0.0
    %994 = vmatpush.xpose.msra.mxu0 0.0
    %995 = vmatpush.xpose.msra.mxu0 0.0
    %996 = vmatpush.xpose.msra.mxu0 0.0
    %997 = vmatpush.xpose.msra.mxu0 0.0
    %998 = vmatpush.xpose.msra.mxu0 0.0
    %999 = vmatpush.xpose.msra.mxu0 0.0
    %1000 = vmatpush.xpose.msra.mxu0 0.0
    %1001 = vmatpush.xpose.msra.mxu0 0.0
    %v1002 = vand.u32 %v959, 4294901760
    %v1003 = vsub.f32 %v959, %v1002
    %v1004 = vand.u32 %v1003, 4294901760
    %v1005 = vsub.f32 %v1003, %v1004
    %v1006 = vand.u32 %v1005, 4294901760
    %1007 = vmatpush.xpose.msra.mxu0 %v1006
    %v1008 = vand.u32 %v959, 4294901760
    %1009 = vmatmul.f32.gmra.mxu0 %v1008
    %v1010 = vpop.f32.mrf.mxu0
    %v1011 = vadd.f32 %v985, %v1010
    %1012 = vdwg.mxu0
    %1013 = vmatpush.xpose.msra.mxu0 0.0
    %1014 = vmatpush.xpose.msra.mxu0 0.0
    %1015 = vmatpush.xpose.msra.mxu0 0.0
    %1016 = vmatpush.xpose.msra.mxu0 0.0
    %1017 = vmatpush.xpose.msra.mxu0 0.0
    %1018 = vmatpush.xpose.msra.mxu0 0.0
    %1019 = vmatpush.xpose.msra.mxu0 0.0
    %1020 = vmatpush.xpose.msra.mxu0 0.0
    %1021 = vmatpush.xpose.msra.mxu0 0.0
    %1022 = vmatpush.xpose.msra.mxu0 0.0
    %1023 = vmatpush.xpose.msra.mxu0 0.0
    %1024 = vmatpush.xpose.msra.mxu0 0.0
    %1025 = vmatpush.xpose.msra.mxu0 0.0
    %1026 = vmatpush.xpose.msra.mxu0 0.0
    %1027 = vmatpush.xpose.msra.mxu0 0.0
    %v1028 = vand.u32 %v959, 4294901760
    %v1029 = vsub.f32 %v959, %v1028
    %1030 = vmatpush.xpose.msra.mxu0 %v1029
    %v1031 = vand.u32 %v959, 4294901760
    %v1032 = vsub.f32 %v959, %v1031
    %1033 = vmatmul.f32.gmra.mxu0 %v1032
    %v1034 = vpop.f32.mrf.mxu0
    %v1035 = vadd.f32 %v1011, %v1034
    %1036 = vdwg.mxu0
    %1037 = vmatpush.xpose.msra.mxu0 0.0
    %1038 = vmatpush.xpose.msra.mxu0 0.0
    %1039 = vmatpush.xpose.msra.mxu0 0.0
    %1040 = vmatpush.xpose.msra.mxu0 0.0
    %1041 = vmatpush.xpose.msra.mxu0 0.0
    %1042 = vmatpush.xpose.msra.mxu0 0.0
    %1043 = vmatpush.xpose.msra.mxu0 0.0
    %1044 = vmatpush.xpose.msra.mxu0 0.0
    %1045 = vmatpush.xpose.msra.mxu0 0.0
    %1046 = vmatpush.xpose.msra.mxu0 0.0
    %1047 = vmatpush.xpose.msra.mxu0 0.0
    %1048 = vmatpush.xpose.msra.mxu0 0.0
    %1049 = vmatpush.xpose.msra.mxu0 0.0
    %1050 = vmatpush.xpose.msra.mxu0 0.0
    %1051 = vmatpush.xpose.msra.mxu0 0.0
    %v1052 = vand.u32 %v959, 4294901760
    %1053 = vmatpush.xpose.msra.mxu0 %v1052
    %v1054 = vand.u32 %v959, 4294901760
    %v1055 = vsub.f32 %v959, %v1054
    %v1056 = vand.u32 %v1055, 4294901760
    %1057 = vmatmul.f32.gmra.mxu0 %v1056
    %v1058 = vpop.f32.mrf.mxu0
    %v1059 = vadd.f32 %v1035, %v1058
    %1060 = vdwg.mxu0
    %1061 = vmatpush.xpose.msra.mxu0 0.0
    %1062 = vmatpush.xpose.msra.mxu0 0.0
    %1063 = vmatpush.xpose.msra.mxu0 0.0
    %1064 = vmatpush.xpose.msra.mxu0 0.0
    %1065 = vmatpush.xpose.msra.mxu0 0.0
    %1066 = vmatpush.xpose.msra.mxu0 0.0
    %1067 = vmatpush.xpose.msra.mxu0 0.0
    %1068 = vmatpush.xpose.msra.mxu0 0.0
    %1069 = vmatpush.xpose.msra.mxu0 0.0
    %1070 = vmatpush.xpose.msra.mxu0 0.0
    %1071 = vmatpush.xpose.msra.mxu0 0.0
    %1072 = vmatpush.xpose.msra.mxu0 0.0
    %1073 = vmatpush.xpose.msra.mxu0 0.0
    %1074 = vmatpush.xpose.msra.mxu0 0.0
    %1075 = vmatpush.xpose.msra.mxu0 0.0
    %v1076 = vand.u32 %v959, 4294901760
    %v1077 = vsub.f32 %v959, %v1076
    %v1078 = vand.u32 %v1077, 4294901760
    %1079 = vmatpush.xpose.msra.mxu0 %v1078
    %v1080 = vand.u32 %v959, 4294901760
    %1081 = vmatmul.f32.gmra.mxu0 %v1080
    %v1082 = vpop.f32.mrf.mxu0
    %v1083 = vadd.f32 %v1059, %v1082
    %1084 = vdwg.mxu0
    %1085 = vmatpush.xpose.msra.mxu0 0.0
    %1086 = vmatpush.xpose.msra.mxu0 0.0
    %1087 = vmatpush.xpose.msra.mxu0 0.0
    %1088 = vmatpush.xpose.msra.mxu0 0.0
    %1089 = vmatpush.xpose.msra.mxu0 0.0
    %1090 = vmatpush.xpose.msra.mxu0 0.0
    %1091 = vmatpush.xpose.msra.mxu0 0.0
    %1092 = vmatpush.xpose.msra.mxu0 0.0
    %1093 = vmatpush.xpose.msra.mxu0 0.0
    %1094 = vmatpush.xpose.msra.mxu0 0.0
    %1095 = vmatpush.xpose.msra.mxu0 0.0
    %1096 = vmatpush.xpose.msra.mxu0 0.0
    %1097 = vmatpush.xpose.msra.mxu0 0.0
    %1098 = vmatpush.xpose.msra.mxu0 0.0
    %1099 = vmatpush.xpose.msra.mxu0 0.0
    %v1100 = vand.u32 %v959, 4294901760
    %1101 = vmatpush.xpose.msra.mxu0 %v1100
    %v1102 = vand.u32 %v959, 4294901760
    %1103 = vmatmul.f32.gmra.mxu0 %v1102
    %v1104 = vpop.f32.mrf.mxu0
    %v1105 = vadd.f32 %v1083, %v1104
    %1106 = vdwg.mxu0
    %v1107 = vsel %vm70, %v63, 0
    %1109 = vmatpush.xpose.msra.mxu0 0.0
    %1110 = vmatpush.xpose.msra.mxu0 0.0
    %1111 = vmatpush.xpose.msra.mxu0 0.0
    %1112 = vmatpush.xpose.msra.mxu0 0.0
    %1113 = vmatpush.xpose.msra.mxu0 0.0
    %1114 = vmatpush.xpose.msra.mxu0 0.0
    %1115 = vmatpush.xpose.msra.mxu0 0.0
    %1116 = vmatpush.xpose.msra.mxu0 0.0
    %1117 = vmatpush.xpose.msra.mxu0 0.0
    %1118 = vmatpush.xpose.msra.mxu0 0.0
    %1119 = vmatpush.xpose.msra.mxu0 0.0
    %1120 = vmatpush.xpose.msra.mxu0 0.0
    %1121 = vmatpush.xpose.msra.mxu0 0.0
    %1122 = vmatpush.xpose.msra.mxu0 0.0
    %1123 = vmatpush.xpose.msra.mxu0 0.0
    %v1124 = vand.u32 %v1107, 4294901760
    %1125 = vmatpush.xpose.msra.mxu0 %v1124
    %v1126 = vand.u32 %v1107, 4294901760
    %v1127 = vsub.f32 %v1107, %v1126
    %v1128 = vand.u32 %v1127, 4294901760
    %v1129 = vsub.f32 %v1127, %v1128
    %v1130 = vand.u32 %v1129, 4294901760
    %1131 = vmatmul.f32.gmra.mxu0 %v1130
    %v1132 = vpop.f32.mrf.mxu0
    %v1133 = vadd.f32 0.0, %v1132
    %1134 = vdwg.mxu0
    %1135 = vmatpush.xpose.msra.mxu0 0.0
    %1136 = vmatpush.xpose.msra.mxu0 0.0
    %1137 = vmatpush.xpose.msra.mxu0 0.0
    %1138 = vmatpush.xpose.msra.mxu0 0.0
    %1139 = vmatpush.xpose.msra.mxu0 0.0
    %1140 = vmatpush.xpose.msra.mxu0 0.0
    %1141 = vmatpush.xpose.msra.mxu0 0.0
    %1142 = vmatpush.xpose.msra.mxu0 0.0
    %1143 = vmatpush.xpose.msra.mxu0 0.0
    %1144 = vmatpush.xpose.msra.mxu0 0.0
    %1145 = vmatpush.xpose.msra.mxu0 0.0
    %1146 = vmatpush.xpose.msra.mxu0 0.0
    %1147 = vmatpush.xpose.msra.mxu0 0.0
    %1148 = vmatpush.xpose.msra.mxu0 0.0
    %1149 = vmatpush.xpose.msra.mxu0 0.0
    %v1150 = vand.u32 %v1107, 4294901760
    %v1151 = vsub.f32 %v1107, %v1150
    %v1152 = vand.u32 %v1151, 4294901760
    %v1153 = vsub.f32 %v1151, %v1152
    %v1154 = vand.u32 %v1153, 4294901760
    %1155 = vmatpush.xpose.msra.mxu0 %v1154
    %v1156 = vand.u32 %v1107, 4294901760
    %1157 = vmatmul.f32.gmra.mxu0 %v1156
    %v1158 = vpop.f32.mrf.mxu0
    %v1159 = vadd.f32 %v1133, %v1158
    %1160 = vdwg.mxu0
    %1161 = vmatpush.xpose.msra.mxu0 0.0
    %1162 = vmatpush.xpose.msra.mxu0 0.0
    %1163 = vmatpush.xpose.msra.mxu0 0.0
    %1164 = vmatpush.xpose.msra.mxu0 0.0
    %1165 = vmatpush.xpose.msra.mxu0 0.0
    %1166 = vmatpush.xpose.msra.mxu0 0.0
    %1167 = vmatpush.xpose.msra.mxu0 0.0
    %1168 = vmatpush.xpose.msra.mxu0 0.0
    %1169 = vmatpush.xpose.msra.mxu0 0.0
    %1170 = vmatpush.xpose.msra.mxu0 0.0
    %1171 = vmatpush.xpose.msra.mxu0 0.0
    %1172 = vmatpush.xpose.msra.mxu0 0.0
    %1173 = vmatpush.xpose.msra.mxu0 0.0
    %1174 = vmatpush.xpose.msra.mxu0 0.0
    %1175 = vmatpush.xpose.msra.mxu0 0.0
    %v1176 = vand.u32 %v1107, 4294901760
    %v1177 = vsub.f32 %v1107, %v1176
    %1178 = vmatpush.xpose.msra.mxu0 %v1177
    %v1179 = vand.u32 %v1107, 4294901760
    %v1180 = vsub.f32 %v1107, %v1179
    %1181 = vmatmul.f32.gmra.mxu0 %v1180
    %v1182 = vpop.f32.mrf.mxu0
    %v1183 = vadd.f32 %v1159, %v1182
    %1184 = vdwg.mxu0
    %1185 = vmatpush.xpose.msra.mxu0 0.0
    %1186 = vmatpush.xpose.msra.mxu0 0.0
    %1187 = vmatpush.xpose.msra.mxu0 0.0
    %1188 = vmatpush.xpose.msra.mxu0 0.0
    %1189 = vmatpush.xpose.msra.mxu0 0.0
    %1190 = vmatpush.xpose.msra.mxu0 0.0
    %1191 = vmatpush.xpose.msra.mxu0 0.0
    %1192 = vmatpush.xpose.msra.mxu0 0.0
    %1193 = vmatpush.xpose.msra.mxu0 0.0
    %1194 = vmatpush.xpose.msra.mxu0 0.0
    %1195 = vmatpush.xpose.msra.mxu0 0.0
    %1196 = vmatpush.xpose.msra.mxu0 0.0
    %1197 = vmatpush.xpose.msra.mxu0 0.0
    %1198 = vmatpush.xpose.msra.mxu0 0.0
    %1199 = vmatpush.xpose.msra.mxu0 0.0
    %v1200 = vand.u32 %v1107, 4294901760
    %1201 = vmatpush.xpose.msra.mxu0 %v1200
    %v1202 = vand.u32 %v1107, 4294901760
    %v1203 = vsub.f32 %v1107, %v1202
    %v1204 = vand.u32 %v1203, 4294901760
    %1205 = vmatmul.f32.gmra.mxu0 %v1204
    %v1206 = vpop.f32.mrf.mxu0
    %v1207 = vadd.f32 %v1183, %v1206
    %1208 = vdwg.mxu0
    %1209 = vmatpush.xpose.msra.mxu0 0.0
    %1210 = vmatpush.xpose.msra.mxu0 0.0
    %1211 = vmatpush.xpose.msra.mxu0 0.0
    %1212 = vmatpush.xpose.msra.mxu0 0.0
    %1213 = vmatpush.xpose.msra.mxu0 0.0
    %1214 = vmatpush.xpose.msra.mxu0 0.0
    %1215 = vmatpush.xpose.msra.mxu0 0.0
    %1216 = vmatpush.xpose.msra.mxu0 0.0
    %1217 = vmatpush.xpose.msra.mxu0 0.0
    %1218 = vmatpush.xpose.msra.mxu0 0.0
    %1219 = vmatpush.xpose.msra.mxu0 0.0
    %1220 = vmatpush.xpose.msra.mxu0 0.0
    %1221 = vmatpush.xpose.msra.mxu0 0.0
    %1222 = vmatpush.xpose.msra.mxu0 0.0
    %1223 = vmatpush.xpose.msra.mxu0 0.0
    %v1224 = vand.u32 %v1107, 4294901760
    %v1225 = vsub.f32 %v1107, %v1224
    %v1226 = vand.u32 %v1225, 4294901760
    %1227 = vmatpush.xpose.msra.mxu0 %v1226
    %v1228 = vand.u32 %v1107, 4294901760
    %1229 = vmatmul.f32.gmra.mxu0 %v1228
    %v1230 = vpop.f32.mrf.mxu0
    %v1231 = vadd.f32 %v1207, %v1230
    %1232 = vdwg.mxu0
    %1233 = vmatpush.xpose.msra.mxu0 0.0
    %1234 = vmatpush.xpose.msra.mxu0 0.0
    %1235 = vmatpush.xpose.msra.mxu0 0.0
    %1236 = vmatpush.xpose.msra.mxu0 0.0
    %1237 = vmatpush.xpose.msra.mxu0 0.0
    %1238 = vmatpush.xpose.msra.mxu0 0.0
    %1239 = vmatpush.xpose.msra.mxu0 0.0
    %1240 = vmatpush.xpose.msra.mxu0 0.0
    %1241 = vmatpush.xpose.msra.mxu0 0.0
    %1242 = vmatpush.xpose.msra.mxu0 0.0
    %1243 = vmatpush.xpose.msra.mxu0 0.0
    %1244 = vmatpush.xpose.msra.mxu0 0.0
    %1245 = vmatpush.xpose.msra.mxu0 0.0
    %1246 = vmatpush.xpose.msra.mxu0 0.0
    %1247 = vmatpush.xpose.msra.mxu0 0.0
    %v1248 = vand.u32 %v1107, 4294901760
    %1249 = vmatpush.xpose.msra.mxu0 %v1248
    %v1250 = vand.u32 %v1107, 4294901760
    %1251 = vmatmul.f32.gmra.mxu0 %v1250
    %v1252 = vpop.f32.mrf.mxu0
    %v1253 = vadd.f32 %v1231, %v1252
    %1254 = vdwg.mxu0
    %v1255 = vmul.f32 %v217, 0.35355338
    %v1256 = vmul.f32 %v365, 0.35355338
    %v1257 = vmul.f32 %v513, 0.35355338
    %v1258 = vmul.f32 %v661, 0.35355338
    %v1259 = vmul.f32 %v809, 0.35355338
    %v1260 = vmul.f32 %v957, 0.35355338
    %v1261 = vmul.f32 %v1105, 0.35355338
    %v1262 = vmul.f32 %v1253, 0.35355338
    %v1263 = vadd.f32 %v1255, %v69
    %v1264 = vadd.f32 %v1256, %v69
    %v1265 = vadd.f32 %v1257, %v69
    %v1266 = vadd.f32 %v1258, %v69
    %v1267 = vadd.f32 %v1259, %v69
    %v1268 = vadd.f32 %v1260, %v69
    %v1269 = vadd.f32 %v1261, %v69
    %v1270 = vadd.f32 %v1262, %v69
    %v1271 = vsel %vm70, %v1263, -inf
    %1272 = vmax.xlane.f32.xlu0 %v1271
    %v1273 = vpop.xlane.xlu0 %1272
    %v1274 = vsel %vm70, %v1264, -inf
    %1275 = vmax.xlane.f32.xlu0 %v1274
    %v1276 = vpop.xlane.xlu0 %1275
    %v1277 = vsel %vm70, %v1265, -inf
    %1278 = vmax.xlane.f32.xlu0 %v1277
    %v1279 = vpop.xlane.xlu0 %1278
    %v1280 = vsel %vm70, %v1266, -inf
    %1281 = vmax.xlane.f32.xlu0 %v1280
    %v1282 = vpop.xlane.xlu0 %1281
    %v1283 = vsel %vm70, %v1267, -inf
    %1284 = vmax.xlane.f32.xlu0 %v1283
    %v1285 = vpop.xlane.xlu0 %1284
    %v1286 = vsel %vm70, %v1268, -inf
    %1287 = vmax.xlane.f32.xlu0 %v1286
    %v1288 = vpop.xlane.xlu0 %1287
    %v1289 = vsel %vm70, %v1269, -inf
    %1290 = vmax.xlane.f32.xlu0 %v1289
    %v1291 = vpop.xlane.xlu0 %1290
    %v1292 = vsel %vm70, %v1270, -inf
    %1293 = vmax.xlane.f32.xlu0 %v1292
    %v1294 = vpop.xlane.xlu0 %1293
    %v1295 = vsub.f32 %v1263, %v1273
    %v1296 = vsub.f32 %v1264, %v1276
    %v1297 = vsub.f32 %v1265, %v1279
    %v1298 = vsub.f32 %v1266, %v1282
    %v1299 = vsub.f32 %v1267, %v1285
    %v1300 = vsub.f32 %v1268, %v1288
    %v1301 = vsub.f32 %v1269, %v1291
    %v1302 = vsub.f32 %v1270, %v1294
    %v1303 = vmul.f32 %v1295, 1.442695
    %v1304 = vpow.pop %v1303
    %v1305 = vmul.f32 %v1296, 1.442695
    %v1306 = vpow.pop %v1305
    %v1307 = vmul.f32 %v1297, 1.442695
    %v1308 = vpow.pop %v1307
    %v1309 = vmul.f32 %v1298, 1.442695
    %v1310 = vpow.pop %v1309
    %v1311 = vmul.f32 %v1299, 1.442695
    %v1312 = vpow.pop %v1311
    %v1313 = vmul.f32 %v1300, 1.442695
    %v1314 = vpow.pop %v1313
    %v1315 = vmul.f32 %v1301, 1.442695
    %v1316 = vpow.pop %v1315
    %v1317 = vmul.f32 %v1302, 1.442695
    %v1318 = vpow.pop %v1317
    %v1319 = vsel %vm70, %v1304, 0.0
    %1320 = vadd.xlane.f32.xlu0 %v1319
    %v1321 = vpop.xlane.xlu0 %1320
    %v1322 = vsel %vm70, %v1306, 0.0
    %1323 = vadd.xlane.f32.xlu0 %v1322
    %v1324 = vpop.xlane.xlu0 %1323
    %v1325 = vsel %vm70, %v1308, 0.0
    %1326 = vadd.xlane.f32.xlu0 %v1325
    %v1327 = vpop.xlane.xlu0 %1326
    %v1328 = vsel %vm70, %v1310, 0.0
    %1329 = vadd.xlane.f32.xlu0 %v1328
    %v1330 = vpop.xlane.xlu0 %1329
    %v1331 = vsel %vm70, %v1312, 0.0
    %1332 = vadd.xlane.f32.xlu0 %v1331
    %v1333 = vpop.xlane.xlu0 %1332
    %v1334 = vsel %vm70, %v1314, 0.0
    %1335 = vadd.xlane.f32.xlu0 %v1334
    %v1336 = vpop.xlane.xlu0 %1335
    %v1337 = vsel %vm70, %v1316, 0.0
    %1338 = vadd.xlane.f32.xlu0 %v1337
    %v1339 = vpop.xlane.xlu0 %1338
    %v1340 = vsel %vm70, %v1318, 0.0
    %1341 = vadd.xlane.f32.xlu0 %v1340
    %v1342 = vpop.xlane.xlu0 %1341
    %v1343 = vrcp.pop %v1321
    %v1344 = vmul.f32 %v1321, %v1343
    %v1345 = vsub.f32 1.0, %v1344
    %v1346 = vmul.f32 %v1343, %v1345
    %v1347 = vadd.f32 %v1343, %v1346
    %vm1348 = vweird.f32 %v1321
    %vm1349 = vweird.f32 %v1343
    %vm1350 = vmor %vm1348, %vm1349
    %v1351 = vsel %vm1350, %v1343, %v1347
    %v1352 = vand.u32 2147483647, %v1321
    %vm1353 = vcmp.eq.f32.partialorder %v1352, 8.507059e+37
    %v1354 = vand.u32 %v1321, 2147483648
    %v1355 = vor.u32 1.1754944e-38, %v1354
    %v1356 = vsel %vm1353, %v1355, %v1351
    %v1357 = vmul.f32 %v1304, %v1356
    %v1358 = vrcp.pop %v1324
    %v1359 = vmul.f32 %v1324, %v1358
    %v1360 = vsub.f32 1.0, %v1359
    %v1361 = vmul.f32 %v1358, %v1360
    %v1362 = vadd.f32 %v1358, %v1361
    %vm1363 = vweird.f32 %v1324
    %vm1364 = vweird.f32 %v1358
    %vm1365 = vmor %vm1363, %vm1364
    %v1366 = vsel %vm1365, %v1358, %v1362
    %v1367 = vand.u32 2147483647, %v1324
    %vm1368 = vcmp.eq.f32.partialorder %v1367, 8.507059e+37
    %v1369 = vand.u32 %v1324, 2147483648
    %v1370 = vor.u32 1.1754944e-38, %v1369
    %v1371 = vsel %vm1368, %v1370, %v1366
    %v1372 = vmul.f32 %v1306, %v1371
    %v1373 = vrcp.pop %v1327
    %v1374 = vmul.f32 %v1327, %v1373
    %v1375 = vsub.f32 1.0, %v1374
    %v1376 = vmul.f32 %v1373, %v1375
    %v1377 = vadd.f32 %v1373, %v1376
    %vm1378 = vweird.f32 %v1327
    %vm1379 = vweird.f32 %v1373
    %vm1380 = vmor %vm1378, %vm1379
    %v1381 = vsel %vm1380, %v1373, %v1377
    %v1382 = vand.u32 2147483647, %v1327
    %vm1383 = vcmp.eq.f32.partialorder %v1382, 8.507059e+37
    %v1384 = vand.u32 %v1327, 2147483648
    %v1385 = vor.u32 1.1754944e-38, %v1384
    %v1386 = vsel %vm1383, %v1385, %v1381
    %v1387 = vmul.f32 %v1308, %v1386
    %v1388 = vrcp.pop %v1330
    %v1389 = vmul.f32 %v1330, %v1388
    %v1390 = vsub.f32 1.0, %v1389
    %v1391 = vmul.f32 %v1388, %v1390
    %v1392 = vadd.f32 %v1388, %v1391
    %vm1393 = vweird.f32 %v1330
    %vm1394 = vweird.f32 %v1388
    %vm1395 = vmor %vm1393, %vm1394
    %v1396 = vsel %vm1395, %v1388, %v1392
    %v1397 = vand.u32 2147483647, %v1330
    %vm1398 = vcmp.eq.f32.partialorder %v1397, 8.507059e+37
    %v1399 = vand.u32 %v1330, 2147483648
    %v1400 = vor.u32 1.1754944e-38, %v1399
    %v1401 = vsel %vm1398, %v1400, %v1396
    %v1402 = vmul.f32 %v1310, %v1401
    %v1403 = vrcp.pop %v1333
    %v1404 = vmul.f32 %v1333, %v1403
    %v1405 = vsub.f32 1.0, %v1404
    %v1406 = vmul.f32 %v1403, %v1405
    %v1407 = vadd.f32 %v1403, %v1406
    %vm1408 = vweird.f32 %v1333
    %vm1409 = vweird.f32 %v1403
    %vm1410 = vmor %vm1408, %vm1409
    %v1411 = vsel %vm1410, %v1403, %v1407
    %v1412 = vand.u32 2147483647, %v1333
    %vm1413 = vcmp.eq.f32.partialorder %v1412, 8.507059e+37
    %v1414 = vand.u32 %v1333, 2147483648
    %v1415 = vor.u32 1.1754944e-38, %v1414
    %v1416 = vsel %vm1413, %v1415, %v1411
    %v1417 = vmul.f32 %v1312, %v1416
    %v1418 = vrcp.pop %v1336
    %v1419 = vmul.f32 %v1336, %v1418
    %v1420 = vsub.f32 1.0, %v1419
    %v1421 = vmul.f32 %v1418, %v1420
    %v1422 = vadd.f32 %v1418, %v1421
    %vm1423 = vweird.f32 %v1336
    %vm1424 = vweird.f32 %v1418
    %vm1425 = vmor %vm1423, %vm1424
    %v1426 = vsel %vm1425, %v1418, %v1422
    %v1427 = vand.u32 2147483647, %v1336
    %vm1428 = vcmp.eq.f32.partialorder %v1427, 8.507059e+37
    %v1429 = vand.u32 %v1336, 2147483648
    %v1430 = vor.u32 1.1754944e-38, %v1429
    %v1431 = vsel %vm1428, %v1430, %v1426
    %v1432 = vmul.f32 %v1314, %v1431
    %v1433 = vrcp.pop %v1339
    %v1434 = vmul.f32 %v1339, %v1433
    %v1435 = vsub.f32 1.0, %v1434
    %v1436 = vmul.f32 %v1433, %v1435
    %v1437 = vadd.f32 %v1433, %v1436
    %vm1438 = vweird.f32 %v1339
    %vm1439 = vweird.f32 %v1433
    %vm1440 = vmor %vm1438, %vm1439
    %v1441 = vsel %vm1440, %v1433, %v1437
    %v1442 = vand.u32 2147483647, %v1339
    %vm1443 = vcmp.eq.f32.partialorder %v1442, 8.507059e+37
    %v1444 = vand.u32 %v1339, 2147483648
    %v1445 = vor.u32 1.1754944e-38, %v1444
    %v1446 = vsel %vm1443, %v1445, %v1441
    %v1447 = vmul.f32 %v1316, %v1446
    %v1448 = vrcp.pop %v1342
    %v1449 = vmul.f32 %v1342, %v1448
    %v1450 = vsub.f32 1.0, %v1449
    %v1451 = vmul.f32 %v1448, %v1450
    %v1452 = vadd.f32 %v1448, %v1451
    %vm1453 = vweird.f32 %v1342
    %vm1454 = vweird.f32 %v1448
    %vm1455 = vmor %vm1453, %vm1454
    %v1456 = vsel %vm1455, %v1448, %v1452
    %v1457 = vand.u32 2147483647, %v1342
    %vm1458 = vcmp.eq.f32.partialorder %v1457, 8.507059e+37
    %v1459 = vand.u32 %v1342, 2147483648
    %v1460 = vor.u32 1.1754944e-38, %v1459
    %v1461 = vsel %vm1458, %v1460, %v1456
    %v1462 = vmul.f32 %v1318, %v1461
    %v1463 = vld [vmem:[#allocation5] sm:$0xff]
    %v1464 = vld [vmem:[#allocation5 + $0x8] sm:$0xff]
    %v1465 = vld [vmem:[#allocation5 + $0x10] sm:$0xff]
    %v1466 = vld [vmem:[#allocation5 + $0x18] sm:$0xff]
    %v1467 = vld [vmem:[#allocation5 + $0x20] sm:$0xff]
    %v1468 = vld [vmem:[#allocation5 + $0x28] sm:$0xff]
    %v1469 = vld [vmem:[#allocation5 + $0x30] sm:$0xff]
    %v1470 = vld [vmem:[#allocation5 + $0x38] sm:$0xff]
    %v1471 = vmul.f32 %v1357, %v1463
    %v1472 = vmul.f32 %v1372, %v1464
    %v1473 = vmul.f32 %v1387, %v1465
    %v1474 = vmul.f32 %v1402, %v1466
    %v1475 = vmul.f32 %v1417, %v1467
    %v1476 = vmul.f32 %v1432, %v1468
    %v1477 = vmul.f32 %v1447, %v1469
    %v1478 = vmul.f32 %v1462, %v1470
    %v1480 = vsel %vm70, %v1471, 0
    %1482 = vmatpush.msra.mxu0 0.0
    %1483 = vmatpush.msra.mxu0 0.0
    %1484 = vmatpush.msra.mxu0 0.0
    %1485 = vmatpush.msra.mxu0 0.0
    %1486 = vmatpush.msra.mxu0 0.0
    %1487 = vmatpush.msra.mxu0 0.0
    %1488 = vmatpush.msra.mxu0 0.0
    %1489 = vmatpush.msra.mxu0 0.0
    %1490 = vmatpush.msra.mxu0 0.0
    %1491 = vmatpush.msra.mxu0 0.0
    %1492 = vmatpush.msra.mxu0 0.0
    %1493 = vmatpush.msra.mxu0 0.0
    %1494 = vmatpush.msra.mxu0 0.0
    %1495 = vmatpush.msra.mxu0 0.0
    %1496 = vmatpush.msra.mxu0 0.0
    %v1497 = vand.u32 %v44, 4294901760
    %1498 = vmatpush.msra.mxu0 %v1497
    %v1499 = vand.u32 %v1480, 4294901760
    %v1500 = vsub.f32 %v1480, %v1499
    %v1501 = vand.u32 %v1500, 4294901760
    %v1502 = vsub.f32 %v1500, %v1501
    %v1503 = vand.u32 %v1502, 4294901760
    %1504 = vmatmul.f32.gmra.mxu0 %v1503
    %v1505 = vpop.f32.mrf.mxu0
    %v1506 = vadd.f32 0.0, %v1505
    %1507 = vdwg.mxu0
    %1508 = vmatpush.msra.mxu0 0.0
    %1509 = vmatpush.msra.mxu0 0.0
    %1510 = vmatpush.msra.mxu0 0.0
    %1511 = vmatpush.msra.mxu0 0.0
    %1512 = vmatpush.msra.mxu0 0.0
    %1513 = vmatpush.msra.mxu0 0.0
    %1514 = vmatpush.msra.mxu0 0.0
    %1515 = vmatpush.msra.mxu0 0.0
    %1516 = vmatpush.msra.mxu0 0.0
    %1517 = vmatpush.msra.mxu0 0.0
    %1518 = vmatpush.msra.mxu0 0.0
    %1519 = vmatpush.msra.mxu0 0.0
    %1520 = vmatpush.msra.mxu0 0.0
    %1521 = vmatpush.msra.mxu0 0.0
    %1522 = vmatpush.msra.mxu0 0.0
    %v1523 = vand.u32 %v44, 4294901760
    %v1524 = vsub.f32 %v44, %v1523
    %v1525 = vand.u32 %v1524, 4294901760
    %v1526 = vsub.f32 %v1524, %v1525
    %v1527 = vand.u32 %v1526, 4294901760
    %1528 = vmatpush.msra.mxu0 %v1527
    %v1529 = vand.u32 %v1480, 4294901760
    %1530 = vmatmul.f32.gmra.mxu0 %v1529
    %v1531 = vpop.f32.mrf.mxu0
    %v1532 = vadd.f32 %v1506, %v1531
    %1533 = vdwg.mxu0
    %1534 = vmatpush.msra.mxu0 0.0
    %1535 = vmatpush.msra.mxu0 0.0
    %1536 = vmatpush.msra.mxu0 0.0
    %1537 = vmatpush.msra.mxu0 0.0
    %1538 = vmatpush.msra.mxu0 0.0
    %1539 = vmatpush.msra.mxu0 0.0
    %1540 = vmatpush.msra.mxu0 0.0
    %1541 = vmatpush.msra.mxu0 0.0
    %1542 = vmatpush.msra.mxu0 0.0
    %1543 = vmatpush.msra.mxu0 0.0
    %1544 = vmatpush.msra.mxu0 0.0
    %1545 = vmatpush.msra.mxu0 0.0
    %1546 = vmatpush.msra.mxu0 0.0
    %1547 = vmatpush.msra.mxu0 0.0
    %1548 = vmatpush.msra.mxu0 0.0
    %v1549 = vand.u32 %v44, 4294901760
    %v1550 = vsub.f32 %v44, %v1549
    %1551 = vmatpush.msra.mxu0 %v1550
    %v1552 = vand.u32 %v1480, 4294901760
    %v1553 = vsub.f32 %v1480, %v1552
    %1554 = vmatmul.f32.gmra.mxu0 %v1553
    %v1555 = vpop.f32.mrf.mxu0
    %v1556 = vadd.f32 %v1532, %v1555
    %1557 = vdwg.mxu0
    %1558 = vmatpush.msra.mxu0 0.0
    %1559 = vmatpush.msra.mxu0 0.0
    %1560 = vmatpush.msra.mxu0 0.0
    %1561 = vmatpush.msra.mxu0 0.0
    %1562 = vmatpush.msra.mxu0 0.0
    %1563 = vmatpush.msra.mxu0 0.0
    %1564 = vmatpush.msra.mxu0 0.0
    %1565 = vmatpush.msra.mxu0 0.0
    %1566 = vmatpush.msra.mxu0 0.0
    %1567 = vmatpush.msra.mxu0 0.0
    %1568 = vmatpush.msra.mxu0 0.0
    %1569 = vmatpush.msra.mxu0 0.0
    %1570 = vmatpush.msra.mxu0 0.0
    %1571 = vmatpush.msra.mxu0 0.0
    %1572 = vmatpush.msra.mxu0 0.0
    %v1573 = vand.u32 %v44, 4294901760
    %1574 = vmatpush.msra.mxu0 %v1573
    %v1575 = vand.u32 %v1480, 4294901760
    %v1576 = vsub.f32 %v1480, %v1575
    %v1577 = vand.u32 %v1576, 4294901760
    %1578 = vmatmul.f32.gmra.mxu0 %v1577
    %v1579 = vpop.f32.mrf.mxu0
    %v1580 = vadd.f32 %v1556, %v1579
    %1581 = vdwg.mxu0
    %1582 = vmatpush.msra.mxu0 0.0
    %1583 = vmatpush.msra.mxu0 0.0
    %1584 = vmatpush.msra.mxu0 0.0
    %1585 = vmatpush.msra.mxu0 0.0
    %1586 = vmatpush.msra.mxu0 0.0
    %1587 = vmatpush.msra.mxu0 0.0
    %1588 = vmatpush.msra.mxu0 0.0
    %1589 = vmatpush.msra.mxu0 0.0
    %1590 = vmatpush.msra.mxu0 0.0
    %1591 = vmatpush.msra.mxu0 0.0
    %1592 = vmatpush.msra.mxu0 0.0
    %1593 = vmatpush.msra.mxu0 0.0
    %1594 = vmatpush.msra.mxu0 0.0
    %1595 = vmatpush.msra.mxu0 0.0
    %1596 = vmatpush.msra.mxu0 0.0
    %v1597 = vand.u32 %v44, 4294901760
    %v1598 = vsub.f32 %v44, %v1597
    %v1599 = vand.u32 %v1598, 4294901760
    %1600 = vmatpush.msra.mxu0 %v1599
    %v1601 = vand.u32 %v1480, 4294901760
    %1602 = vmatmul.f32.gmra.mxu0 %v1601
    %v1603 = vpop.f32.mrf.mxu0
    %v1604 = vadd.f32 %v1580, %v1603
    %1605 = vdwg.mxu0
    %1606 = vmatpush.msra.mxu0 0.0
    %1607 = vmatpush.msra.mxu0 0.0
    %1608 = vmatpush.msra.mxu0 0.0
    %1609 = vmatpush.msra.mxu0 0.0
    %1610 = vmatpush.msra.mxu0 0.0
    %1611 = vmatpush.msra.mxu0 0.0
    %1612 = vmatpush.msra.mxu0 0.0
    %1613 = vmatpush.msra.mxu0 0.0
    %1614 = vmatpush.msra.mxu0 0.0
    %1615 = vmatpush.msra.mxu0 0.0
    %1616 = vmatpush.msra.mxu0 0.0
    %1617 = vmatpush.msra.mxu0 0.0
    %1618 = vmatpush.msra.mxu0 0.0
    %1619 = vmatpush.msra.mxu0 0.0
    %1620 = vmatpush.msra.mxu0 0.0
    %v1621 = vand.u32 %v44, 4294901760
    %1622 = vmatpush.msra.mxu0 %v1621
    %v1623 = vand.u32 %v1480, 4294901760
    %1624 = vmatmul.f32.gmra.mxu0 %v1623
    %v1625 = vpop.f32.mrf.mxu0
    %v1626 = vadd.f32 %v1604, %v1625
    %1627 = vdwg.mxu0
    %v1629 = vsel %vm70, %v1472, 0
    %1631 = vmatpush.msra.mxu0 0.0
    %1632 = vmatpush.msra.mxu0 0.0
    %1633 = vmatpush.msra.mxu0 0.0
    %1634 = vmatpush.msra.mxu0 0.0
    %1635 = vmatpush.msra.mxu0 0.0
    %1636 = vmatpush.msra.mxu0 0.0
    %1637 = vmatpush.msra.mxu0 0.0
    %1638 = vmatpush.msra.mxu0 0.0
    %1639 = vmatpush.msra.mxu0 0.0
    %1640 = vmatpush.msra.mxu0 0.0
    %1641 = vmatpush.msra.mxu0 0.0
    %1642 = vmatpush.msra.mxu0 0.0
    %1643 = vmatpush.msra.mxu0 0.0
    %1644 = vmatpush.msra.mxu0 0.0
    %1645 = vmatpush.msra.mxu0 0.0
    %v1646 = vand.u32 %v45, 4294901760
    %1647 = vmatpush.msra.mxu0 %v1646
    %v1648 = vand.u32 %v1629, 4294901760
    %v1649 = vsub.f32 %v1629, %v1648
    %v1650 = vand.u32 %v1649, 4294901760
    %v1651 = vsub.f32 %v1649, %v1650
    %v1652 = vand.u32 %v1651, 4294901760
    %1653 = vmatmul.f32.gmra.mxu0 %v1652
    %v1654 = vpop.f32.mrf.mxu0
    %v1655 = vadd.f32 0.0, %v1654
    %1656 = vdwg.mxu0
    %1657 = vmatpush.msra.mxu0 0.0
    %1658 = vmatpush.msra.mxu0 0.0
    %1659 = vmatpush.msra.mxu0 0.0
    %1660 = vmatpush.msra.mxu0 0.0
    %1661 = vmatpush.msra.mxu0 0.0
    %1662 = vmatpush.msra.mxu0 0.0
    %1663 = vmatpush.msra.mxu0 0.0
    %1664 = vmatpush.msra.mxu0 0.0
    %1665 = vmatpush.msra.mxu0 0.0
    %1666 = vmatpush.msra.mxu0 0.0
    %1667 = vmatpush.msra.mxu0 0.0
    %1668 = vmatpush.msra.mxu0 0.0
    %1669 = vmatpush.msra.mxu0 0.0
    %1670 = vmatpush.msra.mxu0 0.0
    %1671 = vmatpush.msra.mxu0 0.0
    %v1672 = vand.u32 %v45, 4294901760
    %v1673 = vsub.f32 %v45, %v1672
    %v1674 = vand.u32 %v1673, 4294901760
    %v1675 = vsub.f32 %v1673, %v1674
    %v1676 = vand.u32 %v1675, 4294901760
    %1677 = vmatpush.msra.mxu0 %v1676
    %v1678 = vand.u32 %v1629, 4294901760
    %1679 = vmatmul.f32.gmra.mxu0 %v1678
    %v1680 = vpop.f32.mrf.mxu0
    %v1681 = vadd.f32 %v1655, %v1680
    %1682 = vdwg.mxu0
    %1683 = vmatpush.msra.mxu0 0.0
    %1684 = vmatpush.msra.mxu0 0.0
    %1685 = vmatpush.msra.mxu0 0.0
    %1686 = vmatpush.msra.mxu0 0.0
    %1687 = vmatpush.msra.mxu0 0.0
    %1688 = vmatpush.msra.mxu0 0.0
    %1689 = vmatpush.msra.mxu0 0.0
    %1690 = vmatpush.msra.mxu0 0.0
    %1691 = vmatpush.msra.mxu0 0.0
    %1692 = vmatpush.msra.mxu0 0.0
    %1693 = vmatpush.msra.mxu0 0.0
    %1694 = vmatpush.msra.mxu0 0.0
    %1695 = vmatpush.msra.mxu0 0.0
    %1696 = vmatpush.msra.mxu0 0.0
    %1697 = vmatpush.msra.mxu0 0.0
    %v1698 = vand.u32 %v45, 4294901760
    %v1699 = vsub.f32 %v45, %v1698
    %1700 = vmatpush.msra.mxu0 %v1699
    %v1701 = vand.u32 %v1629, 4294901760
    %v1702 = vsub.f32 %v1629, %v1701
    %1703 = vmatmul.f32.gmra.mxu0 %v1702
    %v1704 = vpop.f32.mrf.mxu0
    %v1705 = vadd.f32 %v1681, %v1704
    %1706 = vdwg.mxu0
    %1707 = vmatpush.msra.mxu0 0.0
    %1708 = vmatpush.msra.mxu0 0.0
    %1709 = vmatpush.msra.mxu0 0.0
    %1710 = vmatpush.msra.mxu0 0.0
    %1711 = vmatpush.msra.mxu0 0.0
    %1712 = vmatpush.msra.mxu0 0.0
    %1713 = vmatpush.msra.mxu0 0.0
    %1714 = vmatpush.msra.mxu0 0.0
    %1715 = vmatpush.msra.mxu0 0.0
    %1716 = vmatpush.msra.mxu0 0.0
    %1717 = vmatpush.msra.mxu0 0.0
    %1718 = vmatpush.msra.mxu0 0.0
    %1719 = vmatpush.msra.mxu0 0.0
    %1720 = vmatpush.msra.mxu0 0.0
    %1721 = vmatpush.msra.mxu0 0.0
    %v1722 = vand.u32 %v45, 4294901760
    %1723 = vmatpush.msra.mxu0 %v1722
    %v1724 = vand.u32 %v1629, 4294901760
    %v1725 = vsub.f32 %v1629, %v1724
    %v1726 = vand.u32 %v1725, 4294901760
    %1727 = vmatmul.f32.gmra.mxu0 %v1726
    %v1728 = vpop.f32.mrf.mxu0
    %v1729 = vadd.f32 %v1705, %v1728
    %1730 = vdwg.mxu0
    %1731 = vmatpush.msra.mxu0 0.0
    %1732 = vmatpush.msra.mxu0 0.0
    %1733 = vmatpush.msra.mxu0 0.0
    %1734 = vmatpush.msra.mxu0 0.0
    %1735 = vmatpush.msra.mxu0 0.0
    %1736 = vmatpush.msra.mxu0 0.0
    %1737 = vmatpush.msra.mxu0 0.0
    %1738 = vmatpush.msra.mxu0 0.0
    %1739 = vmatpush.msra.mxu0 0.0
    %1740 = vmatpush.msra.mxu0 0.0
    %1741 = vmatpush.msra.mxu0 0.0
    %1742 = vmatpush.msra.mxu0 0.0
    %1743 = vmatpush.msra.mxu0 0.0
    %1744 = vmatpush.msra.mxu0 0.0
    %1745 = vmatpush.msra.mxu0 0.0
    %v1746 = vand.u32 %v45, 4294901760
    %v1747 = vsub.f32 %v45, %v1746
    %v1748 = vand.u32 %v1747, 4294901760
    %1749 = vmatpush.msra.mxu0 %v1748
    %v1750 = vand.u32 %v1629, 4294901760
    %1751 = vmatmul.f32.gmra.mxu0 %v1750
    %v1752 = vpop.f32.mrf.mxu0
    %v1753 = vadd.f32 %v1729, %v1752
    %1754 = vdwg.mxu0
    %1755 = vmatpush.msra.mxu0 0.0
    %1756 = vmatpush.msra.mxu0 0.0
    %1757 = vmatpush.msra.mxu0 0.0
    %1758 = vmatpush.msra.mxu0 0.0
    %1759 = vmatpush.msra.mxu0 0.0
    %1760 = vmatpush.msra.mxu0 0.0
    %1761 = vmatpush.msra.mxu0 0.0
    %1762 = vmatpush.msra.mxu0 0.0
    %1763 = vmatpush.msra.mxu0 0.0
    %1764 = vmatpush.msra.mxu0 0.0
    %1765 = vmatpush.msra.mxu0 0.0
    %1766 = vmatpush.msra.mxu0 0.0
    %1767 = vmatpush.msra.mxu0 0.0
    %1768 = vmatpush.msra.mxu0 0.0
    %1769 = vmatpush.msra.mxu0 0.0
    %v1770 = vand.u32 %v45, 4294901760
    %1771 = vmatpush.msra.mxu0 %v1770
    %v1772 = vand.u32 %v1629, 4294901760
    %1773 = vmatmul.f32.gmra.mxu0 %v1772
    %v1774 = vpop.f32.mrf.mxu0
    %v1775 = vadd.f32 %v1753, %v1774
    %1776 = vdwg.mxu0
    %v1778 = vsel %vm70, %v1473, 0
    %1780 = vmatpush.msra.mxu0 0.0
    %1781 = vmatpush.msra.mxu0 0.0
    %1782 = vmatpush.msra.mxu0 0.0
    %1783 = vmatpush.msra.mxu0 0.0
    %1784 = vmatpush.msra.mxu0 0.0
    %1785 = vmatpush.msra.mxu0 0.0
    %1786 = vmatpush.msra.mxu0 0.0
    %1787 = vmatpush.msra.mxu0 0.0
    %1788 = vmatpush.msra.mxu0 0.0
    %1789 = vmatpush.msra.mxu0 0.0
    %1790 = vmatpush.msra.mxu0 0.0
    %1791 = vmatpush.msra.mxu0 0.0
    %1792 = vmatpush.msra.mxu0 0.0
    %1793 = vmatpush.msra.mxu0 0.0
    %1794 = vmatpush.msra.mxu0 0.0
    %v1795 = vand.u32 %v49, 4294901760
    %1796 = vmatpush.msra.mxu0 %v1795
    %v1797 = vand.u32 %v1778, 4294901760
    %v1798 = vsub.f32 %v1778, %v1797
    %v1799 = vand.u32 %v1798, 4294901760
    %v1800 = vsub.f32 %v1798, %v1799
    %v1801 = vand.u32 %v1800, 4294901760
    %1802 = vmatmul.f32.gmra.mxu0 %v1801
    %v1803 = vpop.f32.mrf.mxu0
    %v1804 = vadd.f32 0.0, %v1803
    %1805 = vdwg.mxu0
    %1806 = vmatpush.msra.mxu0 0.0
    %1807 = vmatpush.msra.mxu0 0.0
    %1808 = vmatpush.msra.mxu0 0.0
    %1809 = vmatpush.msra.mxu0 0.0
    %1810 = vmatpush.msra.mxu0 0.0
    %1811 = vmatpush.msra.mxu0 0.0
    %1812 = vmatpush.msra.mxu0 0.0
    %1813 = vmatpush.msra.mxu0 0.0
    %1814 = vmatpush.msra.mxu0 0.0
    %1815 = vmatpush.msra.mxu0 0.0
    %1816 = vmatpush.msra.mxu0 0.0
    %1817 = vmatpush.msra.mxu0 0.0
    %1818 = vmatpush.msra.mxu0 0.0
    %1819 = vmatpush.msra.mxu0 0.0
    %1820 = vmatpush.msra.mxu0 0.0
    %v1821 = vand.u32 %v49, 4294901760
    %v1822 = vsub.f32 %v49, %v1821
    %v1823 = vand.u32 %v1822, 4294901760
    %v1824 = vsub.f32 %v1822, %v1823
    %v1825 = vand.u32 %v1824, 4294901760
    %1826 = vmatpush.msra.mxu0 %v1825
    %v1827 = vand.u32 %v1778, 4294901760
    %1828 = vmatmul.f32.gmra.mxu0 %v1827
    %v1829 = vpop.f32.mrf.mxu0
    %v1830 = vadd.f32 %v1804, %v1829
    %1831 = vdwg.mxu0
    %1832 = vmatpush.msra.mxu0 0.0
    %1833 = vmatpush.msra.mxu0 0.0
    %1834 = vmatpush.msra.mxu0 0.0
    %1835 = vmatpush.msra.mxu0 0.0
    %1836 = vmatpush.msra.mxu0 0.0
    %1837 = vmatpush.msra.mxu0 0.0
    %1838 = vmatpush.msra.mxu0 0.0
    %1839 = vmatpush.msra.mxu0 0.0
    %1840 = vmatpush.msra.mxu0 0.0
    %1841 = vmatpush.msra.mxu0 0.0
    %1842 = vmatpush.msra.mxu0 0.0
    %1843 = vmatpush.msra.mxu0 0.0
    %1844 = vmatpush.msra.mxu0 0.0
    %1845 = vmatpush.msra.mxu0 0.0
    %1846 = vmatpush.msra.mxu0 0.0
    %v1847 = vand.u32 %v49, 4294901760
    %v1848 = vsub.f32 %v49, %v1847
    %1849 = vmatpush.msra.mxu0 %v1848
    %v1850 = vand.u32 %v1778, 4294901760
    %v1851 = vsub.f32 %v1778, %v1850
    %1852 = vmatmul.f32.gmra.mxu0 %v1851
    %v1853 = vpop.f32.mrf.mxu0
    %v1854 = vadd.f32 %v1830, %v1853
    %1855 = vdwg.mxu0
    %1856 = vmatpush.msra.mxu0 0.0
    %1857 = vmatpush.msra.mxu0 0.0
    %1858 = vmatpush.msra.mxu0 0.0
    %1859 = vmatpush.msra.mxu0 0.0
    %1860 = vmatpush.msra.mxu0 0.0
    %1861 = vmatpush.msra.mxu0 0.0
    %1862 = vmatpush.msra.mxu0 0.0
    %1863 = vmatpush.msra.mxu0 0.0
    %1864 = vmatpush.msra.mxu0 0.0
    %1865 = vmatpush.msra.mxu0 0.0
    %1866 = vmatpush.msra.mxu0 0.0
    %1867 = vmatpush.msra.mxu0 0.0
    %1868 = vmatpush.msra.mxu0 0.0
    %1869 = vmatpush.msra.mxu0 0.0
    %1870 = vmatpush.msra.mxu0 0.0
    %v1871 = vand.u32 %v49, 4294901760
    %1872 = vmatpush.msra.mxu0 %v1871
    %v1873 = vand.u32 %v1778, 4294901760
    %v1874 = vsub.f32 %v1778, %v1873
    %v1875 = vand.u32 %v1874, 4294901760
    %1876 = vmatmul.f32.gmra.mxu0 %v1875
    %v1877 = vpop.f32.mrf.mxu0
    %v1878 = vadd.f32 %v1854, %v1877
    %1879 = vdwg.mxu0
    %1880 = vmatpush.msra.mxu0 0.0
    %1881 = vmatpush.msra.mxu0 0.0
    %1882 = vmatpush.msra.mxu0 0.0
    %1883 = vmatpush.msra.mxu0 0.0
    %1884 = vmatpush.msra.mxu0 0.0
    %1885 = vmatpush.msra.mxu0 0.0
    %1886 = vmatpush.msra.mxu0 0.0
    %1887 = vmatpush.msra.mxu0 0.0
    %1888 = vmatpush.msra.mxu0 0.0
    %1889 = vmatpush.msra.mxu0 0.0
    %1890 = vmatpush.msra.mxu0 0.0
    %1891 = vmatpush.msra.mxu0 0.0
    %1892 = vmatpush.msra.mxu0 0.0
    %1893 = vmatpush.msra.mxu0 0.0
    %1894 = vmatpush.msra.mxu0 0.0
    %v1895 = vand.u32 %v49, 4294901760
    %v1896 = vsub.f32 %v49, %v1895
    %v1897 = vand.u32 %v1896, 4294901760
    %1898 = vmatpush.msra.mxu0 %v1897
    %v1899 = vand.u32 %v1778, 4294901760
    %1900 = vmatmul.f32.gmra.mxu0 %v1899
    %v1901 = vpop.f32.mrf.mxu0
    %v1902 = vadd.f32 %v1878, %v1901
    %1903 = vdwg.mxu0
    %1904 = vmatpush.msra.mxu0 0.0
    %1905 = vmatpush.msra.mxu0 0.0
    %1906 = vmatpush.msra.mxu0 0.0
    %1907 = vmatpush.msra.mxu0 0.0
    %1908 = vmatpush.msra.mxu0 0.0
    %1909 = vmatpush.msra.mxu0 0.0
    %1910 = vmatpush.msra.mxu0 0.0
    %1911 = vmatpush.msra.mxu0 0.0
    %1912 = vmatpush.msra.mxu0 0.0
    %1913 = vmatpush.msra.mxu0 0.0
    %1914 = vmatpush.msra.mxu0 0.0
    %1915 = vmatpush.msra.mxu0 0.0
    %1916 = vmatpush.msra.mxu0 0.0
    %1917 = vmatpush.msra.mxu0 0.0
    %1918 = vmatpush.msra.mxu0 0.0
    %v1919 = vand.u32 %v49, 4294901760
    %1920 = vmatpush.msra.mxu0 %v1919
    %v1921 = vand.u32 %v1778, 4294901760
    %1922 = vmatmul.f32.gmra.mxu0 %v1921
    %v1923 = vpop.f32.mrf.mxu0
    %v1924 = vadd.f32 %v1902, %v1923
    %1925 = vdwg.mxu0
    %v1927 = vsel %vm70, %v1474, 0
    %1929 = vmatpush.msra.mxu0 0.0
    %1930 = vmatpush.msra.mxu0 0.0
    %1931 = vmatpush.msra.mxu0 0.0
    %1932 = vmatpush.msra.mxu0 0.0
    %1933 = vmatpush.msra.mxu0 0.0
    %1934 = vmatpush.msra.mxu0 0.0
    %1935 = vmatpush.msra.mxu0 0.0
    %1936 = vmatpush.msra.mxu0 0.0
    %1937 = vmatpush.msra.mxu0 0.0
    %1938 = vmatpush.msra.mxu0 0.0
    %1939 = vmatpush.msra.mxu0 0.0
    %1940 = vmatpush.msra.mxu0 0.0
    %1941 = vmatpush.msra.mxu0 0.0
    %1942 = vmatpush.msra.mxu0 0.0
    %1943 = vmatpush.msra.mxu0 0.0
    %v1944 = vand.u32 %v51, 4294901760
    %1945 = vmatpush.msra.mxu0 %v1944
    %v1946 = vand.u32 %v1927, 4294901760
    %v1947 = vsub.f32 %v1927, %v1946
    %v1948 = vand.u32 %v1947, 4294901760
    %v1949 = vsub.f32 %v1947, %v1948
    %v1950 = vand.u32 %v1949, 4294901760
    %1951 = vmatmul.f32.gmra.mxu0 %v1950
    %v1952 = vpop.f32.mrf.mxu0
    %v1953 = vadd.f32 0.0, %v1952
    %1954 = vdwg.mxu0
    %1955 = vmatpush.msra.mxu0 0.0
    %1956 = vmatpush.msra.mxu0 0.0
    %1957 = vmatpush.msra.mxu0 0.0
    %1958 = vmatpush.msra.mxu0 0.0
    %1959 = vmatpush.msra.mxu0 0.0
    %1960 = vmatpush.msra.mxu0 0.0
    %1961 = vmatpush.msra.mxu0 0.0
    %1962 = vmatpush.msra.mxu0 0.0
    %1963 = vmatpush.msra.mxu0 0.0
    %1964 = vmatpush.msra.mxu0 0.0
    %1965 = vmatpush.msra.mxu0 0.0
    %1966 = vmatpush.msra.mxu0 0.0
    %1967 = vmatpush.msra.mxu0 0.0
    %1968 = vmatpush.msra.mxu0 0.0
    %1969 = vmatpush.msra.mxu0 0.0
    %v1970 = vand.u32 %v51, 4294901760
    %v1971 = vsub.f32 %v51, %v1970
    %v1972 = vand.u32 %v1971, 4294901760
    %v1973 = vsub.f32 %v1971, %v1972
    %v1974 = vand.u32 %v1973, 4294901760
    %1975 = vmatpush.msra.mxu0 %v1974
    %v1976 = vand.u32 %v1927, 4294901760
    %1977 = vmatmul.f32.gmra.mxu0 %v1976
    %v1978 = vpop.f32.mrf.mxu0
    %v1979 = vadd.f32 %v1953, %v1978
    %1980 = vdwg.mxu0
    %1981 = vmatpush.msra.mxu0 0.0
    %1982 = vmatpush.msra.mxu0 0.0
    %1983 = vmatpush.msra.mxu0 0.0
    %1984 = vmatpush.msra.mxu0 0.0
    %1985 = vmatpush.msra.mxu0 0.0
    %1986 = vmatpush.msra.mxu0 0.0
    %1987 = vmatpush.msra.mxu0 0.0
    %1988 = vmatpush.msra.mxu0 0.0
    %1989 = vmatpush.msra.mxu0 0.0
    %1990 = vmatpush.msra.mxu0 0.0
    %1991 = vmatpush.msra.mxu0 0.0
    %1992 = vmatpush.msra.mxu0 0.0
    %1993 = vmatpush.msra.mxu0 0.0
    %1994 = vmatpush.msra.mxu0 0.0
    %1995 = vmatpush.msra.mxu0 0.0
    %v1996 = vand.u32 %v51, 4294901760
    %v1997 = vsub.f32 %v51, %v1996
    %1998 = vmatpush.msra.mxu0 %v1997
    %v1999 = vand.u32 %v1927, 4294901760
    %v2000 = vsub.f32 %v1927, %v1999
    %2001 = vmatmul.f32.gmra.mxu0 %v2000
    %v2002 = vpop.f32.mrf.mxu0
    %v2003 = vadd.f32 %v1979, %v2002
    %2004 = vdwg.mxu0
    %2005 = vmatpush.msra.mxu0 0.0
    %2006 = vmatpush.msra.mxu0 0.0
    %2007 = vmatpush.msra.mxu0 0.0
    %2008 = vmatpush.msra.mxu0 0.0
    %2009 = vmatpush.msra.mxu0 0.0
    %2010 = vmatpush.msra.mxu0 0.0
    %2011 = vmatpush.msra.mxu0 0.0
    %2012 = vmatpush.msra.mxu0 0.0
    %2013 = vmatpush.msra.mxu0 0.0
    %2014 = vmatpush.msra.mxu0 0.0
    %2015 = vmatpush.msra.mxu0 0.0
    %2016 = vmatpush.msra.mxu0 0.0
    %2017 = vmatpush.msra.mxu0 0.0
    %2018 = vmatpush.msra.mxu0 0.0
    %2019 = vmatpush.msra.mxu0 0.0
    %v2020 = vand.u32 %v51, 4294901760
    %2021 = vmatpush.msra.mxu0 %v2020
    %v2022 = vand.u32 %v1927, 4294901760
    %v2023 = vsub.f32 %v1927, %v2022
    %v2024 = vand.u32 %v2023, 4294901760
    %2025 = vmatmul.f32.gmra.mxu0 %v2024
    %v2026 = vpop.f32.mrf.mxu0
    %v2027 = vadd.f32 %v2003, %v2026
    %2028 = vdwg.mxu0
    %2029 = vmatpush.msra.mxu0 0.0
    %2030 = vmatpush.msra.mxu0 0.0
    %2031 = vmatpush.msra.mxu0 0.0
    %2032 = vmatpush.msra.mxu0 0.0
    %2033 = vmatpush.msra.mxu0 0.0
    %2034 = vmatpush.msra.mxu0 0.0
    %2035 = vmatpush.msra.mxu0 0.0
    %2036 = vmatpush.msra.mxu0 0.0
    %2037 = vmatpush.msra.mxu0 0.0
    %2038 = vmatpush.msra.mxu0 0.0
    %2039 = vmatpush.msra.mxu0 0.0
    %2040 = vmatpush.msra.mxu0 0.0
    %2041 = vmatpush.msra.mxu0 0.0
    %2042 = vmatpush.msra.mxu0 0.0
    %2043 = vmatpush.msra.mxu0 0.0
    %v2044 = vand.u32 %v51, 4294901760
    %v2045 = vsub.f32 %v51, %v2044
    %v2046 = vand.u32 %v2045, 4294901760
    %2047 = vmatpush.msra.mxu0 %v2046
    %v2048 = vand.u32 %v1927, 4294901760
    %2049 = vmatmul.f32.gmra.mxu0 %v2048
    %v2050 = vpop.f32.mrf.mxu0
    %v2051 = vadd.f32 %v2027, %v2050
    %2052 = vdwg.mxu0
    %2053 = vmatpush.msra.mxu0 0.0
    %2054 = vmatpush.msra.mxu0 0.0
    %2055 = vmatpush.msra.mxu0 0.0
    %2056 = vmatpush.msra.mxu0 0.0
    %2057 = vmatpush.msra.mxu0 0.0
    %2058 = vmatpush.msra.mxu0 0.0
    %2059 = vmatpush.msra.mxu0 0.0
    %2060 = vmatpush.msra.mxu0 0.0
    %2061 = vmatpush.msra.mxu0 0.0
    %2062 = vmatpush.msra.mxu0 0.0
    %2063 = vmatpush.msra.mxu0 0.0
    %2064 = vmatpush.msra.mxu0 0.0
    %2065 = vmatpush.msra.mxu0 0.0
    %2066 = vmatpush.msra.mxu0 0.0
    %2067 = vmatpush.msra.mxu0 0.0
    %v2068 = vand.u32 %v51, 4294901760
    %2069 = vmatpush.msra.mxu0 %v2068
    %v2070 = vand.u32 %v1927, 4294901760
    %2071 = vmatmul.f32.gmra.mxu0 %v2070
    %v2072 = vpop.f32.mrf.mxu0
    %v2073 = vadd.f32 %v2051, %v2072
    %2074 = vdwg.mxu0
    %v2076 = vsel %vm70, %v1475, 0
    %2078 = vmatpush.msra.mxu0 0.0
    %2079 = vmatpush.msra.mxu0 0.0
    %2080 = vmatpush.msra.mxu0 0.0
    %2081 = vmatpush.msra.mxu0 0.0
    %2082 = vmatpush.msra.mxu0 0.0
    %2083 = vmatpush.msra.mxu0 0.0
    %2084 = vmatpush.msra.mxu0 0.0
    %2085 = vmatpush.msra.mxu0 0.0
    %2086 = vmatpush.msra.mxu0 0.0
    %2087 = vmatpush.msra.mxu0 0.0
    %2088 = vmatpush.msra.mxu0 0.0
    %2089 = vmatpush.msra.mxu0 0.0
    %2090 = vmatpush.msra.mxu0 0.0
    %2091 = vmatpush.msra.mxu0 0.0
    %2092 = vmatpush.msra.mxu0 0.0
    %v2093 = vand.u32 %v55, 4294901760
    %2094 = vmatpush.msra.mxu0 %v2093
    %v2095 = vand.u32 %v2076, 4294901760
    %v2096 = vsub.f32 %v2076, %v2095
    %v2097 = vand.u32 %v2096, 4294901760
    %v2098 = vsub.f32 %v2096, %v2097
    %v2099 = vand.u32 %v2098, 4294901760
    %2100 = vmatmul.f32.gmra.mxu0 %v2099
    %v2101 = vpop.f32.mrf.mxu0
    %v2102 = vadd.f32 0.0, %v2101
    %2103 = vdwg.mxu0
    %2104 = vmatpush.msra.mxu0 0.0
    %2105 = vmatpush.msra.mxu0 0.0
    %2106 = vmatpush.msra.mxu0 0.0
    %2107 = vmatpush.msra.mxu0 0.0
    %2108 = vmatpush.msra.mxu0 0.0
    %2109 = vmatpush.msra.mxu0 0.0
    %2110 = vmatpush.msra.mxu0 0.0
    %2111 = vmatpush.msra.mxu0 0.0
    %2112 = vmatpush.msra.mxu0 0.0
    %2113 = vmatpush.msra.mxu0 0.0
    %2114 = vmatpush.msra.mxu0 0.0
    %2115 = vmatpush.msra.mxu0 0.0
    %2116 = vmatpush.msra.mxu0 0.0
    %2117 = vmatpush.msra.mxu0 0.0
    %2118 = vmatpush.msra.mxu0 0.0
    %v2119 = vand.u32 %v55, 4294901760
    %v2120 = vsub.f32 %v55, %v2119
    %v2121 = vand.u32 %v2120, 4294901760
    %v2122 = vsub.f32 %v2120, %v2121
    %v2123 = vand.u32 %v2122, 4294901760
    %2124 = vmatpush.msra.mxu0 %v2123
    %v2125 = vand.u32 %v2076, 4294901760
    %2126 = vmatmul.f32.gmra.mxu0 %v2125
    %v2127 = vpop.f32.mrf.mxu0
    %v2128 = vadd.f32 %v2102, %v2127
    %2129 = vdwg.mxu0
    %2130 = vmatpush.msra.mxu0 0.0
    %2131 = vmatpush.msra.mxu0 0.0
    %2132 = vmatpush.msra.mxu0 0.0
    %2133 = vmatpush.msra.mxu0 0.0
    %2134 = vmatpush.msra.mxu0 0.0
    %2135 = vmatpush.msra.mxu0 0.0
    %2136 = vmatpush.msra.mxu0 0.0
    %2137 = vmatpush.msra.mxu0 0.0
    %2138 = vmatpush.msra.mxu0 0.0
    %2139 = vmatpush.msra.mxu0 0.0
    %2140 = vmatpush.msra.mxu0 0.0
    %2141 = vmatpush.msra.mxu0 0.0
    %2142 = vmatpush.msra.mxu0 0.0
    %2143 = vmatpush.msra.mxu0 0.0
    %2144 = vmatpush.msra.mxu0 0.0
    %v2145 = vand.u32 %v55, 4294901760
    %v2146 = vsub.f32 %v55, %v2145
    %2147 = vmatpush.msra.mxu0 %v2146
    %v2148 = vand.u32 %v2076, 4294901760
    %v2149 = vsub.f32 %v2076, %v2148
    %2150 = vmatmul.f32.gmra.mxu0 %v2149
    %v2151 = vpop.f32.mrf.mxu0
    %v2152 = vadd.f32 %v2128, %v2151
    %2153 = vdwg.mxu0
    %2154 = vmatpush.msra.mxu0 0.0
    %2155 = vmatpush.msra.mxu0 0.0
    %2156 = vmatpush.msra.mxu0 0.0
    %2157 = vmatpush.msra.mxu0 0.0
    %2158 = vmatpush.msra.mxu0 0.0
    %2159 = vmatpush.msra.mxu0 0.0
    %2160 = vmatpush.msra.mxu0 0.0
    %2161 = vmatpush.msra.mxu0 0.0
    %2162 = vmatpush.msra.mxu0 0.0
    %2163 = vmatpush.msra.mxu0 0.0
    %2164 = vmatpush.msra.mxu0 0.0
    %2165 = vmatpush.msra.mxu0 0.0
    %2166 = vmatpush.msra.mxu0 0.0
    %2167 = vmatpush.msra.mxu0 0.0
    %2168 = vmatpush.msra.mxu0 0.0
    %v2169 = vand.u32 %v55, 4294901760
    %2170 = vmatpush.msra.mxu0 %v2169
    %v2171 = vand.u32 %v2076, 4294901760
    %v2172 = vsub.f32 %v2076, %v2171
    %v2173 = vand.u32 %v2172, 4294901760
    %2174 = vmatmul.f32.gmra.mxu0 %v2173
    %v2175 = vpop.f32.mrf.mxu0
    %v2176 = vadd.f32 %v2152, %v2175
    %2177 = vdwg.mxu0
    %2178 = vmatpush.msra.mxu0 0.0
    %2179 = vmatpush.msra.mxu0 0.0
    %2180 = vmatpush.msra.mxu0 0.0
    %2181 = vmatpush.msra.mxu0 0.0
    %2182 = vmatpush.msra.mxu0 0.0
    %2183 = vmatpush.msra.mxu0 0.0
    %2184 = vmatpush.msra.mxu0 0.0
    %2185 = vmatpush.msra.mxu0 0.0
    %2186 = vmatpush.msra.mxu0 0.0
    %2187 = vmatpush.msra.mxu0 0.0
    %2188 = vmatpush.msra.mxu0 0.0
    %2189 = vmatpush.msra.mxu0 0.0
    %2190 = vmatpush.msra.mxu0 0.0
    %2191 = vmatpush.msra.mxu0 0.0
    %2192 = vmatpush.msra.mxu0 0.0
    %v2193 = vand.u32 %v55, 4294901760
    %v2194 = vsub.f32 %v55, %v2193
    %v2195 = vand.u32 %v2194, 4294901760
    %2196 = vmatpush.msra.mxu0 %v2195
    %v2197 = vand.u32 %v2076, 4294901760
    %2198 = vmatmul.f32.gmra.mxu0 %v2197
    %v2199 = vpop.f32.mrf.mxu0
    %v2200 = vadd.f32 %v2176, %v2199
    %2201 = vdwg.mxu0
    %2202 = vmatpush.msra.mxu0 0.0
    %2203 = vmatpush.msra.mxu0 0.0
    %2204 = vmatpush.msra.mxu0 0.0
    %2205 = vmatpush.msra.mxu0 0.0
    %2206 = vmatpush.msra.mxu0 0.0
    %2207 = vmatpush.msra.mxu0 0.0
    %2208 = vmatpush.msra.mxu0 0.0
    %2209 = vmatpush.msra.mxu0 0.0
    %2210 = vmatpush.msra.mxu0 0.0
    %2211 = vmatpush.msra.mxu0 0.0
    %2212 = vmatpush.msra.mxu0 0.0
    %2213 = vmatpush.msra.mxu0 0.0
    %2214 = vmatpush.msra.mxu0 0.0
    %2215 = vmatpush.msra.mxu0 0.0
    %2216 = vmatpush.msra.mxu0 0.0
    %v2217 = vand.u32 %v55, 4294901760
    %2218 = vmatpush.msra.mxu0 %v2217
    %v2219 = vand.u32 %v2076, 4294901760
    %2220 = vmatmul.f32.gmra.mxu0 %v2219
    %v2221 = vpop.f32.mrf.mxu0
    %v2222 = vadd.f32 %v2200, %v2221
    %2223 = vdwg.mxu0
    %v2225 = vsel %vm70, %v1476, 0
    %2227 = vmatpush.msra.mxu0 0.0
    %2228 = vmatpush.msra.mxu0 0.0
    %2229 = vmatpush.msra.mxu0 0.0
    %2230 = vmatpush.msra.mxu0 0.0
    %2231 = vmatpush.msra.mxu0 0.0
    %2232 = vmatpush.msra.mxu0 0.0
    %2233 = vmatpush.msra.mxu0 0.0
    %2234 = vmatpush.msra.mxu0 0.0
    %2235 = vmatpush.msra.mxu0 0.0
    %2236 = vmatpush.msra.mxu0 0.0
    %2237 = vmatpush.msra.mxu0 0.0
    %2238 = vmatpush.msra.mxu0 0.0
    %2239 = vmatpush.msra.mxu0 0.0
    %2240 = vmatpush.msra.mxu0 0.0
    %2241 = vmatpush.msra.mxu0 0.0
    %v2242 = vand.u32 %v57, 4294901760
    %2243 = vmatpush.msra.mxu0 %v2242
    %v2244 = vand.u32 %v2225, 4294901760
    %v2245 = vsub.f32 %v2225, %v2244
    %v2246 = vand.u32 %v2245, 4294901760
    %v2247 = vsub.f32 %v2245, %v2246
    %v2248 = vand.u32 %v2247, 4294901760
    %2249 = vmatmul.f32.gmra.mxu0 %v2248
    %v2250 = vpop.f32.mrf.mxu0
    %v2251 = vadd.f32 0.0, %v2250
    %2252 = vdwg.mxu0
    %2253 = vmatpush.msra.mxu0 0.0
    %2254 = vmatpush.msra.mxu0 0.0
    %2255 = vmatpush.msra.mxu0 0.0
    %2256 = vmatpush.msra.mxu0 0.0
    %2257 = vmatpush.msra.mxu0 0.0
    %2258 = vmatpush.msra.mxu0 0.0
    %2259 = vmatpush.msra.mxu0 0.0
    %2260 = vmatpush.msra.mxu0 0.0
    %2261 = vmatpush.msra.mxu0 0.0
    %2262 = vmatpush.msra.mxu0 0.0
    %2263 = vmatpush.msra.mxu0 0.0
    %2264 = vmatpush.msra.mxu0 0.0
    %2265 = vmatpush.msra.mxu0 0.0
    %2266 = vmatpush.msra.mxu0 0.0
    %2267 = vmatpush.msra.mxu0 0.0
    %v2268 = vand.u32 %v57, 4294901760
    %v2269 = vsub.f32 %v57, %v2268
    %v2270 = vand.u32 %v2269, 4294901760
    %v2271 = vsub.f32 %v2269, %v2270
    %v2272 = vand.u32 %v2271, 4294901760
    %2273 = vmatpush.msra.mxu0 %v2272
    %v2274 = vand.u32 %v2225, 4294901760
    %2275 = vmatmul.f32.gmra.mxu0 %v2274
    %v2276 = vpop.f32.mrf.mxu0
    %v2277 = vadd.f32 %v2251, %v2276
    %2278 = vdwg.mxu0
    %2279 = vmatpush.msra.mxu0 0.0
    %2280 = vmatpush.msra.mxu0 0.0
    %2281 = vmatpush.msra.mxu0 0.0
    %2282 = vmatpush.msra.mxu0 0.0
    %2283 = vmatpush.msra.mxu0 0.0
    %2284 = vmatpush.msra.mxu0 0.0
    %2285 = vmatpush.msra.mxu0 0.0
    %2286 = vmatpush.msra.mxu0 0.0
    %2287 = vmatpush.msra.mxu0 0.0
    %2288 = vmatpush.msra.mxu0 0.0
    %2289 = vmatpush.msra.mxu0 0.0
    %2290 = vmatpush.msra.mxu0 0.0
    %2291 = vmatpush.msra.mxu0 0.0
    %2292 = vmatpush.msra.mxu0 0.0
    %2293 = vmatpush.msra.mxu0 0.0
    %v2294 = vand.u32 %v57, 4294901760
    %v2295 = vsub.f32 %v57, %v2294
    %2296 = vmatpush.msra.mxu0 %v2295
    %v2297 = vand.u32 %v2225, 4294901760
    %v2298 = vsub.f32 %v2225, %v2297
    %2299 = vmatmul.f32.gmra.mxu0 %v2298
    %v2300 = vpop.f32.mrf.mxu0
    %v2301 = vadd.f32 %v2277, %v2300
    %2302 = vdwg.mxu0
    %2303 = vmatpush.msra.mxu0 0.0
    %2304 = vmatpush.msra.mxu0 0.0
    %2305 = vmatpush.msra.mxu0 0.0
    %2306 = vmatpush.msra.mxu0 0.0
    %2307 = vmatpush.msra.mxu0 0.0
    %2308 = vmatpush.msra.mxu0 0.0
    %2309 = vmatpush.msra.mxu0 0.0
    %2310 = vmatpush.msra.mxu0 0.0
    %2311 = vmatpush.msra.mxu0 0.0
    %2312 = vmatpush.msra.mxu0 0.0
    %2313 = vmatpush.msra.mxu0 0.0
    %2314 = vmatpush.msra.mxu0 0.0
    %2315 = vmatpush.msra.mxu0 0.0
    %2316 = vmatpush.msra.mxu0 0.0
    %2317 = vmatpush.msra.mxu0 0.0
    %v2318 = vand.u32 %v57, 4294901760
    %2319 = vmatpush.msra.mxu0 %v2318
    %v2320 = vand.u32 %v2225, 4294901760
    %v2321 = vsub.f32 %v2225, %v2320
    %v2322 = vand.u32 %v2321, 4294901760
    %2323 = vmatmul.f32.gmra.mxu0 %v2322
    %v2324 = vpop.f32.mrf.mxu0
    %v2325 = vadd.f32 %v2301, %v2324
    %2326 = vdwg.mxu0
    %2327 = vmatpush.msra.mxu0 0.0
    %2328 = vmatpush.msra.mxu0 0.0
    %2329 = vmatpush.msra.mxu0 0.0
    %2330 = vmatpush.msra.mxu0 0.0
    %2331 = vmatpush.msra.mxu0 0.0
    %2332 = vmatpush.msra.mxu0 0.0
    %2333 = vmatpush.msra.mxu0 0.0
    %2334 = vmatpush.msra.mxu0 0.0
    %2335 = vmatpush.msra.mxu0 0.0
    %2336 = vmatpush.msra.mxu0 0.0
    %2337 = vmatpush.msra.mxu0 0.0
    %2338 = vmatpush.msra.mxu0 0.0
    %2339 = vmatpush.msra.mxu0 0.0
    %2340 = vmatpush.msra.mxu0 0.0
    %2341 = vmatpush.msra.mxu0 0.0
    %v2342 = vand.u32 %v57, 4294901760
    %v2343 = vsub.f32 %v57, %v2342
    %v2344 = vand.u32 %v2343, 4294901760
    %2345 = vmatpush.msra.mxu0 %v2344
    %v2346 = vand.u32 %v2225, 4294901760
    %2347 = vmatmul.f32.gmra.mxu0 %v2346
    %v2348 = vpop.f32.mrf.mxu0
    %v2349 = vadd.f32 %v2325, %v2348
    %2350 = vdwg.mxu0
    %2351 = vmatpush.msra.mxu0 0.0
    %2352 = vmatpush.msra.mxu0 0.0
    %2353 = vmatpush.msra.mxu0 0.0
    %2354 = vmatpush.msra.mxu0 0.0
    %2355 = vmatpush.msra.mxu0 0.0
    %2356 = vmatpush.msra.mxu0 0.0
    %2357 = vmatpush.msra.mxu0 0.0
    %2358 = vmatpush.msra.mxu0 0.0
    %2359 = vmatpush.msra.mxu0 0.0
    %2360 = vmatpush.msra.mxu0 0.0
    %2361 = vmatpush.msra.mxu0 0.0
    %2362 = vmatpush.msra.mxu0 0.0
    %2363 = vmatpush.msra.mxu0 0.0
    %2364 = vmatpush.msra.mxu0 0.0
    %2365 = vmatpush.msra.mxu0 0.0
    %v2366 = vand.u32 %v57, 4294901760
    %2367 = vmatpush.msra.mxu0 %v2366
    %v2368 = vand.u32 %v2225, 4294901760
    %2369 = vmatmul.f32.gmra.mxu0 %v2368
    %v2370 = vpop.f32.mrf.mxu0
    %v2371 = vadd.f32 %v2349, %v2370
    %2372 = vdwg.mxu0
    %v2374 = vsel %vm70, %v1477, 0
    %2376 = vmatpush.msra.mxu0 0.0
    %2377 = vmatpush.msra.mxu0 0.0
    %2378 = vmatpush.msra.mxu0 0.0
    %2379 = vmatpush.msra.mxu0 0.0
    %2380 = vmatpush.msra.mxu0 0.0
    %2381 = vmatpush.msra.mxu0 0.0
    %2382 = vmatpush.msra.mxu0 0.0
    %2383 = vmatpush.msra.mxu0 0.0
    %2384 = vmatpush.msra.mxu0 0.0
    %2385 = vmatpush.msra.mxu0 0.0
    %2386 = vmatpush.msra.mxu0 0.0
    %2387 = vmatpush.msra.mxu0 0.0
    %2388 = vmatpush.msra.mxu0 0.0
    %2389 = vmatpush.msra.mxu0 0.0
    %2390 = vmatpush.msra.mxu0 0.0
    %v2391 = vand.u32 %v61, 4294901760
    %2392 = vmatpush.msra.mxu0 %v2391
    %v2393 = vand.u32 %v2374, 4294901760
    %v2394 = vsub.f32 %v2374, %v2393
    %v2395 = vand.u32 %v2394, 4294901760
    %v2396 = vsub.f32 %v2394, %v2395
    %v2397 = vand.u32 %v2396, 4294901760
    %2398 = vmatmul.f32.gmra.mxu0 %v2397
    %v2399 = vpop.f32.mrf.mxu0
    %v2400 = vadd.f32 0.0, %v2399
    %2401 = vdwg.mxu0
    %2402 = vmatpush.msra.mxu0 0.0
    %2403 = vmatpush.msra.mxu0 0.0
    %2404 = vmatpush.msra.mxu0 0.0
    %2405 = vmatpush.msra.mxu0 0.0
    %2406 = vmatpush.msra.mxu0 0.0
    %2407 = vmatpush.msra.mxu0 0.0
    %2408 = vmatpush.msra.mxu0 0.0
    %2409 = vmatpush.msra.mxu0 0.0
    %2410 = vmatpush.msra.mxu0 0.0
    %2411 = vmatpush.msra.mxu0 0.0
    %2412 = vmatpush.msra.mxu0 0.0
    %2413 = vmatpush.msra.mxu0 0.0
    %2414 = vmatpush.msra.mxu0 0.0
    %2415 = vmatpush.msra.mxu0 0.0
    %2416 = vmatpush.msra.mxu0 0.0
    %v2417 = vand.u32 %v61, 4294901760
    %v2418 = vsub.f32 %v61, %v2417
    %v2419 = vand.u32 %v2418, 4294901760
    %v2420 = vsub.f32 %v2418, %v2419
    %v2421 = vand.u32 %v2420, 4294901760
    %2422 = vmatpush.msra.mxu0 %v2421
    %v2423 = vand.u32 %v2374, 4294901760
    %2424 = vmatmul.f32.gmra.mxu0 %v2423
    %v2425 = vpop.f32.mrf.mxu0
    %v2426 = vadd.f32 %v2400, %v2425
    %2427 = vdwg.mxu0
    %2428 = vmatpush.msra.mxu0 0.0
    %2429 = vmatpush.msra.mxu0 0.0
    %2430 = vmatpush.msra.mxu0 0.0
    %2431 = vmatpush.msra.mxu0 0.0
    %2432 = vmatpush.msra.mxu0 0.0
    %2433 = vmatpush.msra.mxu0 0.0
    %2434 = vmatpush.msra.mxu0 0.0
    %2435 = vmatpush.msra.mxu0 0.0
    %2436 = vmatpush.msra.mxu0 0.0
    %2437 = vmatpush.msra.mxu0 0.0
    %2438 = vmatpush.msra.mxu0 0.0
    %2439 = vmatpush.msra.mxu0 0.0
    %2440 = vmatpush.msra.mxu0 0.0
    %2441 = vmatpush.msra.mxu0 0.0
    %2442 = vmatpush.msra.mxu0 0.0
    %v2443 = vand.u32 %v61, 4294901760
    %v2444 = vsub.f32 %v61, %v2443
    %2445 = vmatpush.msra.mxu0 %v2444
    %v2446 = vand.u32 %v2374, 4294901760
    %v2447 = vsub.f32 %v2374, %v2446
    %2448 = vmatmul.f32.gmra.mxu0 %v2447
    %v2449 = vpop.f32.mrf.mxu0
    %v2450 = vadd.f32 %v2426, %v2449
    %2451 = vdwg.mxu0
    %2452 = vmatpush.msra.mxu0 0.0
    %2453 = vmatpush.msra.mxu0 0.0
    %2454 = vmatpush.msra.mxu0 0.0
    %2455 = vmatpush.msra.mxu0 0.0
    %2456 = vmatpush.msra.mxu0 0.0
    %2457 = vmatpush.msra.mxu0 0.0
    %2458 = vmatpush.msra.mxu0 0.0
    %2459 = vmatpush.msra.mxu0 0.0
    %2460 = vmatpush.msra.mxu0 0.0
    %2461 = vmatpush.msra.mxu0 0.0
    %2462 = vmatpush.msra.mxu0 0.0
    %2463 = vmatpush.msra.mxu0 0.0
    %2464 = vmatpush.msra.mxu0 0.0
    %2465 = vmatpush.msra.mxu0 0.0
    %2466 = vmatpush.msra.mxu0 0.0
    %v2467 = vand.u32 %v61, 4294901760
    %2468 = vmatpush.msra.mxu0 %v2467
    %v2469 = vand.u32 %v2374, 4294901760
    %v2470 = vsub.f32 %v2374, %v2469
    %v2471 = vand.u32 %v2470, 4294901760
    %2472 = vmatmul.f32.gmra.mxu0 %v2471
    %v2473 = vpop.f32.mrf.mxu0
    %v2474 = vadd.f32 %v2450, %v2473
    %2475 = vdwg.mxu0
    %2476 = vmatpush.msra.mxu0 0.0
    %2477 = vmatpush.msra.mxu0 0.0
    %2478 = vmatpush.msra.mxu0 0.0
    %2479 = vmatpush.msra.mxu0 0.0
    %2480 = vmatpush.msra.mxu0 0.0
    %2481 = vmatpush.msra.mxu0 0.0
    %2482 = vmatpush.msra.mxu0 0.0
    %2483 = vmatpush.msra.mxu0 0.0
    %2484 = vmatpush.msra.mxu0 0.0
    %2485 = vmatpush.msra.mxu0 0.0
    %2486 = vmatpush.msra.mxu0 0.0
    %2487 = vmatpush.msra.mxu0 0.0
    %2488 = vmatpush.msra.mxu0 0.0
    %2489 = vmatpush.msra.mxu0 0.0
    %2490 = vmatpush.msra.mxu0 0.0
    %v2491 = vand.u32 %v61, 4294901760
    %v2492 = vsub.f32 %v61, %v2491
    %v2493 = vand.u32 %v2492, 4294901760
    %2494 = vmatpush.msra.mxu0 %v2493
    %v2495 = vand.u32 %v2374, 4294901760
    %2496 = vmatmul.f32.gmra.mxu0 %v2495
    %v2497 = vpop.f32.mrf.mxu0
    %v2498 = vadd.f32 %v2474, %v2497
    %2499 = vdwg.mxu0
    %2500 = vmatpush.msra.mxu0 0.0
    %2501 = vmatpush.msra.mxu0 0.0
    %2502 = vmatpush.msra.mxu0 0.0
    %2503 = vmatpush.msra.mxu0 0.0
    %2504 = vmatpush.msra.mxu0 0.0
    %2505 = vmatpush.msra.mxu0 0.0
    %2506 = vmatpush.msra.mxu0 0.0
    %2507 = vmatpush.msra.mxu0 0.0
    %2508 = vmatpush.msra.mxu0 0.0
    %2509 = vmatpush.msra.mxu0 0.0
    %2510 = vmatpush.msra.mxu0 0.0
    %2511 = vmatpush.msra.mxu0 0.0
    %2512 = vmatpush.msra.mxu0 0.0
    %2513 = vmatpush.msra.mxu0 0.0
    %2514 = vmatpush.msra.mxu0 0.0
    %v2515 = vand.u32 %v61, 4294901760
    %2516 = vmatpush.msra.mxu0 %v2515
    %v2517 = vand.u32 %v2374, 4294901760
    %2518 = vmatmul.f32.gmra.mxu0 %v2517
    %v2519 = vpop.f32.mrf.mxu0
    %v2520 = vadd.f32 %v2498, %v2519
    %2521 = vdwg.mxu0
    %v2523 = vsel %vm70, %v1478, 0
    %2525 = vmatpush.msra.mxu0 0.0
    %2526 = vmatpush.msra.mxu0 0.0
    %2527 = vmatpush.msra.mxu0 0.0
    %2528 = vmatpush.msra.mxu0 0.0
    %2529 = vmatpush.msra.mxu0 0.0
    %2530 = vmatpush.msra.mxu0 0.0
    %2531 = vmatpush.msra.mxu0 0.0
    %2532 = vmatpush.msra.mxu0 0.0
    %2533 = vmatpush.msra.mxu0 0.0
    %2534 = vmatpush.msra.mxu0 0.0
    %2535 = vmatpush.msra.mxu0 0.0
    %2536 = vmatpush.msra.mxu0 0.0
    %2537 = vmatpush.msra.mxu0 0.0
    %2538 = vmatpush.msra.mxu0 0.0
    %2539 = vmatpush.msra.mxu0 0.0
    %v2540 = vand.u32 %v63, 4294901760
    %2541 = vmatpush.msra.mxu0 %v2540
    %v2542 = vand.u32 %v2523, 4294901760
    %v2543 = vsub.f32 %v2523, %v2542
    %v2544 = vand.u32 %v2543, 4294901760
    %v2545 = vsub.f32 %v2543, %v2544
    %v2546 = vand.u32 %v2545, 4294901760
    %2547 = vmatmul.f32.gmra.mxu0 %v2546
    %v2548 = vpop.f32.mrf.mxu0
    %v2549 = vadd.f32 0.0, %v2548
    %2550 = vdwg.mxu0
    %2551 = vmatpush.msra.mxu0 0.0
    %2552 = vmatpush.msra.mxu0 0.0
    %2553 = vmatpush.msra.mxu0 0.0
    %2554 = vmatpush.msra.mxu0 0.0
    %2555 = vmatpush.msra.mxu0 0.0
    %2556 = vmatpush.msra.mxu0 0.0
    %2557 = vmatpush.msra.mxu0 0.0
    %2558 = vmatpush.msra.mxu0 0.0
    %2559 = vmatpush.msra.mxu0 0.0
    %2560 = vmatpush.msra.mxu0 0.0
    %2561 = vmatpush.msra.mxu0 0.0
    %2562 = vmatpush.msra.mxu0 0.0
    %2563 = vmatpush.msra.mxu0 0.0
    %2564 = vmatpush.msra.mxu0 0.0
    %2565 = vmatpush.msra.mxu0 0.0
    %v2566 = vand.u32 %v63, 4294901760
    %v2567 = vsub.f32 %v63, %v2566
    %v2568 = vand.u32 %v2567, 4294901760
    %v2569 = vsub.f32 %v2567, %v2568
    %v2570 = vand.u32 %v2569, 4294901760
    %2571 = vmatpush.msra.mxu0 %v2570
    %v2572 = vand.u32 %v2523, 4294901760
    %2573 = vmatmul.f32.gmra.mxu0 %v2572
    %v2574 = vpop.f32.mrf.mxu0
    %v2575 = vadd.f32 %v2549, %v2574
    %2576 = vdwg.mxu0
    %2577 = vmatpush.msra.mxu0 0.0
    %2578 = vmatpush.msra.mxu0 0.0
    %2579 = vmatpush.msra.mxu0 0.0
    %2580 = vmatpush.msra.mxu0 0.0
    %2581 = vmatpush.msra.mxu0 0.0
    %2582 = vmatpush.msra.mxu0 0.0
    %2583 = vmatpush.msra.mxu0 0.0
    %2584 = vmatpush.msra.mxu0 0.0
    %2585 = vmatpush.msra.mxu0 0.0
    %2586 = vmatpush.msra.mxu0 0.0
    %2587 = vmatpush.msra.mxu0 0.0
    %2588 = vmatpush.msra.mxu0 0.0
    %2589 = vmatpush.msra.mxu0 0.0
    %2590 = vmatpush.msra.mxu0 0.0
    %2591 = vmatpush.msra.mxu0 0.0
    %v2592 = vand.u32 %v63, 4294901760
    %v2593 = vsub.f32 %v63, %v2592
    %2594 = vmatpush.msra.mxu0 %v2593
    %v2595 = vand.u32 %v2523, 4294901760
    %v2596 = vsub.f32 %v2523, %v2595
    %2597 = vmatmul.f32.gmra.mxu0 %v2596
    %v2598 = vpop.f32.mrf.mxu0
    %v2599 = vadd.f32 %v2575, %v2598
    %2600 = vdwg.mxu0
    %2601 = vmatpush.msra.mxu0 0.0
    %2602 = vmatpush.msra.mxu0 0.0
    %2603 = vmatpush.msra.mxu0 0.0
    %2604 = vmatpush.msra.mxu0 0.0
    %2605 = vmatpush.msra.mxu0 0.0
    %2606 = vmatpush.msra.mxu0 0.0
    %2607 = vmatpush.msra.mxu0 0.0
    %2608 = vmatpush.msra.mxu0 0.0
    %2609 = vmatpush.msra.mxu0 0.0
    %2610 = vmatpush.msra.mxu0 0.0
    %2611 = vmatpush.msra.mxu0 0.0
    %2612 = vmatpush.msra.mxu0 0.0
    %2613 = vmatpush.msra.mxu0 0.0
    %2614 = vmatpush.msra.mxu0 0.0
    %2615 = vmatpush.msra.mxu0 0.0
    %v2616 = vand.u32 %v63, 4294901760
    %2617 = vmatpush.msra.mxu0 %v2616
    %v2618 = vand.u32 %v2523, 4294901760
    %v2619 = vsub.f32 %v2523, %v2618
    %v2620 = vand.u32 %v2619, 4294901760
    %2621 = vmatmul.f32.gmra.mxu0 %v2620
    %v2622 = vpop.f32.mrf.mxu0
    %v2623 = vadd.f32 %v2599, %v2622
    %2624 = vdwg.mxu0
    %2625 = vmatpush.msra.mxu0 0.0
    %2626 = vmatpush.msra.mxu0 0.0
    %2627 = vmatpush.msra.mxu0 0.0
    %2628 = vmatpush.msra.mxu0 0.0
    %2629 = vmatpush.msra.mxu0 0.0
    %2630 = vmatpush.msra.mxu0 0.0
    %2631 = vmatpush.msra.mxu0 0.0
    %2632 = vmatpush.msra.mxu0 0.0
    %2633 = vmatpush.msra.mxu0 0.0
    %2634 = vmatpush.msra.mxu0 0.0
    %2635 = vmatpush.msra.mxu0 0.0
    %2636 = vmatpush.msra.mxu0 0.0
    %2637 = vmatpush.msra.mxu0 0.0
    %2638 = vmatpush.msra.mxu0 0.0
    %2639 = vmatpush.msra.mxu0 0.0
    %v2640 = vand.u32 %v63, 4294901760
    %v2641 = vsub.f32 %v63, %v2640
    %v2642 = vand.u32 %v2641, 4294901760
    %2643 = vmatpush.msra.mxu0 %v2642
    %v2644 = vand.u32 %v2523, 4294901760
    %2645 = vmatmul.f32.gmra.mxu0 %v2644
    %v2646 = vpop.f32.mrf.mxu0
    %v2647 = vadd.f32 %v2623, %v2646
    %2648 = vdwg.mxu0
    %2649 = vmatpush.msra.mxu0 0.0
    %2650 = vmatpush.msra.mxu0 0.0
    %2651 = vmatpush.msra.mxu0 0.0
    %2652 = vmatpush.msra.mxu0 0.0
    %2653 = vmatpush.msra.mxu0 0.0
    %2654 = vmatpush.msra.mxu0 0.0
    %2655 = vmatpush.msra.mxu0 0.0
    %2656 = vmatpush.msra.mxu0 0.0
    %2657 = vmatpush.msra.mxu0 0.0
    %2658 = vmatpush.msra.mxu0 0.0
    %2659 = vmatpush.msra.mxu0 0.0
    %2660 = vmatpush.msra.mxu0 0.0
    %2661 = vmatpush.msra.mxu0 0.0
    %2662 = vmatpush.msra.mxu0 0.0
    %2663 = vmatpush.msra.mxu0 0.0
    %v2664 = vand.u32 %v63, 4294901760
    %2665 = vmatpush.msra.mxu0 %v2664
    %v2666 = vand.u32 %v2523, 4294901760
    %2667 = vmatmul.f32.gmra.mxu0 %v2666
    %v2668 = vpop.f32.mrf.mxu0
    %v2669 = vadd.f32 %v2647, %v2668
    %2670 = vdwg.mxu0
    %v2672 = vsel %vm70, %v1626, 0
    %2674 = vmatpush.xpose.msra.mxu0 0.0
    %2675 = vmatpush.xpose.msra.mxu0 0.0
    %2676 = vmatpush.xpose.msra.mxu0 0.0
    %2677 = vmatpush.xpose.msra.mxu0 0.0
    %2678 = vmatpush.xpose.msra.mxu0 0.0
    %2679 = vmatpush.xpose.msra.mxu0 0.0
    %2680 = vmatpush.xpose.msra.mxu0 0.0
    %2681 = vmatpush.xpose.msra.mxu0 0.0
    %2682 = vmatpush.xpose.msra.mxu0 0.0
    %2683 = vmatpush.xpose.msra.mxu0 0.0
    %2684 = vmatpush.xpose.msra.mxu0 0.0
    %2685 = vmatpush.xpose.msra.mxu0 0.0
    %2686 = vmatpush.xpose.msra.mxu0 0.0
    %2687 = vmatpush.xpose.msra.mxu0 0.0
    %2688 = vmatpush.xpose.msra.mxu0 0.0
    %v2689 = vand.u32 %v2672, 4294901760
    %2690 = vmatpush.xpose.msra.mxu0 %v2689
    %v2691 = vand.u32 %v2672, 4294901760
    %v2692 = vsub.f32 %v2672, %v2691
    %v2693 = vand.u32 %v2692, 4294901760
    %v2694 = vsub.f32 %v2692, %v2693
    %v2695 = vand.u32 %v2694, 4294901760
    %2696 = vmatmul.f32.gmra.mxu0 %v2695
    %v2697 = vpop.f32.mrf.mxu0
    %v2698 = vadd.f32 0.0, %v2697
    %2699 = vdwg.mxu0
    %2700 = vmatpush.xpose.msra.mxu0 0.0
    %2701 = vmatpush.xpose.msra.mxu0 0.0
    %2702 = vmatpush.xpose.msra.mxu0 0.0
    %2703 = vmatpush.xpose.msra.mxu0 0.0
    %2704 = vmatpush.xpose.msra.mxu0 0.0
    %2705 = vmatpush.xpose.msra.mxu0 0.0
    %2706 = vmatpush.xpose.msra.mxu0 0.0
    %2707 = vmatpush.xpose.msra.mxu0 0.0
    %2708 = vmatpush.xpose.msra.mxu0 0.0
    %2709 = vmatpush.xpose.msra.mxu0 0.0
    %2710 = vmatpush.xpose.msra.mxu0 0.0
    %2711 = vmatpush.xpose.msra.mxu0 0.0
    %2712 = vmatpush.xpose.msra.mxu0 0.0
    %2713 = vmatpush.xpose.msra.mxu0 0.0
    %2714 = vmatpush.xpose.msra.mxu0 0.0
    %v2715 = vand.u32 %v2672, 4294901760
    %v2716 = vsub.f32 %v2672, %v2715
    %v2717 = vand.u32 %v2716, 4294901760
    %v2718 = vsub.f32 %v2716, %v2717
    %v2719 = vand.u32 %v2718, 4294901760
    %2720 = vmatpush.xpose.msra.mxu0 %v2719
    %v2721 = vand.u32 %v2672, 4294901760
    %2722 = vmatmul.f32.gmra.mxu0 %v2721
    %v2723 = vpop.f32.mrf.mxu0
    %v2724 = vadd.f32 %v2698, %v2723
    %2725 = vdwg.mxu0
    %2726 = vmatpush.xpose.msra.mxu0 0.0
    %2727 = vmatpush.xpose.msra.mxu0 0.0
    %2728 = vmatpush.xpose.msra.mxu0 0.0
    %2729 = vmatpush.xpose.msra.mxu0 0.0
    %2730 = vmatpush.xpose.msra.mxu0 0.0
    %2731 = vmatpush.xpose.msra.mxu0 0.0
    %2732 = vmatpush.xpose.msra.mxu0 0.0
    %2733 = vmatpush.xpose.msra.mxu0 0.0
    %2734 = vmatpush.xpose.msra.mxu0 0.0
    %2735 = vmatpush.xpose.msra.mxu0 0.0
    %2736 = vmatpush.xpose.msra.mxu0 0.0
    %2737 = vmatpush.xpose.msra.mxu0 0.0
    %2738 = vmatpush.xpose.msra.mxu0 0.0
    %2739 = vmatpush.xpose.msra.mxu0 0.0
    %2740 = vmatpush.xpose.msra.mxu0 0.0
    %v2741 = vand.u32 %v2672, 4294901760
    %v2742 = vsub.f32 %v2672, %v2741
    %2743 = vmatpush.xpose.msra.mxu0 %v2742
    %v2744 = vand.u32 %v2672, 4294901760
    %v2745 = vsub.f32 %v2672, %v2744
    %2746 = vmatmul.f32.gmra.mxu0 %v2745
    %v2747 = vpop.f32.mrf.mxu0
    %v2748 = vadd.f32 %v2724, %v2747
    %2749 = vdwg.mxu0
    %2750 = vmatpush.xpose.msra.mxu0 0.0
    %2751 = vmatpush.xpose.msra.mxu0 0.0
    %2752 = vmatpush.xpose.msra.mxu0 0.0
    %2753 = vmatpush.xpose.msra.mxu0 0.0
    %2754 = vmatpush.xpose.msra.mxu0 0.0
    %2755 = vmatpush.xpose.msra.mxu0 0.0
    %2756 = vmatpush.xpose.msra.mxu0 0.0
    %2757 = vmatpush.xpose.msra.mxu0 0.0
    %2758 = vmatpush.xpose.msra.mxu0 0.0
    %2759 = vmatpush.xpose.msra.mxu0 0.0
    %2760 = vmatpush.xpose.msra.mxu0 0.0
    %2761 = vmatpush.xpose.msra.mxu0 0.0
    %2762 = vmatpush.xpose.msra.mxu0 0.0
    %2763 = vmatpush.xpose.msra.mxu0 0.0
    %2764 = vmatpush.xpose.msra.mxu0 0.0
    %v2765 = vand.u32 %v2672, 4294901760
    %2766 = vmatpush.xpose.msra.mxu0 %v2765
    %v2767 = vand.u32 %v2672, 4294901760
    %v2768 = vsub.f32 %v2672, %v2767
    %v2769 = vand.u32 %v2768, 4294901760
    %2770 = vmatmul.f32.gmra.mxu0 %v2769
    %v2771 = vpop.f32.mrf.mxu0
    %v2772 = vadd.f32 %v2748, %v2771
    %2773 = vdwg.mxu0
    %2774 = vmatpush.xpose.msra.mxu0 0.0
    %2775 = vmatpush.xpose.msra.mxu0 0.0
    %2776 = vmatpush.xpose.msra.mxu0 0.0
    %2777 = vmatpush.xpose.msra.mxu0 0.0
    %2778 = vmatpush.xpose.msra.mxu0 0.0
    %2779 = vmatpush.xpose.msra.mxu0 0.0
    %2780 = vmatpush.xpose.msra.mxu0 0.0
    %2781 = vmatpush.xpose.msra.mxu0 0.0
    %2782 = vmatpush.xpose.msra.mxu0 0.0
    %2783 = vmatpush.xpose.msra.mxu0 0.0
    %2784 = vmatpush.xpose.msra.mxu0 0.0
    %2785 = vmatpush.xpose.msra.mxu0 0.0
    %2786 = vmatpush.xpose.msra.mxu0 0.0
    %2787 = vmatpush.xpose.msra.mxu0 0.0
    %2788 = vmatpush.xpose.msra.mxu0 0.0
    %v2789 = vand.u32 %v2672, 4294901760
    %v2790 = vsub.f32 %v2672, %v2789
    %v2791 = vand.u32 %v2790, 4294901760
    %2792 = vmatpush.xpose.msra.mxu0 %v2791
    %v2793 = vand.u32 %v2672, 4294901760
    %2794 = vmatmul.f32.gmra.mxu0 %v2793
    %v2795 = vpop.f32.mrf.mxu0
    %v2796 = vadd.f32 %v2772, %v2795
    %2797 = vdwg.mxu0
    %2798 = vmatpush.xpose.msra.mxu0 0.0
    %2799 = vmatpush.xpose.msra.mxu0 0.0
    %2800 = vmatpush.xpose.msra.mxu0 0.0
    %2801 = vmatpush.xpose.msra.mxu0 0.0
    %2802 = vmatpush.xpose.msra.mxu0 0.0
    %2803 = vmatpush.xpose.msra.mxu0 0.0
    %2804 = vmatpush.xpose.msra.mxu0 0.0
    %2805 = vmatpush.xpose.msra.mxu0 0.0
    %2806 = vmatpush.xpose.msra.mxu0 0.0
    %2807 = vmatpush.xpose.msra.mxu0 0.0
    %2808 = vmatpush.xpose.msra.mxu0 0.0
    %2809 = vmatpush.xpose.msra.mxu0 0.0
    %2810 = vmatpush.xpose.msra.mxu0 0.0
    %2811 = vmatpush.xpose.msra.mxu0 0.0
    %2812 = vmatpush.xpose.msra.mxu0 0.0
    %v2813 = vand.u32 %v2672, 4294901760
    %2814 = vmatpush.xpose.msra.mxu0 %v2813
    %v2815 = vand.u32 %v2672, 4294901760
    %2816 = vmatmul.f32.gmra.mxu0 %v2815
    %v2817 = vpop.f32.mrf.mxu0
    %v2818 = vadd.f32 %v2796, %v2817
    %2819 = vdwg.mxu0
    %v2821 = vsel %vm70, %v1775, 0
    %2823 = vmatpush.xpose.msra.mxu0 0.0
    %2824 = vmatpush.xpose.msra.mxu0 0.0
    %2825 = vmatpush.xpose.msra.mxu0 0.0
    %2826 = vmatpush.xpose.msra.mxu0 0.0
    %2827 = vmatpush.xpose.msra.mxu0 0.0
    %2828 = vmatpush.xpose.msra.mxu0 0.0
    %2829 = vmatpush.xpose.msra.mxu0 0.0
    %2830 = vmatpush.xpose.msra.mxu0 0.0
    %2831 = vmatpush.xpose.msra.mxu0 0.0
    %2832 = vmatpush.xpose.msra.mxu0 0.0
    %2833 = vmatpush.xpose.msra.mxu0 0.0
    %2834 = vmatpush.xpose.msra.mxu0 0.0
    %2835 = vmatpush.xpose.msra.mxu0 0.0
    %2836 = vmatpush.xpose.msra.mxu0 0.0
    %2837 = vmatpush.xpose.msra.mxu0 0.0
    %v2838 = vand.u32 %v2821, 4294901760
    %2839 = vmatpush.xpose.msra.mxu0 %v2838
    %v2840 = vand.u32 %v2821, 4294901760
    %v2841 = vsub.f32 %v2821, %v2840
    %v2842 = vand.u32 %v2841, 4294901760
    %v2843 = vsub.f32 %v2841, %v2842
    %v2844 = vand.u32 %v2843, 4294901760
    %2845 = vmatmul.f32.gmra.mxu0 %v2844
    %v2846 = vpop.f32.mrf.mxu0
    %v2847 = vadd.f32 0.0, %v2846
    %2848 = vdwg.mxu0
    %2849 = vmatpush.xpose.msra.mxu0 0.0
    %2850 = vmatpush.xpose.msra.mxu0 0.0
    %2851 = vmatpush.xpose.msra.mxu0 0.0
    %2852 = vmatpush.xpose.msra.mxu0 0.0
    %2853 = vmatpush.xpose.msra.mxu0 0.0
    %2854 = vmatpush.xpose.msra.mxu0 0.0
    %2855 = vmatpush.xpose.msra.mxu0 0.0
    %2856 = vmatpush.xpose.msra.mxu0 0.0
    %2857 = vmatpush.xpose.msra.mxu0 0.0
    %2858 = vmatpush.xpose.msra.mxu0 0.0
    %2859 = vmatpush.xpose.msra.mxu0 0.0
    %2860 = vmatpush.xpose.msra.mxu0 0.0
    %2861 = vmatpush.xpose.msra.mxu0 0.0
    %2862 = vmatpush.xpose.msra.mxu0 0.0
    %2863 = vmatpush.xpose.msra.mxu0 0.0
    %v2864 = vand.u32 %v2821, 4294901760
    %v2865 = vsub.f32 %v2821, %v2864
    %v2866 = vand.u32 %v2865, 4294901760
    %v2867 = vsub.f32 %v2865, %v2866
    %v2868 = vand.u32 %v2867, 4294901760
    %2869 = vmatpush.xpose.msra.mxu0 %v2868
    %v2870 = vand.u32 %v2821, 4294901760
    %2871 = vmatmul.f32.gmra.mxu0 %v2870
    %v2872 = vpop.f32.mrf.mxu0
    %v2873 = vadd.f32 %v2847, %v2872
    %2874 = vdwg.mxu0
    %2875 = vmatpush.xpose.msra.mxu0 0.0
    %2876 = vmatpush.xpose.msra.mxu0 0.0
    %2877 = vmatpush.xpose.msra.mxu0 0.0
    %2878 = vmatpush.xpose.msra.mxu0 0.0
    %2879 = vmatpush.xpose.msra.mxu0 0.0
    %2880 = vmatpush.xpose.msra.mxu0 0.0
    %2881 = vmatpush.xpose.msra.mxu0 0.0
    %2882 = vmatpush.xpose.msra.mxu0 0.0
    %2883 = vmatpush.xpose.msra.mxu0 0.0
    %2884 = vmatpush.xpose.msra.mxu0 0.0
    %2885 = vmatpush.xpose.msra.mxu0 0.0
    %2886 = vmatpush.xpose.msra.mxu0 0.0
    %2887 = vmatpush.xpose.msra.mxu0 0.0
    %2888 = vmatpush.xpose.msra.mxu0 0.0
    %2889 = vmatpush.xpose.msra.mxu0 0.0
    %v2890 = vand.u32 %v2821, 4294901760
    %v2891 = vsub.f32 %v2821, %v2890
    %2892 = vmatpush.xpose.msra.mxu0 %v2891
    %v2893 = vand.u32 %v2821, 4294901760
    %v2894 = vsub.f32 %v2821, %v2893
    %2895 = vmatmul.f32.gmra.mxu0 %v2894
    %v2896 = vpop.f32.mrf.mxu0
    %v2897 = vadd.f32 %v2873, %v2896
    %2898 = vdwg.mxu0
    %2899 = vmatpush.xpose.msra.mxu0 0.0
    %2900 = vmatpush.xpose.msra.mxu0 0.0
    %2901 = vmatpush.xpose.msra.mxu0 0.0
    %2902 = vmatpush.xpose.msra.mxu0 0.0
    %2903 = vmatpush.xpose.msra.mxu0 0.0
    %2904 = vmatpush.xpose.msra.mxu0 0.0
    %2905 = vmatpush.xpose.msra.mxu0 0.0
    %2906 = vmatpush.xpose.msra.mxu0 0.0
    %2907 = vmatpush.xpose.msra.mxu0 0.0
    %2908 = vmatpush.xpose.msra.mxu0 0.0
    %2909 = vmatpush.xpose.msra.mxu0 0.0
    %2910 = vmatpush.xpose.msra.mxu0 0.0
    %2911 = vmatpush.xpose.msra.mxu0 0.0
    %2912 = vmatpush.xpose.msra.mxu0 0.0
    %2913 = vmatpush.xpose.msra.mxu0 0.0
    %v2914 = vand.u32 %v2821, 4294901760
    %2915 = vmatpush.xpose.msra.mxu0 %v2914
    %v2916 = vand.u32 %v2821, 4294901760
    %v2917 = vsub.f32 %v2821, %v2916
    %v2918 = vand.u32 %v2917, 4294901760
    %2919 = vmatmul.f32.gmra.mxu0 %v2918
    %v2920 = vpop.f32.mrf.mxu0
    %v2921 = vadd.f32 %v2897, %v2920
    %2922 = vdwg.mxu0
    %2923 = vmatpush.xpose.msra.mxu0 0.0
    %2924 = vmatpush.xpose.msra.mxu0 0.0
    %2925 = vmatpush.xpose.msra.mxu0 0.0
    %2926 = vmatpush.xpose.msra.mxu0 0.0
    %2927 = vmatpush.xpose.msra.mxu0 0.0
    %2928 = vmatpush.xpose.msra.mxu0 0.0
    %2929 = vmatpush.xpose.msra.mxu0 0.0
    %2930 = vmatpush.xpose.msra.mxu0 0.0
    %2931 = vmatpush.xpose.msra.mxu0 0.0
    %2932 = vmatpush.xpose.msra.mxu0 0.0
    %2933 = vmatpush.xpose.msra.mxu0 0.0
    %2934 = vmatpush.xpose.msra.mxu0 0.0
    %2935 = vmatpush.xpose.msra.mxu0 0.0
    %2936 = vmatpush.xpose.msra.mxu0 0.0
    %2937 = vmatpush.xpose.msra.mxu0 0.0
    %v2938 = vand.u32 %v2821, 4294901760
    %v2939 = vsub.f32 %v2821, %v2938
    %v2940 = vand.u32 %v2939, 4294901760
    %2941 = vmatpush.xpose.msra.mxu0 %v2940
    %v2942 = vand.u32 %v2821, 4294901760
    %2943 = vmatmul.f32.gmra.mxu0 %v2942
    %v2944 = vpop.f32.mrf.mxu0
    %v2945 = vadd.f32 %v2921, %v2944
    %2946 = vdwg.mxu0
    %2947 = vmatpush.xpose.msra.mxu0 0.0
    %2948 = vmatpush.xpose.msra.mxu0 0.0
    %2949 = vmatpush.xpose.msra.mxu0 0.0
    %2950 = vmatpush.xpose.msra.mxu0 0.0
    %2951 = vmatpush.xpose.msra.mxu0 0.0
    %2952 = vmatpush.xpose.msra.mxu0 0.0
    %2953 = vmatpush.xpose.msra.mxu0 0.0
    %2954 = vmatpush.xpose.msra.mxu0 0.0
    %2955 = vmatpush.xpose.msra.mxu0 0.0
    %2956 = vmatpush.xpose.msra.mxu0 0.0
    %2957 = vmatpush.xpose.msra.mxu0 0.0
    %2958 = vmatpush.xpose.msra.mxu0 0.0
    %2959 = vmatpush.xpose.msra.mxu0 0.0
    %2960 = vmatpush.xpose.msra.mxu0 0.0
    %2961 = vmatpush.xpose.msra.mxu0 0.0
    %v2962 = vand.u32 %v2821, 4294901760
    %2963 = vmatpush.xpose.msra.mxu0 %v2962
    %v2964 = vand.u32 %v2821, 4294901760
    %2965 = vmatmul.f32.gmra.mxu0 %v2964
    %v2966 = vpop.f32.mrf.mxu0
    %v2967 = vadd.f32 %v2945, %v2966
    %2968 = vdwg.mxu0
    %v2970 = vsel %vm70, %v1924, 0
    %2972 = vmatpush.xpose.msra.mxu0 0.0
    %2973 = vmatpush.xpose.msra.mxu0 0.0
    %2974 = vmatpush.xpose.msra.mxu0 0.0
    %2975 = vmatpush.xpose.msra.mxu0 0.0
    %2976 = vmatpush.xpose.msra.mxu0 0.0
    %2977 = vmatpush.xpose.msra.mxu0 0.0
    %2978 = vmatpush.xpose.msra.mxu0 0.0
    %2979 = vmatpush.xpose.msra.mxu0 0.0
    %2980 = vmatpush.xpose.msra.mxu0 0.0
    %2981 = vmatpush.xpose.msra.mxu0 0.0
    %2982 = vmatpush.xpose.msra.mxu0 0.0
    %2983 = vmatpush.xpose.msra.mxu0 0.0
    %2984 = vmatpush.xpose.msra.mxu0 0.0
    %2985 = vmatpush.xpose.msra.mxu0 0.0
    %2986 = vmatpush.xpose.msra.mxu0 0.0
    %v2987 = vand.u32 %v2970, 4294901760
    %2988 = vmatpush.xpose.msra.mxu0 %v2987
    %v2989 = vand.u32 %v2970, 4294901760
    %v2990 = vsub.f32 %v2970, %v2989
    %v2991 = vand.u32 %v2990, 4294901760
    %v2992 = vsub.f32 %v2990, %v2991
    %v2993 = vand.u32 %v2992, 4294901760
    %2994 = vmatmul.f32.gmra.mxu0 %v2993
    %v2995 = vpop.f32.mrf.mxu0
    %v2996 = vadd.f32 0.0, %v2995
    %2997 = vdwg.mxu0
    %2998 = vmatpush.xpose.msra.mxu0 0.0
    %2999 = vmatpush.xpose.msra.mxu0 0.0
    %3000 = vmatpush.xpose.msra.mxu0 0.0
    %3001 = vmatpush.xpose.msra.mxu0 0.0
    %3002 = vmatpush.xpose.msra.mxu0 0.0
    %3003 = vmatpush.xpose.msra.mxu0 0.0
    %3004 = vmatpush.xpose.msra.mxu0 0.0
    %3005 = vmatpush.xpose.msra.mxu0 0.0
    %3006 = vmatpush.xpose.msra.mxu0 0.0
    %3007 = vmatpush.xpose.msra.mxu0 0.0
    %3008 = vmatpush.xpose.msra.mxu0 0.0
    %3009 = vmatpush.xpose.msra.mxu0 0.0
    %3010 = vmatpush.xpose.msra.mxu0 0.0
    %3011 = vmatpush.xpose.msra.mxu0 0.0
    %3012 = vmatpush.xpose.msra.mxu0 0.0
    %v3013 = vand.u32 %v2970, 4294901760
    %v3014 = vsub.f32 %v2970, %v3013
    %v3015 = vand.u32 %v3014, 4294901760
    %v3016 = vsub.f32 %v3014, %v3015
    %v3017 = vand.u32 %v3016, 4294901760
    %3018 = vmatpush.xpose.msra.mxu0 %v3017
    %v3019 = vand.u32 %v2970, 4294901760
    %3020 = vmatmul.f32.gmra.mxu0 %v3019
    %v3021 = vpop.f32.mrf.mxu0
    %v3022 = vadd.f32 %v2996, %v3021
    %3023 = vdwg.mxu0
    %3024 = vmatpush.xpose.msra.mxu0 0.0
    %3025 = vmatpush.xpose.msra.mxu0 0.0
    %3026 = vmatpush.xpose.msra.mxu0 0.0
    %3027 = vmatpush.xpose.msra.mxu0 0.0
    %3028 = vmatpush.xpose.msra.mxu0 0.0
    %3029 = vmatpush.xpose.msra.mxu0 0.0
    %3030 = vmatpush.xpose.msra.mxu0 0.0
    %3031 = vmatpush.xpose.msra.mxu0 0.0
    %3032 = vmatpush.xpose.msra.mxu0 0.0
    %3033 = vmatpush.xpose.msra.mxu0 0.0
    %3034 = vmatpush.xpose.msra.mxu0 0.0
    %3035 = vmatpush.xpose.msra.mxu0 0.0
    %3036 = vmatpush.xpose.msra.mxu0 0.0
    %3037 = vmatpush.xpose.msra.mxu0 0.0
    %3038 = vmatpush.xpose.msra.mxu0 0.0
    %v3039 = vand.u32 %v2970, 4294901760
    %v3040 = vsub.f32 %v2970, %v3039
    %3041 = vmatpush.xpose.msra.mxu0 %v3040
    %v3042 = vand.u32 %v2970, 4294901760
    %v3043 = vsub.f32 %v2970, %v3042
    %3044 = vmatmul.f32.gmra.mxu0 %v3043
    %v3045 = vpop.f32.mrf.mxu0
    %v3046 = vadd.f32 %v3022, %v3045
    %3047 = vdwg.mxu0
    %3048 = vmatpush.xpose.msra.mxu0 0.0
    %3049 = vmatpush.xpose.msra.mxu0 0.0
    %3050 = vmatpush.xpose.msra.mxu0 0.0
    %3051 = vmatpush.xpose.msra.mxu0 0.0
    %3052 = vmatpush.xpose.msra.mxu0 0.0
    %3053 = vmatpush.xpose.msra.mxu0 0.0
    %3054 = vmatpush.xpose.msra.mxu0 0.0
    %3055 = vmatpush.xpose.msra.mxu0 0.0
    %3056 = vmatpush.xpose.msra.mxu0 0.0
    %3057 = vmatpush.xpose.msra.mxu0 0.0
    %3058 = vmatpush.xpose.msra.mxu0 0.0
    %3059 = vmatpush.xpose.msra.mxu0 0.0
    %3060 = vmatpush.xpose.msra.mxu0 0.0
    %3061 = vmatpush.xpose.msra.mxu0 0.0
    %3062 = vmatpush.xpose.msra.mxu0 0.0
    %v3063 = vand.u32 %v2970, 4294901760
    %3064 = vmatpush.xpose.msra.mxu0 %v3063
    %v3065 = vand.u32 %v2970, 4294901760
    %v3066 = vsub.f32 %v2970, %v3065
    %v3067 = vand.u32 %v3066, 4294901760
    %3068 = vmatmul.f32.gmra.mxu0 %v3067
    %v3069 = vpop.f32.mrf.mxu0
    %v3070 = vadd.f32 %v3046, %v3069
    %3071 = vdwg.mxu0
    %3072 = vmatpush.xpose.msra.mxu0 0.0
    %3073 = vmatpush.xpose.msra.mxu0 0.0
    %3074 = vmatpush.xpose.msra.mxu0 0.0
    %3075 = vmatpush.xpose.msra.mxu0 0.0
    %3076 = vmatpush.xpose.msra.mxu0 0.0
    %3077 = vmatpush.xpose.msra.mxu0 0.0
    %3078 = vmatpush.xpose.msra.mxu0 0.0
    %3079 = vmatpush.xpose.msra.mxu0 0.0
    %3080 = vmatpush.xpose.msra.mxu0 0.0
    %3081 = vmatpush.xpose.msra.mxu0 0.0
    %3082 = vmatpush.xpose.msra.mxu0 0.0
    %3083 = vmatpush.xpose.msra.mxu0 0.0
    %3084 = vmatpush.xpose.msra.mxu0 0.0
    %3085 = vmatpush.xpose.msra.mxu0 0.0
    %3086 = vmatpush.xpose.msra.mxu0 0.0
    %v3087 = vand.u32 %v2970, 4294901760
    %v3088 = vsub.f32 %v2970, %v3087
    %v3089 = vand.u32 %v3088, 4294901760
    %3090 = vmatpush.xpose.msra.mxu0 %v3089
    %v3091 = vand.u32 %v2970, 4294901760
    %3092 = vmatmul.f32.gmra.mxu0 %v3091
    %v3093 = vpop.f32.mrf.mxu0
    %v3094 = vadd.f32 %v3070, %v3093
    %3095 = vdwg.mxu0
    %3096 = vmatpush.xpose.msra.mxu0 0.0
    %3097 = vmatpush.xpose.msra.mxu0 0.0
    %3098 = vmatpush.xpose.msra.mxu0 0.0
    %3099 = vmatpush.xpose.msra.mxu0 0.0
    %3100 = vmatpush.xpose.msra.mxu0 0.0
    %3101 = vmatpush.xpose.msra.mxu0 0.0
    %3102 = vmatpush.xpose.msra.mxu0 0.0
    %3103 = vmatpush.xpose.msra.mxu0 0.0
    %3104 = vmatpush.xpose.msra.mxu0 0.0
    %3105 = vmatpush.xpose.msra.mxu0 0.0
    %3106 = vmatpush.xpose.msra.mxu0 0.0
    %3107 = vmatpush.xpose.msra.mxu0 0.0
    %3108 = vmatpush.xpose.msra.mxu0 0.0
    %3109 = vmatpush.xpose.msra.mxu0 0.0
    %3110 = vmatpush.xpose.msra.mxu0 0.0
    %v3111 = vand.u32 %v2970, 4294901760
    %3112 = vmatpush.xpose.msra.mxu0 %v3111
    %v3113 = vand.u32 %v2970, 4294901760
    %3114 = vmatmul.f32.gmra.mxu0 %v3113
    %v3115 = vpop.f32.mrf.mxu0
    %v3116 = vadd.f32 %v3094, %v3115
    %3117 = vdwg.mxu0
    %v3119 = vsel %vm70, %v2073, 0
    %3121 = vmatpush.xpose.msra.mxu0 0.0
    %3122 = vmatpush.xpose.msra.mxu0 0.0
    %3123 = vmatpush.xpose.msra.mxu0 0.0
    %3124 = vmatpush.xpose.msra.mxu0 0.0
    %3125 = vmatpush.xpose.msra.mxu0 0.0
    %3126 = vmatpush.xpose.msra.mxu0 0.0
    %3127 = vmatpush.xpose.msra.mxu0 0.0
    %3128 = vmatpush.xpose.msra.mxu0 0.0
    %3129 = vmatpush.xpose.msra.mxu0 0.0
    %3130 = vmatpush.xpose.msra.mxu0 0.0
    %3131 = vmatpush.xpose.msra.mxu0 0.0
    %3132 = vmatpush.xpose.msra.mxu0 0.0
    %3133 = vmatpush.xpose.msra.mxu0 0.0
    %3134 = vmatpush.xpose.msra.mxu0 0.0
    %3135 = vmatpush.xpose.msra.mxu0 0.0
    %v3136 = vand.u32 %v3119, 4294901760
    %3137 = vmatpush.xpose.msra.mxu0 %v3136
    %v3138 = vand.u32 %v3119, 4294901760
    %v3139 = vsub.f32 %v3119, %v3138
    %v3140 = vand.u32 %v3139, 4294901760
    %v3141 = vsub.f32 %v3139, %v3140
    %v3142 = vand.u32 %v3141, 4294901760
    %3143 = vmatmul.f32.gmra.mxu0 %v3142
    %v3144 = vpop.f32.mrf.mxu0
    %v3145 = vadd.f32 0.0, %v3144
    %3146 = vdwg.mxu0
    %3147 = vmatpush.xpose.msra.mxu0 0.0
    %3148 = vmatpush.xpose.msra.mxu0 0.0
    %3149 = vmatpush.xpose.msra.mxu0 0.0
    %3150 = vmatpush.xpose.msra.mxu0 0.0
    %3151 = vmatpush.xpose.msra.mxu0 0.0
    %3152 = vmatpush.xpose.msra.mxu0 0.0
    %3153 = vmatpush.xpose.msra.mxu0 0.0
    %3154 = vmatpush.xpose.msra.mxu0 0.0
    %3155 = vmatpush.xpose.msra.mxu0 0.0
    %3156 = vmatpush.xpose.msra.mxu0 0.0
    %3157 = vmatpush.xpose.msra.mxu0 0.0
    %3158 = vmatpush.xpose.msra.mxu0 0.0
    %3159 = vmatpush.xpose.msra.mxu0 0.0
    %3160 = vmatpush.xpose.msra.mxu0 0.0
    %3161 = vmatpush.xpose.msra.mxu0 0.0
    %v3162 = vand.u32 %v3119, 4294901760
    %v3163 = vsub.f32 %v3119, %v3162
    %v3164 = vand.u32 %v3163, 4294901760
    %v3165 = vsub.f32 %v3163, %v3164
    %v3166 = vand.u32 %v3165, 4294901760
    %3167 = vmatpush.xpose.msra.mxu0 %v3166
    %v3168 = vand.u32 %v3119, 4294901760
    %3169 = vmatmul.f32.gmra.mxu0 %v3168
    %v3170 = vpop.f32.mrf.mxu0
    %v3171 = vadd.f32 %v3145, %v3170
    %3172 = vdwg.mxu0
    %3173 = vmatpush.xpose.msra.mxu0 0.0
    %3174 = vmatpush.xpose.msra.mxu0 0.0
    %3175 = vmatpush.xpose.msra.mxu0 0.0
    %3176 = vmatpush.xpose.msra.mxu0 0.0
    %3177 = vmatpush.xpose.msra.mxu0 0.0
    %3178 = vmatpush.xpose.msra.mxu0 0.0
    %3179 = vmatpush.xpose.msra.mxu0 0.0
    %3180 = vmatpush.xpose.msra.mxu0 0.0
    %3181 = vmatpush.xpose.msra.mxu0 0.0
    %3182 = vmatpush.xpose.msra.mxu0 0.0
    %3183 = vmatpush.xpose.msra.mxu0 0.0
    %3184 = vmatpush.xpose.msra.mxu0 0.0
    %3185 = vmatpush.xpose.msra.mxu0 0.0
    %3186 = vmatpush.xpose.msra.mxu0 0.0
    %3187 = vmatpush.xpose.msra.mxu0 0.0
    %v3188 = vand.u32 %v3119, 4294901760
    %v3189 = vsub.f32 %v3119, %v3188
    %3190 = vmatpush.xpose.msra.mxu0 %v3189
    %v3191 = vand.u32 %v3119, 4294901760
    %v3192 = vsub.f32 %v3119, %v3191
    %3193 = vmatmul.f32.gmra.mxu0 %v3192
    %v3194 = vpop.f32.mrf.mxu0
    %v3195 = vadd.f32 %v3171, %v3194
    %3196 = vdwg.mxu0
    %3197 = vmatpush.xpose.msra.mxu0 0.0
    %3198 = vmatpush.xpose.msra.mxu0 0.0
    %3199 = vmatpush.xpose.msra.mxu0 0.0
    %3200 = vmatpush.xpose.msra.mxu0 0.0
    %3201 = vmatpush.xpose.msra.mxu0 0.0
    %3202 = vmatpush.xpose.msra.mxu0 0.0
    %3203 = vmatpush.xpose.msra.mxu0 0.0
    %3204 = vmatpush.xpose.msra.mxu0 0.0
    %3205 = vmatpush.xpose.msra.mxu0 0.0
    %3206 = vmatpush.xpose.msra.mxu0 0.0
    %3207 = vmatpush.xpose.msra.mxu0 0.0
    %3208 = vmatpush.xpose.msra.mxu0 0.0
    %3209 = vmatpush.xpose.msra.mxu0 0.0
    %3210 = vmatpush.xpose.msra.mxu0 0.0
    %3211 = vmatpush.xpose.msra.mxu0 0.0
    %v3212 = vand.u32 %v3119, 4294901760
    %3213 = vmatpush.xpose.msra.mxu0 %v3212
    %v3214 = vand.u32 %v3119, 4294901760
    %v3215 = vsub.f32 %v3119, %v3214
    %v3216 = vand.u32 %v3215, 4294901760
    %3217 = vmatmul.f32.gmra.mxu0 %v3216
    %v3218 = vpop.f32.mrf.mxu0
    %v3219 = vadd.f32 %v3195, %v3218
    %3220 = vdwg.mxu0
    %3221 = vmatpush.xpose.msra.mxu0 0.0
    %3222 = vmatpush.xpose.msra.mxu0 0.0
    %3223 = vmatpush.xpose.msra.mxu0 0.0
    %3224 = vmatpush.xpose.msra.mxu0 0.0
    %3225 = vmatpush.xpose.msra.mxu0 0.0
    %3226 = vmatpush.xpose.msra.mxu0 0.0
    %3227 = vmatpush.xpose.msra.mxu0 0.0
    %3228 = vmatpush.xpose.msra.mxu0 0.0
    %3229 = vmatpush.xpose.msra.mxu0 0.0
    %3230 = vmatpush.xpose.msra.mxu0 0.0
    %3231 = vmatpush.xpose.msra.mxu0 0.0
    %3232 = vmatpush.xpose.msra.mxu0 0.0
    %3233 = vmatpush.xpose.msra.mxu0 0.0
    %3234 = vmatpush.xpose.msra.mxu0 0.0
    %3235 = vmatpush.xpose.msra.mxu0 0.0
    %v3236 = vand.u32 %v3119, 4294901760
    %v3237 = vsub.f32 %v3119, %v3236
    %v3238 = vand.u32 %v3237, 4294901760
    %3239 = vmatpush.xpose.msra.mxu0 %v3238
    %v3240 = vand.u32 %v3119, 4294901760
    %3241 = vmatmul.f32.gmra.mxu0 %v3240
    %v3242 = vpop.f32.mrf.mxu0
    %v3243 = vadd.f32 %v3219, %v3242
    %3244 = vdwg.mxu0
    %3245 = vmatpush.xpose.msra.mxu0 0.0
    %3246 = vmatpush.xpose.msra.mxu0 0.0
    %3247 = vmatpush.xpose.msra.mxu0 0.0
    %3248 = vmatpush.xpose.msra.mxu0 0.0
    %3249 = vmatpush.xpose.msra.mxu0 0.0
    %3250 = vmatpush.xpose.msra.mxu0 0.0
    %3251 = vmatpush.xpose.msra.mxu0 0.0
    %3252 = vmatpush.xpose.msra.mxu0 0.0
    %3253 = vmatpush.xpose.msra.mxu0 0.0
    %3254 = vmatpush.xpose.msra.mxu0 0.0
    %3255 = vmatpush.xpose.msra.mxu0 0.0
    %3256 = vmatpush.xpose.msra.mxu0 0.0
    %3257 = vmatpush.xpose.msra.mxu0 0.0
    %3258 = vmatpush.xpose.msra.mxu0 0.0
    %3259 = vmatpush.xpose.msra.mxu0 0.0
    %v3260 = vand.u32 %v3119, 4294901760
    %3261 = vmatpush.xpose.msra.mxu0 %v3260
    %v3262 = vand.u32 %v3119, 4294901760
    %3263 = vmatmul.f32.gmra.mxu0 %v3262
    %v3264 = vpop.f32.mrf.mxu0
    %v3265 = vadd.f32 %v3243, %v3264
    %3266 = vdwg.mxu0
    %v3268 = vsel %vm70, %v2222, 0
    %3270 = vmatpush.xpose.msra.mxu0 0.0
    %3271 = vmatpush.xpose.msra.mxu0 0.0
    %3272 = vmatpush.xpose.msra.mxu0 0.0
    %3273 = vmatpush.xpose.msra.mxu0 0.0
    %3274 = vmatpush.xpose.msra.mxu0 0.0
    %3275 = vmatpush.xpose.msra.mxu0 0.0
    %3276 = vmatpush.xpose.msra.mxu0 0.0
    %3277 = vmatpush.xpose.msra.mxu0 0.0
    %3278 = vmatpush.xpose.msra.mxu0 0.0
    %3279 = vmatpush.xpose.msra.mxu0 0.0
    %3280 = vmatpush.xpose.msra.mxu0 0.0
    %3281 = vmatpush.xpose.msra.mxu0 0.0
    %3282 = vmatpush.xpose.msra.mxu0 0.0
    %3283 = vmatpush.xpose.msra.mxu0 0.0
    %3284 = vmatpush.xpose.msra.mxu0 0.0
    %v3285 = vand.u32 %v3268, 4294901760
    %3286 = vmatpush.xpose.msra.mxu0 %v3285
    %v3287 = vand.u32 %v3268, 4294901760
    %v3288 = vsub.f32 %v3268, %v3287
    %v3289 = vand.u32 %v3288, 4294901760
    %v3290 = vsub.f32 %v3288, %v3289
    %v3291 = vand.u32 %v3290, 4294901760
    %3292 = vmatmul.f32.gmra.mxu0 %v3291
    %v3293 = vpop.f32.mrf.mxu0
    %v3294 = vadd.f32 0.0, %v3293
    %3295 = vdwg.mxu0
    %3296 = vmatpush.xpose.msra.mxu0 0.0
    %3297 = vmatpush.xpose.msra.mxu0 0.0
    %3298 = vmatpush.xpose.msra.mxu0 0.0
    %3299 = vmatpush.xpose.msra.mxu0 0.0
    %3300 = vmatpush.xpose.msra.mxu0 0.0
    %3301 = vmatpush.xpose.msra.mxu0 0.0
    %3302 = vmatpush.xpose.msra.mxu0 0.0
    %3303 = vmatpush.xpose.msra.mxu0 0.0
    %3304 = vmatpush.xpose.msra.mxu0 0.0
    %3305 = vmatpush.xpose.msra.mxu0 0.0
    %3306 = vmatpush.xpose.msra.mxu0 0.0
    %3307 = vmatpush.xpose.msra.mxu0 0.0
    %3308 = vmatpush.xpose.msra.mxu0 0.0
    %3309 = vmatpush.xpose.msra.mxu0 0.0
    %3310 = vmatpush.xpose.msra.mxu0 0.0
    %v3311 = vand.u32 %v3268, 4294901760
    %v3312 = vsub.f32 %v3268, %v3311
    %v3313 = vand.u32 %v3312, 4294901760
    %v3314 = vsub.f32 %v3312, %v3313
    %v3315 = vand.u32 %v3314, 4294901760
    %3316 = vmatpush.xpose.msra.mxu0 %v3315
    %v3317 = vand.u32 %v3268, 4294901760
    %3318 = vmatmul.f32.gmra.mxu0 %v3317
    %v3319 = vpop.f32.mrf.mxu0
    %v3320 = vadd.f32 %v3294, %v3319
    %3321 = vdwg.mxu0
    %3322 = vmatpush.xpose.msra.mxu0 0.0
    %3323 = vmatpush.xpose.msra.mxu0 0.0
    %3324 = vmatpush.xpose.msra.mxu0 0.0
    %3325 = vmatpush.xpose.msra.mxu0 0.0
    %3326 = vmatpush.xpose.msra.mxu0 0.0
    %3327 = vmatpush.xpose.msra.mxu0 0.0
    %3328 = vmatpush.xpose.msra.mxu0 0.0
    %3329 = vmatpush.xpose.msra.mxu0 0.0
    %3330 = vmatpush.xpose.msra.mxu0 0.0
    %3331 = vmatpush.xpose.msra.mxu0 0.0
    %3332 = vmatpush.xpose.msra.mxu0 0.0
    %3333 = vmatpush.xpose.msra.mxu0 0.0
    %3334 = vmatpush.xpose.msra.mxu0 0.0
    %3335 = vmatpush.xpose.msra.mxu0 0.0
    %3336 = vmatpush.xpose.msra.mxu0 0.0
    %v3337 = vand.u32 %v3268, 4294901760
    %v3338 = vsub.f32 %v3268, %v3337
    %3339 = vmatpush.xpose.msra.mxu0 %v3338
    %v3340 = vand.u32 %v3268, 4294901760
    %v3341 = vsub.f32 %v3268, %v3340
    %3342 = vmatmul.f32.gmra.mxu0 %v3341
    %v3343 = vpop.f32.mrf.mxu0
    %v3344 = vadd.f32 %v3320, %v3343
    %3345 = vdwg.mxu0
    %3346 = vmatpush.xpose.msra.mxu0 0.0
    %3347 = vmatpush.xpose.msra.mxu0 0.0
    %3348 = vmatpush.xpose.msra.mxu0 0.0
    %3349 = vmatpush.xpose.msra.mxu0 0.0
    %3350 = vmatpush.xpose.msra.mxu0 0.0
    %3351 = vmatpush.xpose.msra.mxu0 0.0
    %3352 = vmatpush.xpose.msra.mxu0 0.0
    %3353 = vmatpush.xpose.msra.mxu0 0.0
    %3354 = vmatpush.xpose.msra.mxu0 0.0
    %3355 = vmatpush.xpose.msra.mxu0 0.0
    %3356 = vmatpush.xpose.msra.mxu0 0.0
    %3357 = vmatpush.xpose.msra.mxu0 0.0
    %3358 = vmatpush.xpose.msra.mxu0 0.0
    %3359 = vmatpush.xpose.msra.mxu0 0.0
    %3360 = vmatpush.xpose.msra.mxu0 0.0
    %v3361 = vand.u32 %v3268, 4294901760
    %3362 = vmatpush.xpose.msra.mxu0 %v3361
    %v3363 = vand.u32 %v3268, 4294901760
    %v3364 = vsub.f32 %v3268, %v3363
    %v3365 = vand.u32 %v3364, 4294901760
    %3366 = vmatmul.f32.gmra.mxu0 %v3365
    %v3367 = vpop.f32.mrf.mxu0
    %v3368 = vadd.f32 %v3344, %v3367
    %3369 = vdwg.mxu0
    %3370 = vmatpush.xpose.msra.mxu0 0.0
    %3371 = vmatpush.xpose.msra.mxu0 0.0
    %3372 = vmatpush.xpose.msra.mxu0 0.0
    %3373 = vmatpush.xpose.msra.mxu0 0.0
    %3374 = vmatpush.xpose.msra.mxu0 0.0
    %3375 = vmatpush.xpose.msra.mxu0 0.0
    %3376 = vmatpush.xpose.msra.mxu0 0.0
    %3377 = vmatpush.xpose.msra.mxu0 0.0
    %3378 = vmatpush.xpose.msra.mxu0 0.0
    %3379 = vmatpush.xpose.msra.mxu0 0.0
    %3380 = vmatpush.xpose.msra.mxu0 0.0
    %3381 = vmatpush.xpose.msra.mxu0 0.0
    %3382 = vmatpush.xpose.msra.mxu0 0.0
    %3383 = vmatpush.xpose.msra.mxu0 0.0
    %3384 = vmatpush.xpose.msra.mxu0 0.0
    %v3385 = vand.u32 %v3268, 4294901760
    %v3386 = vsub.f32 %v3268, %v3385
    %v3387 = vand.u32 %v3386, 4294901760
    %3388 = vmatpush.xpose.msra.mxu0 %v3387
    %v3389 = vand.u32 %v3268, 4294901760
    %3390 = vmatmul.f32.gmra.mxu0 %v3389
    %v3391 = vpop.f32.mrf.mxu0
    %v3392 = vadd.f32 %v3368, %v3391
    %3393 = vdwg.mxu0
    %3394 = vmatpush.xpose.msra.mxu0 0.0
    %3395 = vmatpush.xpose.msra.mxu0 0.0
    %3396 = vmatpush.xpose.msra.mxu0 0.0
    %3397 = vmatpush.xpose.msra.mxu0 0.0
    %3398 = vmatpush.xpose.msra.mxu0 0.0
    %3399 = vmatpush.xpose.msra.mxu0 0.0
    %3400 = vmatpush.xpose.msra.mxu0 0.0
    %3401 = vmatpush.xpose.msra.mxu0 0.0
    %3402 = vmatpush.xpose.msra.mxu0 0.0
    %3403 = vmatpush.xpose.msra.mxu0 0.0
    %3404 = vmatpush.xpose.msra.mxu0 0.0
    %3405 = vmatpush.xpose.msra.mxu0 0.0
    %3406 = vmatpush.xpose.msra.mxu0 0.0
    %3407 = vmatpush.xpose.msra.mxu0 0.0
    %3408 = vmatpush.xpose.msra.mxu0 0.0
    %v3409 = vand.u32 %v3268, 4294901760
    %3410 = vmatpush.xpose.msra.mxu0 %v3409
    %v3411 = vand.u32 %v3268, 4294901760
    %3412 = vmatmul.f32.gmra.mxu0 %v3411
    %v3413 = vpop.f32.mrf.mxu0
    %v3414 = vadd.f32 %v3392, %v3413
    %3415 = vdwg.mxu0
    %v3417 = vsel %vm70, %v2371, 0
    %3419 = vmatpush.xpose.msra.mxu0 0.0
    %3420 = vmatpush.xpose.msra.mxu0 0.0
    %3421 = vmatpush.xpose.msra.mxu0 0.0
    %3422 = vmatpush.xpose.msra.mxu0 0.0
    %3423 = vmatpush.xpose.msra.mxu0 0.0
    %3424 = vmatpush.xpose.msra.mxu0 0.0
    %3425 = vmatpush.xpose.msra.mxu0 0.0
    %3426 = vmatpush.xpose.msra.mxu0 0.0
    %3427 = vmatpush.xpose.msra.mxu0 0.0
    %3428 = vmatpush.xpose.msra.mxu0 0.0
    %3429 = vmatpush.xpose.msra.mxu0 0.0
    %3430 = vmatpush.xpose.msra.mxu0 0.0
    %3431 = vmatpush.xpose.msra.mxu0 0.0
    %3432 = vmatpush.xpose.msra.mxu0 0.0
    %3433 = vmatpush.xpose.msra.mxu0 0.0
    %v3434 = vand.u32 %v3417, 4294901760
    %3435 = vmatpush.xpose.msra.mxu0 %v3434
    %v3436 = vand.u32 %v3417, 4294901760
    %v3437 = vsub.f32 %v3417, %v3436
    %v3438 = vand.u32 %v3437, 4294901760
    %v3439 = vsub.f32 %v3437, %v3438
    %v3440 = vand.u32 %v3439, 4294901760
    %3441 = vmatmul.f32.gmra.mxu0 %v3440
    %v3442 = vpop.f32.mrf.mxu0
    %v3443 = vadd.f32 0.0, %v3442
    %3444 = vdwg.mxu0
    %3445 = vmatpush.xpose.msra.mxu0 0.0
    %3446 = vmatpush.xpose.msra.mxu0 0.0
    %3447 = vmatpush.xpose.msra.mxu0 0.0
    %3448 = vmatpush.xpose.msra.mxu0 0.0
    %3449 = vmatpush.xpose.msra.mxu0 0.0
    %3450 = vmatpush.xpose.msra.mxu0 0.0
    %3451 = vmatpush.xpose.msra.mxu0 0.0
    %3452 = vmatpush.xpose.msra.mxu0 0.0
    %3453 = vmatpush.xpose.msra.mxu0 0.0
    %3454 = vmatpush.xpose.msra.mxu0 0.0
    %3455 = vmatpush.xpose.msra.mxu0 0.0
    %3456 = vmatpush.xpose.msra.mxu0 0.0
    %3457 = vmatpush.xpose.msra.mxu0 0.0
    %3458 = vmatpush.xpose.msra.mxu0 0.0
    %3459 = vmatpush.xpose.msra.mxu0 0.0
    %v3460 = vand.u32 %v3417, 4294901760
    %v3461 = vsub.f32 %v3417, %v3460
    %v3462 = vand.u32 %v3461, 4294901760
    %v3463 = vsub.f32 %v3461, %v3462
    %v3464 = vand.u32 %v3463, 4294901760
    %3465 = vmatpush.xpose.msra.mxu0 %v3464
    %v3466 = vand.u32 %v3417, 4294901760
    %3467 = vmatmul.f32.gmra.mxu0 %v3466
    %v3468 = vpop.f32.mrf.mxu0
    %v3469 = vadd.f32 %v3443, %v3468
    %3470 = vdwg.mxu0
    %3471 = vmatpush.xpose.msra.mxu0 0.0
    %3472 = vmatpush.xpose.msra.mxu0 0.0
    %3473 = vmatpush.xpose.msra.mxu0 0.0
    %3474 = vmatpush.xpose.msra.mxu0 0.0
    %3475 = vmatpush.xpose.msra.mxu0 0.0
    %3476 = vmatpush.xpose.msra.mxu0 0.0
    %3477 = vmatpush.xpose.msra.mxu0 0.0
    %3478 = vmatpush.xpose.msra.mxu0 0.0
    %3479 = vmatpush.xpose.msra.mxu0 0.0
    %3480 = vmatpush.xpose.msra.mxu0 0.0
    %3481 = vmatpush.xpose.msra.mxu0 0.0
    %3482 = vmatpush.xpose.msra.mxu0 0.0
    %3483 = vmatpush.xpose.msra.mxu0 0.0
    %3484 = vmatpush.xpose.msra.mxu0 0.0
    %3485 = vmatpush.xpose.msra.mxu0 0.0
    %v3486 = vand.u32 %v3417, 4294901760
    %v3487 = vsub.f32 %v3417, %v3486
    %3488 = vmatpush.xpose.msra.mxu0 %v3487
    %v3489 = vand.u32 %v3417, 4294901760
    %v3490 = vsub.f32 %v3417, %v3489
    %3491 = vmatmul.f32.gmra.mxu0 %v3490
    %v3492 = vpop.f32.mrf.mxu0
    %v3493 = vadd.f32 %v3469, %v3492
    %3494 = vdwg.mxu0
    %3495 = vmatpush.xpose.msra.mxu0 0.0
    %3496 = vmatpush.xpose.msra.mxu0 0.0
    %3497 = vmatpush.xpose.msra.mxu0 0.0
    %3498 = vmatpush.xpose.msra.mxu0 0.0
    %3499 = vmatpush.xpose.msra.mxu0 0.0
    %3500 = vmatpush.xpose.msra.mxu0 0.0
    %3501 = vmatpush.xpose.msra.mxu0 0.0
    %3502 = vmatpush.xpose.msra.mxu0 0.0
    %3503 = vmatpush.xpose.msra.mxu0 0.0
    %3504 = vmatpush.xpose.msra.mxu0 0.0
    %3505 = vmatpush.xpose.msra.mxu0 0.0
    %3506 = vmatpush.xpose.msra.mxu0 0.0
    %3507 = vmatpush.xpose.msra.mxu0 0.0
    %3508 = vmatpush.xpose.msra.mxu0 0.0
    %3509 = vmatpush.xpose.msra.mxu0 0.0
    %v3510 = vand.u32 %v3417, 4294901760
    %3511 = vmatpush.xpose.msra.mxu0 %v3510
    %v3512 = vand.u32 %v3417, 4294901760
    %v3513 = vsub.f32 %v3417, %v3512
    %v3514 = vand.u32 %v3513, 4294901760
    %3515 = vmatmul.f32.gmra.mxu0 %v3514
    %v3516 = vpop.f32.mrf.mxu0
    %v3517 = vadd.f32 %v3493, %v3516
    %3518 = vdwg.mxu0
    %3519 = vmatpush.xpose.msra.mxu0 0.0
    %3520 = vmatpush.xpose.msra.mxu0 0.0
    %3521 = vmatpush.xpose.msra.mxu0 0.0
    %3522 = vmatpush.xpose.msra.mxu0 0.0
    %3523 = vmatpush.xpose.msra.mxu0 0.0
    %3524 = vmatpush.xpose.msra.mxu0 0.0
    %3525 = vmatpush.xpose.msra.mxu0 0.0
    %3526 = vmatpush.xpose.msra.mxu0 0.0
    %3527 = vmatpush.xpose.msra.mxu0 0.0
    %3528 = vmatpush.xpose.msra.mxu0 0.0
    %3529 = vmatpush.xpose.msra.mxu0 0.0
    %3530 = vmatpush.xpose.msra.mxu0 0.0
    %3531 = vmatpush.xpose.msra.mxu0 0.0
    %3532 = vmatpush.xpose.msra.mxu0 0.0
    %3533 = vmatpush.xpose.msra.mxu0 0.0
    %v3534 = vand.u32 %v3417, 4294901760
    %v3535 = vsub.f32 %v3417, %v3534
    %v3536 = vand.u32 %v3535, 4294901760
    %3537 = vmatpush.xpose.msra.mxu0 %v3536
    %v3538 = vand.u32 %v3417, 4294901760
    %3539 = vmatmul.f32.gmra.mxu0 %v3538
    %v3540 = vpop.f32.mrf.mxu0
    %v3541 = vadd.f32 %v3517, %v3540
    %3542 = vdwg.mxu0
    %3543 = vmatpush.xpose.msra.mxu0 0.0
    %3544 = vmatpush.xpose.msra.mxu0 0.0
    %3545 = vmatpush.xpose.msra.mxu0 0.0
    %3546 = vmatpush.xpose.msra.mxu0 0.0
    %3547 = vmatpush.xpose.msra.mxu0 0.0
    %3548 = vmatpush.xpose.msra.mxu0 0.0
    %3549 = vmatpush.xpose.msra.mxu0 0.0
    %3550 = vmatpush.xpose.msra.mxu0 0.0
    %3551 = vmatpush.xpose.msra.mxu0 0.0
    %3552 = vmatpush.xpose.msra.mxu0 0.0
    %3553 = vmatpush.xpose.msra.mxu0 0.0
    %3554 = vmatpush.xpose.msra.mxu0 0.0
    %3555 = vmatpush.xpose.msra.mxu0 0.0
    %3556 = vmatpush.xpose.msra.mxu0 0.0
    %3557 = vmatpush.xpose.msra.mxu0 0.0
    %v3558 = vand.u32 %v3417, 4294901760
    %3559 = vmatpush.xpose.msra.mxu0 %v3558
    %v3560 = vand.u32 %v3417, 4294901760
    %3561 = vmatmul.f32.gmra.mxu0 %v3560
    %v3562 = vpop.f32.mrf.mxu0
    %v3563 = vadd.f32 %v3541, %v3562
    %3564 = vdwg.mxu0
    %v3566 = vsel %vm70, %v2520, 0
    %3568 = vmatpush.xpose.msra.mxu0 0.0
    %3569 = vmatpush.xpose.msra.mxu0 0.0
    %3570 = vmatpush.xpose.msra.mxu0 0.0
    %3571 = vmatpush.xpose.msra.mxu0 0.0
    %3572 = vmatpush.xpose.msra.mxu0 0.0
    %3573 = vmatpush.xpose.msra.mxu0 0.0
    %3574 = vmatpush.xpose.msra.mxu0 0.0
    %3575 = vmatpush.xpose.msra.mxu0 0.0
    %3576 = vmatpush.xpose.msra.mxu0 0.0
    %3577 = vmatpush.xpose.msra.mxu0 0.0
    %3578 = vmatpush.xpose.msra.mxu0 0.0
    %3579 = vmatpush.xpose.msra.mxu0 0.0
    %3580 = vmatpush.xpose.msra.mxu0 0.0
    %3581 = vmatpush.xpose.msra.mxu0 0.0
    %3582 = vmatpush.xpose.msra.mxu0 0.0
    %v3583 = vand.u32 %v3566, 4294901760
    %3584 = vmatpush.xpose.msra.mxu0 %v3583
    %v3585 = vand.u32 %v3566, 4294901760
    %v3586 = vsub.f32 %v3566, %v3585
    %v3587 = vand.u32 %v3586, 4294901760
    %v3588 = vsub.f32 %v3586, %v3587
    %v3589 = vand.u32 %v3588, 4294901760
    %3590 = vmatmul.f32.gmra.mxu0 %v3589
    %v3591 = vpop.f32.mrf.mxu0
    %v3592 = vadd.f32 0.0, %v3591
    %3593 = vdwg.mxu0
    %3594 = vmatpush.xpose.msra.mxu0 0.0
    %3595 = vmatpush.xpose.msra.mxu0 0.0
    %3596 = vmatpush.xpose.msra.mxu0 0.0
    %3597 = vmatpush.xpose.msra.mxu0 0.0
    %3598 = vmatpush.xpose.msra.mxu0 0.0
    %3599 = vmatpush.xpose.msra.mxu0 0.0
    %3600 = vmatpush.xpose.msra.mxu0 0.0
    %3601 = vmatpush.xpose.msra.mxu0 0.0
    %3602 = vmatpush.xpose.msra.mxu0 0.0
    %3603 = vmatpush.xpose.msra.mxu0 0.0
    %3604 = vmatpush.xpose.msra.mxu0 0.0
    %3605 = vmatpush.xpose.msra.mxu0 0.0
    %3606 = vmatpush.xpose.msra.mxu0 0.0
    %3607 = vmatpush.xpose.msra.mxu0 0.0
    %3608 = vmatpush.xpose.msra.mxu0 0.0
    %v3609 = vand.u32 %v3566, 4294901760
    %v3610 = vsub.f32 %v3566, %v3609
    %v3611 = vand.u32 %v3610, 4294901760
    %v3612 = vsub.f32 %v3610, %v3611
    %v3613 = vand.u32 %v3612, 4294901760
    %3614 = vmatpush.xpose.msra.mxu0 %v3613
    %v3615 = vand.u32 %v3566, 4294901760
    %3616 = vmatmul.f32.gmra.mxu0 %v3615
    %v3617 = vpop.f32.mrf.mxu0
    %v3618 = vadd.f32 %v3592, %v3617
    %3619 = vdwg.mxu0
    %3620 = vmatpush.xpose.msra.mxu0 0.0
    %3621 = vmatpush.xpose.msra.mxu0 0.0
    %3622 = vmatpush.xpose.msra.mxu0 0.0
    %3623 = vmatpush.xpose.msra.mxu0 0.0
    %3624 = vmatpush.xpose.msra.mxu0 0.0
    %3625 = vmatpush.xpose.msra.mxu0 0.0
    %3626 = vmatpush.xpose.msra.mxu0 0.0
    %3627 = vmatpush.xpose.msra.mxu0 0.0
    %3628 = vmatpush.xpose.msra.mxu0 0.0
    %3629 = vmatpush.xpose.msra.mxu0 0.0
    %3630 = vmatpush.xpose.msra.mxu0 0.0
    %3631 = vmatpush.xpose.msra.mxu0 0.0
    %3632 = vmatpush.xpose.msra.mxu0 0.0
    %3633 = vmatpush.xpose.msra.mxu0 0.0
    %3634 = vmatpush.xpose.msra.mxu0 0.0
    %v3635 = vand.u32 %v3566, 4294901760
    %v3636 = vsub.f32 %v3566, %v3635
    %3637 = vmatpush.xpose.msra.mxu0 %v3636
    %v3638 = vand.u32 %v3566, 4294901760
    %v3639 = vsub.f32 %v3566, %v3638
    %3640 = vmatmul.f32.gmra.mxu0 %v3639
    %v3641 = vpop.f32.mrf.mxu0
    %v3642 = vadd.f32 %v3618, %v3641
    %3643 = vdwg.mxu0
    %3644 = vmatpush.xpose.msra.mxu0 0.0
    %3645 = vmatpush.xpose.msra.mxu0 0.0
    %3646 = vmatpush.xpose.msra.mxu0 0.0
    %3647 = vmatpush.xpose.msra.mxu0 0.0
    %3648 = vmatpush.xpose.msra.mxu0 0.0
    %3649 = vmatpush.xpose.msra.mxu0 0.0
    %3650 = vmatpush.xpose.msra.mxu0 0.0
    %3651 = vmatpush.xpose.msra.mxu0 0.0
    %3652 = vmatpush.xpose.msra.mxu0 0.0
    %3653 = vmatpush.xpose.msra.mxu0 0.0
    %3654 = vmatpush.xpose.msra.mxu0 0.0
    %3655 = vmatpush.xpose.msra.mxu0 0.0
    %3656 = vmatpush.xpose.msra.mxu0 0.0
    %3657 = vmatpush.xpose.msra.mxu0 0.0
    %3658 = vmatpush.xpose.msra.mxu0 0.0
    %v3659 = vand.u32 %v3566, 4294901760
    %3660 = vmatpush.xpose.msra.mxu0 %v3659
    %v3661 = vand.u32 %v3566, 4294901760
    %v3662 = vsub.f32 %v3566, %v3661
    %v3663 = vand.u32 %v3662, 4294901760
    %3664 = vmatmul.f32.gmra.mxu0 %v3663
    %v3665 = vpop.f32.mrf.mxu0
    %v3666 = vadd.f32 %v3642, %v3665
    %3667 = vdwg.mxu0
    %3668 = vmatpush.xpose.msra.mxu0 0.0
    %3669 = vmatpush.xpose.msra.mxu0 0.0
    %3670 = vmatpush.xpose.msra.mxu0 0.0
    %3671 = vmatpush.xpose.msra.mxu0 0.0
    %3672 = vmatpush.xpose.msra.mxu0 0.0
    %3673 = vmatpush.xpose.msra.mxu0 0.0
    %3674 = vmatpush.xpose.msra.mxu0 0.0
    %3675 = vmatpush.xpose.msra.mxu0 0.0
    %3676 = vmatpush.xpose.msra.mxu0 0.0
    %3677 = vmatpush.xpose.msra.mxu0 0.0
    %3678 = vmatpush.xpose.msra.mxu0 0.0
    %3679 = vmatpush.xpose.msra.mxu0 0.0
    %3680 = vmatpush.xpose.msra.mxu0 0.0
    %3681 = vmatpush.xpose.msra.mxu0 0.0
    %3682 = vmatpush.xpose.msra.mxu0 0.0
    %v3683 = vand.u32 %v3566, 4294901760
    %v3684 = vsub.f32 %v3566, %v3683
    %v3685 = vand.u32 %v3684, 4294901760
    %3686 = vmatpush.xpose.msra.mxu0 %v3685
    %v3687 = vand.u32 %v3566, 4294901760
    %3688 = vmatmul.f32.gmra.mxu0 %v3687
    %v3689 = vpop.f32.mrf.mxu0
    %v3690 = vadd.f32 %v3666, %v3689
    %3691 = vdwg.mxu0
    %3692 = vmatpush.xpose.msra.mxu0 0.0
    %3693 = vmatpush.xpose.msra.mxu0 0.0
    %3694 = vmatpush.xpose.msra.mxu0 0.0
    %3695 = vmatpush.xpose.msra.mxu0 0.0
    %3696 = vmatpush.xpose.msra.mxu0 0.0
    %3697 = vmatpush.xpose.msra.mxu0 0.0
    %3698 = vmatpush.xpose.msra.mxu0 0.0
    %3699 = vmatpush.xpose.msra.mxu0 0.0
    %3700 = vmatpush.xpose.msra.mxu0 0.0
    %3701 = vmatpush.xpose.msra.mxu0 0.0
    %3702 = vmatpush.xpose.msra.mxu0 0.0
    %3703 = vmatpush.xpose.msra.mxu0 0.0
    %3704 = vmatpush.xpose.msra.mxu0 0.0
    %3705 = vmatpush.xpose.msra.mxu0 0.0
    %3706 = vmatpush.xpose.msra.mxu0 0.0
    %v3707 = vand.u32 %v3566, 4294901760
    %3708 = vmatpush.xpose.msra.mxu0 %v3707
    %v3709 = vand.u32 %v3566, 4294901760
    %3710 = vmatmul.f32.gmra.mxu0 %v3709
    %v3711 = vpop.f32.mrf.mxu0
    %v3712 = vadd.f32 %v3690, %v3711
    %3713 = vdwg.mxu0
    %v3715 = vsel %vm70, %v2669, 0
    %3717 = vmatpush.xpose.msra.mxu0 0.0
    %3718 = vmatpush.xpose.msra.mxu0 0.0
    %3719 = vmatpush.xpose.msra.mxu0 0.0
    %3720 = vmatpush.xpose.msra.mxu0 0.0
    %3721 = vmatpush.xpose.msra.mxu0 0.0
    %3722 = vmatpush.xpose.msra.mxu0 0.0
    %3723 = vmatpush.xpose.msra.mxu0 0.0
    %3724 = vmatpush.xpose.msra.mxu0 0.0
    %3725 = vmatpush.xpose.msra.mxu0 0.0
    %3726 = vmatpush.xpose.msra.mxu0 0.0
    %3727 = vmatpush.xpose.msra.mxu0 0.0
    %3728 = vmatpush.xpose.msra.mxu0 0.0
    %3729 = vmatpush.xpose.msra.mxu0 0.0
    %3730 = vmatpush.xpose.msra.mxu0 0.0
    %3731 = vmatpush.xpose.msra.mxu0 0.0
    %v3732 = vand.u32 %v3715, 4294901760
    %3733 = vmatpush.xpose.msra.mxu0 %v3732
    %v3734 = vand.u32 %v3715, 4294901760
    %v3735 = vsub.f32 %v3715, %v3734
    %v3736 = vand.u32 %v3735, 4294901760
    %v3737 = vsub.f32 %v3735, %v3736
    %v3738 = vand.u32 %v3737, 4294901760
    %3739 = vmatmul.f32.gmra.mxu0 %v3738
    %v3740 = vpop.f32.mrf.mxu0
    %v3741 = vadd.f32 0.0, %v3740
    %3742 = vdwg.mxu0
    %3743 = vmatpush.xpose.msra.mxu0 0.0
    %3744 = vmatpush.xpose.msra.mxu0 0.0
    %3745 = vmatpush.xpose.msra.mxu0 0.0
    %3746 = vmatpush.xpose.msra.mxu0 0.0
    %3747 = vmatpush.xpose.msra.mxu0 0.0
    %3748 = vmatpush.xpose.msra.mxu0 0.0
    %3749 = vmatpush.xpose.msra.mxu0 0.0
    %3750 = vmatpush.xpose.msra.mxu0 0.0
    %3751 = vmatpush.xpose.msra.mxu0 0.0
    %3752 = vmatpush.xpose.msra.mxu0 0.0
    %3753 = vmatpush.xpose.msra.mxu0 0.0
    %3754 = vmatpush.xpose.msra.mxu0 0.0
    %3755 = vmatpush.xpose.msra.mxu0 0.0
    %3756 = vmatpush.xpose.msra.mxu0 0.0
    %3757 = vmatpush.xpose.msra.mxu0 0.0
    %v3758 = vand.u32 %v3715, 4294901760
    %v3759 = vsub.f32 %v3715, %v3758
    %v3760 = vand.u32 %v3759, 4294901760
    %v3761 = vsub.f32 %v3759, %v3760
    %v3762 = vand.u32 %v3761, 4294901760
    %3763 = vmatpush.xpose.msra.mxu0 %v3762
    %v3764 = vand.u32 %v3715, 4294901760
    %3765 = vmatmul.f32.gmra.mxu0 %v3764
    %v3766 = vpop.f32.mrf.mxu0
    %v3767 = vadd.f32 %v3741, %v3766
    %3768 = vdwg.mxu0
    %3769 = vmatpush.xpose.msra.mxu0 0.0
    %3770 = vmatpush.xpose.msra.mxu0 0.0
    %3771 = vmatpush.xpose.msra.mxu0 0.0
    %3772 = vmatpush.xpose.msra.mxu0 0.0
    %3773 = vmatpush.xpose.msra.mxu0 0.0
    %3774 = vmatpush.xpose.msra.mxu0 0.0
    %3775 = vmatpush.xpose.msra.mxu0 0.0
    %3776 = vmatpush.xpose.msra.mxu0 0.0
    %3777 = vmatpush.xpose.msra.mxu0 0.0
    %3778 = vmatpush.xpose.msra.mxu0 0.0
    %3779 = vmatpush.xpose.msra.mxu0 0.0
    %3780 = vmatpush.xpose.msra.mxu0 0.0
    %3781 = vmatpush.xpose.msra.mxu0 0.0
    %3782 = vmatpush.xpose.msra.mxu0 0.0
    %3783 = vmatpush.xpose.msra.mxu0 0.0
    %v3784 = vand.u32 %v3715, 4294901760
    %v3785 = vsub.f32 %v3715, %v3784
    %3786 = vmatpush.xpose.msra.mxu0 %v3785
    %v3787 = vand.u32 %v3715, 4294901760
    %v3788 = vsub.f32 %v3715, %v3787
    %3789 = vmatmul.f32.gmra.mxu0 %v3788
    %v3790 = vpop.f32.mrf.mxu0
    %v3791 = vadd.f32 %v3767, %v3790
    %3792 = vdwg.mxu0
    %3793 = vmatpush.xpose.msra.mxu0 0.0
    %3794 = vmatpush.xpose.msra.mxu0 0.0
    %3795 = vmatpush.xpose.msra.mxu0 0.0
    %3796 = vmatpush.xpose.msra.mxu0 0.0
    %3797 = vmatpush.xpose.msra.mxu0 0.0
    %3798 = vmatpush.xpose.msra.mxu0 0.0
    %3799 = vmatpush.xpose.msra.mxu0 0.0
    %3800 = vmatpush.xpose.msra.mxu0 0.0
    %3801 = vmatpush.xpose.msra.mxu0 0.0
    %3802 = vmatpush.xpose.msra.mxu0 0.0
    %3803 = vmatpush.xpose.msra.mxu0 0.0
    %3804 = vmatpush.xpose.msra.mxu0 0.0
    %3805 = vmatpush.xpose.msra.mxu0 0.0
    %3806 = vmatpush.xpose.msra.mxu0 0.0
    %3807 = vmatpush.xpose.msra.mxu0 0.0
    %v3808 = vand.u32 %v3715, 4294901760
    %3809 = vmatpush.xpose.msra.mxu0 %v3808
    %v3810 = vand.u32 %v3715, 4294901760
    %v3811 = vsub.f32 %v3715, %v3810
    %v3812 = vand.u32 %v3811, 4294901760
    %3813 = vmatmul.f32.gmra.mxu0 %v3812
    %v3814 = vpop.f32.mrf.mxu0
    %v3815 = vadd.f32 %v3791, %v3814
    %3816 = vdwg.mxu0
    %3817 = vmatpush.xpose.msra.mxu0 0.0
    %3818 = vmatpush.xpose.msra.mxu0 0.0
    %3819 = vmatpush.xpose.msra.mxu0 0.0
    %3820 = vmatpush.xpose.msra.mxu0 0.0
    %3821 = vmatpush.xpose.msra.mxu0 0.0
    %3822 = vmatpush.xpose.msra.mxu0 0.0
    %3823 = vmatpush.xpose.msra.mxu0 0.0
    %3824 = vmatpush.xpose.msra.mxu0 0.0
    %3825 = vmatpush.xpose.msra.mxu0 0.0
    %3826 = vmatpush.xpose.msra.mxu0 0.0
    %3827 = vmatpush.xpose.msra.mxu0 0.0
    %3828 = vmatpush.xpose.msra.mxu0 0.0
    %3829 = vmatpush.xpose.msra.mxu0 0.0
    %3830 = vmatpush.xpose.msra.mxu0 0.0
    %3831 = vmatpush.xpose.msra.mxu0 0.0
    %v3832 = vand.u32 %v3715, 4294901760
    %v3833 = vsub.f32 %v3715, %v3832
    %v3834 = vand.u32 %v3833, 4294901760
    %3835 = vmatpush.xpose.msra.mxu0 %v3834
    %v3836 = vand.u32 %v3715, 4294901760
    %3837 = vmatmul.f32.gmra.mxu0 %v3836
    %v3838 = vpop.f32.mrf.mxu0
    %v3839 = vadd.f32 %v3815, %v3838
    %3840 = vdwg.mxu0
    %3841 = vmatpush.xpose.msra.mxu0 0.0
    %3842 = vmatpush.xpose.msra.mxu0 0.0
    %3843 = vmatpush.xpose.msra.mxu0 0.0
    %3844 = vmatpush.xpose.msra.mxu0 0.0
    %3845 = vmatpush.xpose.msra.mxu0 0.0
    %3846 = vmatpush.xpose.msra.mxu0 0.0
    %3847 = vmatpush.xpose.msra.mxu0 0.0
    %3848 = vmatpush.xpose.msra.mxu0 0.0
    %3849 = vmatpush.xpose.msra.mxu0 0.0
    %3850 = vmatpush.xpose.msra.mxu0 0.0
    %3851 = vmatpush.xpose.msra.mxu0 0.0
    %3852 = vmatpush.xpose.msra.mxu0 0.0
    %3853 = vmatpush.xpose.msra.mxu0 0.0
    %3854 = vmatpush.xpose.msra.mxu0 0.0
    %3855 = vmatpush.xpose.msra.mxu0 0.0
    %v3856 = vand.u32 %v3715, 4294901760
    %3857 = vmatpush.xpose.msra.mxu0 %v3856
    %v3858 = vand.u32 %v3715, 4294901760
    %3859 = vmatmul.f32.gmra.mxu0 %v3858
    %v3860 = vpop.f32.mrf.mxu0
    %v3861 = vadd.f32 %v3839, %v3860
    %3862 = vdwg.mxu0
    %v3863 = vmul.f32 %v2818, 0.35355338
    %v3864 = vmul.f32 %v2967, 0.35355338
    %v3865 = vmul.f32 %v3116, 0.35355338
    %v3866 = vmul.f32 %v3265, 0.35355338
    %v3867 = vmul.f32 %v3414, 0.35355338
    %v3868 = vmul.f32 %v3563, 0.35355338
    %v3869 = vmul.f32 %v3712, 0.35355338
    %v3870 = vmul.f32 %v3861, 0.35355338
    %v3871 = vadd.f32 %v3863, %v69
    %v3872 = vadd.f32 %v3864, %v69
    %v3873 = vadd.f32 %v3865, %v69
    %v3874 = vadd.f32 %v3866, %v69
    %v3875 = vadd.f32 %v3867, %v69
    %v3876 = vadd.f32 %v3868, %v69
    %v3877 = vadd.f32 %v3869, %v69
    %v3878 = vadd.f32 %v3870, %v69
    %v3879 = vsel %vm70, %v3871, -inf
    %3880 = vmax.xlane.f32.xlu0 %v3879
    %v3881 = vpop.xlane.xlu0 %3880
    %v3882 = vsel %vm70, %v3872, -inf
    %3883 = vmax.xlane.f32.xlu0 %v3882
    %v3884 = vpop.xlane.xlu0 %3883
    %v3885 = vsel %vm70, %v3873, -inf
    %3886 = vmax.xlane.f32.xlu0 %v3885
    %v3887 = vpop.xlane.xlu0 %3886
    %v3888 = vsel %vm70, %v3874, -inf
    %3889 = vmax.xlane.f32.xlu0 %v3888
    %v3890 = vpop.xlane.xlu0 %3889
    %v3891 = vsel %vm70, %v3875, -inf
    %3892 = vmax.xlane.f32.xlu0 %v3891
    %v3893 = vpop.xlane.xlu0 %3892
    %v3894 = vsel %vm70, %v3876, -inf
    %3895 = vmax.xlane.f32.xlu0 %v3894
    %v3896 = vpop.xlane.xlu0 %3895
    %v3897 = vsel %vm70, %v3877, -inf
    %3898 = vmax.xlane.f32.xlu0 %v3897
    %v3899 = vpop.xlane.xlu0 %3898
    %v3900 = vsel %vm70, %v3878, -inf
    %3901 = vmax.xlane.f32.xlu0 %v3900
    %v3902 = vpop.xlane.xlu0 %3901
    %v3903 = vsub.f32 %v3871, %v3881
    %v3904 = vsub.f32 %v3872, %v3884
    %v3905 = vsub.f32 %v3873, %v3887
    %v3906 = vsub.f32 %v3874, %v3890
    %v3907 = vsub.f32 %v3875, %v3893
    %v3908 = vsub.f32 %v3876, %v3896
    %v3909 = vsub.f32 %v3877, %v3899
    %v3910 = vsub.f32 %v3878, %v3902
    %v3911 = vmul.f32 %v3903, 1.442695
    %v3912 = vpow.pop %v3911
    %v3913 = vmul.f32 %v3904, 1.442695
    %v3914 = vpow.pop %v3913
    %v3915 = vmul.f32 %v3905, 1.442695
    %v3916 = vpow.pop %v3915
    %v3917 = vmul.f32 %v3906, 1.442695
    %v3918 = vpow.pop %v3917
    %v3919 = vmul.f32 %v3907, 1.442695
    %v3920 = vpow.pop %v3919
    %v3921 = vmul.f32 %v3908, 1.442695
    %v3922 = vpow.pop %v3921
    %v3923 = vmul.f32 %v3909, 1.442695
    %v3924 = vpow.pop %v3923
    %v3925 = vmul.f32 %v3910, 1.442695
    %v3926 = vpow.pop %v3925
    %v3927 = vsel %vm70, %v3912, 0.0
    %3928 = vadd.xlane.f32.xlu0 %v3927
    %v3929 = vpop.xlane.xlu0 %3928
    %v3930 = vsel %vm70, %v3914, 0.0
    %3931 = vadd.xlane.f32.xlu0 %v3930
    %v3932 = vpop.xlane.xlu0 %3931
    %v3933 = vsel %vm70, %v3916, 0.0
    %3934 = vadd.xlane.f32.xlu0 %v3933
    %v3935 = vpop.xlane.xlu0 %3934
    %v3936 = vsel %vm70, %v3918, 0.0
    %3937 = vadd.xlane.f32.xlu0 %v3936
    %v3938 = vpop.xlane.xlu0 %3937
    %v3939 = vsel %vm70, %v3920, 0.0
    %3940 = vadd.xlane.f32.xlu0 %v3939
    %v3941 = vpop.xlane.xlu0 %3940
    %v3942 = vsel %vm70, %v3922, 0.0
    %3943 = vadd.xlane.f32.xlu0 %v3942
    %v3944 = vpop.xlane.xlu0 %3943
    %v3945 = vsel %vm70, %v3924, 0.0
    %3946 = vadd.xlane.f32.xlu0 %v3945
    %v3947 = vpop.xlane.xlu0 %3946
    %v3948 = vsel %vm70, %v3926, 0.0
    %3949 = vadd.xlane.f32.xlu0 %v3948
    %v3950 = vpop.xlane.xlu0 %3949
    %v3951 = vrcp.pop %v3929
    %v3952 = vmul.f32 %v3929, %v3951
    %v3953 = vsub.f32 1.0, %v3952
    %v3954 = vmul.f32 %v3951, %v3953
    %v3955 = vadd.f32 %v3951, %v3954
    %vm3956 = vweird.f32 %v3929
    %vm3957 = vweird.f32 %v3951
    %vm3958 = vmor %vm3956, %vm3957
    %v3959 = vsel %vm3958, %v3951, %v3955
    %v3960 = vand.u32 2147483647, %v3929
    %vm3961 = vcmp.eq.f32.partialorder %v3960, 8.507059e+37
    %v3962 = vand.u32 %v3929, 2147483648
    %v3963 = vor.u32 1.1754944e-38, %v3962
    %v3964 = vsel %vm3961, %v3963, %v3959
    %v3965 = vmul.f32 %v3912, %v3964
    %v3966 = vrcp.pop %v3932
    %v3967 = vmul.f32 %v3932, %v3966
    %v3968 = vsub.f32 1.0, %v3967
    %v3969 = vmul.f32 %v3966, %v3968
    %v3970 = vadd.f32 %v3966, %v3969
    %vm3971 = vweird.f32 %v3932
    %vm3972 = vweird.f32 %v3966
    %vm3973 = vmor %vm3971, %vm3972
    %v3974 = vsel %vm3973, %v3966, %v3970
    %v3975 = vand.u32 2147483647, %v3932
    %vm3976 = vcmp.eq.f32.partialorder %v3975, 8.507059e+37
    %v3977 = vand.u32 %v3932, 2147483648
    %v3978 = vor.u32 1.1754944e-38, %v3977
    %v3979 = vsel %vm3976, %v3978, %v3974
    %v3980 = vmul.f32 %v3914, %v3979
    %v3981 = vrcp.pop %v3935
    %v3982 = vmul.f32 %v3935, %v3981
    %v3983 = vsub.f32 1.0, %v3982
    %v3984 = vmul.f32 %v3981, %v3983
    %v3985 = vadd.f32 %v3981, %v3984
    %vm3986 = vweird.f32 %v3935
    %vm3987 = vweird.f32 %v3981
    %vm3988 = vmor %vm3986, %vm3987
    %v3989 = vsel %vm3988, %v3981, %v3985
    %v3990 = vand.u32 2147483647, %v3935
    %vm3991 = vcmp.eq.f32.partialorder %v3990, 8.507059e+37
    %v3992 = vand.u32 %v3935, 2147483648
    %v3993 = vor.u32 1.1754944e-38, %v3992
    %v3994 = vsel %vm3991, %v3993, %v3989
    %v3995 = vmul.f32 %v3916, %v3994
    %v3996 = vrcp.pop %v3938
    %v3997 = vmul.f32 %v3938, %v3996
    %v3998 = vsub.f32 1.0, %v3997
    %v3999 = vmul.f32 %v3996, %v3998
    %v4000 = vadd.f32 %v3996, %v3999
    %vm4001 = vweird.f32 %v3938
    %vm4002 = vweird.f32 %v3996
    %vm4003 = vmor %vm4001, %vm4002
    %v4004 = vsel %vm4003, %v3996, %v4000
    %v4005 = vand.u32 2147483647, %v3938
    %vm4006 = vcmp.eq.f32.partialorder %v4005, 8.507059e+37
    %v4007 = vand.u32 %v3938, 2147483648
    %v4008 = vor.u32 1.1754944e-38, %v4007
    %v4009 = vsel %vm4006, %v4008, %v4004
    %v4010 = vmul.f32 %v3918, %v4009
    %v4011 = vrcp.pop %v3941
    %v4012 = vmul.f32 %v3941, %v4011
    %v4013 = vsub.f32 1.0, %v4012
    %v4014 = vmul.f32 %v4011, %v4013
    %v4015 = vadd.f32 %v4011, %v4014
    %vm4016 = vweird.f32 %v3941
    %vm4017 = vweird.f32 %v4011
    %vm4018 = vmor %vm4016, %vm4017
    %v4019 = vsel %vm4018, %v4011, %v4015
    %v4020 = vand.u32 2147483647, %v3941
    %vm4021 = vcmp.eq.f32.partialorder %v4020, 8.507059e+37
    %v4022 = vand.u32 %v3941, 2147483648
    %v4023 = vor.u32 1.1754944e-38, %v4022
    %v4024 = vsel %vm4021, %v4023, %v4019
    %v4025 = vmul.f32 %v3920, %v4024
    %v4026 = vrcp.pop %v3944
    %v4027 = vmul.f32 %v3944, %v4026
    %v4028 = vsub.f32 1.0, %v4027
    %v4029 = vmul.f32 %v4026, %v4028
    %v4030 = vadd.f32 %v4026, %v4029
    %vm4031 = vweird.f32 %v3944
    %vm4032 = vweird.f32 %v4026
    %vm4033 = vmor %vm4031, %vm4032
    %v4034 = vsel %vm4033, %v4026, %v4030
    %v4035 = vand.u32 2147483647, %v3944
    %vm4036 = vcmp.eq.f32.partialorder %v4035, 8.507059e+37
    %v4037 = vand.u32 %v3944, 2147483648
    %v4038 = vor.u32 1.1754944e-38, %v4037
    %v4039 = vsel %vm4036, %v4038, %v4034
    %v4040 = vmul.f32 %v3922, %v4039
    %v4041 = vrcp.pop %v3947
    %v4042 = vmul.f32 %v3947, %v4041
    %v4043 = vsub.f32 1.0, %v4042
    %v4044 = vmul.f32 %v4041, %v4043
    %v4045 = vadd.f32 %v4041, %v4044
    %vm4046 = vweird.f32 %v3947
    %vm4047 = vweird.f32 %v4041
    %vm4048 = vmor %vm4046, %vm4047
    %v4049 = vsel %vm4048, %v4041, %v4045
    %v4050 = vand.u32 2147483647, %v3947
    %vm4051 = vcmp.eq.f32.partialorder %v4050, 8.507059e+37
    %v4052 = vand.u32 %v3947, 2147483648
    %v4053 = vor.u32 1.1754944e-38, %v4052
    %v4054 = vsel %vm4051, %v4053, %v4049
    %v4055 = vmul.f32 %v3924, %v4054
    %v4056 = vrcp.pop %v3950
    %v4057 = vmul.f32 %v3950, %v4056
    %v4058 = vsub.f32 1.0, %v4057
    %v4059 = vmul.f32 %v4056, %v4058
    %v4060 = vadd.f32 %v4056, %v4059
    %vm4061 = vweird.f32 %v3950
    %vm4062 = vweird.f32 %v4056
    %vm4063 = vmor %vm4061, %vm4062
    %v4064 = vsel %vm4063, %v4056, %v4060
    %v4065 = vand.u32 2147483647, %v3950
    %vm4066 = vcmp.eq.f32.partialorder %v4065, 8.507059e+37
    %v4067 = vand.u32 %v3950, 2147483648
    %v4068 = vor.u32 1.1754944e-38, %v4067
    %v4069 = vsel %vm4066, %v4068, %v4064
    %v4070 = vmul.f32 %v3926, %v4069
    %s4071 = scalar_lea.vmem [#allocation5], 64
    %v4072 = vld [vmem:[%s4071] sm:$0xff]
    %v4073 = vld [vmem:[%s4071 + $0x8] sm:$0xff]
    %v4074 = vld [vmem:[%s4071 + $0x10] sm:$0xff]
    %v4075 = vld [vmem:[%s4071 + $0x18] sm:$0xff]
    %v4076 = vld [vmem:[%s4071 + $0x20] sm:$0xff]
    %v4077 = vld [vmem:[%s4071 + $0x28] sm:$0xff]
    %v4078 = vld [vmem:[%s4071 + $0x30] sm:$0xff]
    %v4079 = vld [vmem:[%s4071 + $0x38] sm:$0xff]
    %v4080 = vmul.f32 %v3965, %v4072
    %v4081 = vmul.f32 %v3980, %v4073
    %v4082 = vmul.f32 %v3995, %v4074
    %v4083 = vmul.f32 %v4010, %v4075
    %v4084 = vmul.f32 %v4025, %v4076
    %v4085 = vmul.f32 %v4040, %v4077
    %v4086 = vmul.f32 %v4055, %v4078
    %v4087 = vmul.f32 %v4070, %v4079
    %v4089 = vsel %vm70, %v4080, 0
    %4091 = vmatpush.msra.mxu0 0.0
    %4092 = vmatpush.msra.mxu0 0.0
    %4093 = vmatpush.msra.mxu0 0.0
    %4094 = vmatpush.msra.mxu0 0.0
    %4095 = vmatpush.msra.mxu0 0.0
    %4096 = vmatpush.msra.mxu0 0.0
    %4097 = vmatpush.msra.mxu0 0.0
    %4098 = vmatpush.msra.mxu0 0.0
    %4099 = vmatpush.msra.mxu0 0.0
    %4100 = vmatpush.msra.mxu0 0.0
    %4101 = vmatpush.msra.mxu0 0.0
    %4102 = vmatpush.msra.mxu0 0.0
    %4103 = vmatpush.msra.mxu0 0.0
    %4104 = vmatpush.msra.mxu0 0.0
    %4105 = vmatpush.msra.mxu0 0.0
    %v4106 = vand.u32 %v1626, 4294901760
    %4107 = vmatpush.msra.mxu0 %v4106
    %v4108 = vand.u32 %v4089, 4294901760
    %v4109 = vsub.f32 %v4089, %v4108
    %v4110 = vand.u32 %v4109, 4294901760
    %v4111 = vsub.f32 %v4109, %v4110
    %v4112 = vand.u32 %v4111, 4294901760
    %4113 = vmatmul.f32.gmra.mxu0 %v4112
    %v4114 = vpop.f32.mrf.mxu0
    %v4115 = vadd.f32 0.0, %v4114
    %4116 = vdwg.mxu0
    %4117 = vmatpush.msra.mxu0 0.0
    %4118 = vmatpush.msra.mxu0 0.0
    %4119 = vmatpush.msra.mxu0 0.0
    %4120 = vmatpush.msra.mxu0 0.0
    %4121 = vmatpush.msra.mxu0 0.0
    %4122 = vmatpush.msra.mxu0 0.0
    %4123 = vmatpush.msra.mxu0 0.0
    %4124 = vmatpush.msra.mxu0 0.0
    %4125 = vmatpush.msra.mxu0 0.0
    %4126 = vmatpush.msra.mxu0 0.0
    %4127 = vmatpush.msra.mxu0 0.0
    %4128 = vmatpush.msra.mxu0 0.0
    %4129 = vmatpush.msra.mxu0 0.0
    %4130 = vmatpush.msra.mxu0 0.0
    %4131 = vmatpush.msra.mxu0 0.0
    %v4132 = vand.u32 %v1626, 4294901760
    %v4133 = vsub.f32 %v1626, %v4132
    %v4134 = vand.u32 %v4133, 4294901760
    %v4135 = vsub.f32 %v4133, %v4134
    %v4136 = vand.u32 %v4135, 4294901760
    %4137 = vmatpush.msra.mxu0 %v4136
    %v4138 = vand.u32 %v4089, 4294901760
    %4139 = vmatmul.f32.gmra.mxu0 %v4138
    %v4140 = vpop.f32.mrf.mxu0
    %v4141 = vadd.f32 %v4115, %v4140
    %4142 = vdwg.mxu0
    %4143 = vmatpush.msra.mxu0 0.0
    %4144 = vmatpush.msra.mxu0 0.0
    %4145 = vmatpush.msra.mxu0 0.0
    %4146 = vmatpush.msra.mxu0 0.0
    %4147 = vmatpush.msra.mxu0 0.0
    %4148 = vmatpush.msra.mxu0 0.0
    %4149 = vmatpush.msra.mxu0 0.0
    %4150 = vmatpush.msra.mxu0 0.0
    %4151 = vmatpush.msra.mxu0 0.0
    %4152 = vmatpush.msra.mxu0 0.0
    %4153 = vmatpush.msra.mxu0 0.0
    %4154 = vmatpush.msra.mxu0 0.0
    %4155 = vmatpush.msra.mxu0 0.0
    %4156 = vmatpush.msra.mxu0 0.0
    %4157 = vmatpush.msra.mxu0 0.0
    %v4158 = vand.u32 %v1626, 4294901760
    %v4159 = vsub.f32 %v1626, %v4158
    %4160 = vmatpush.msra.mxu0 %v4159
    %v4161 = vand.u32 %v4089, 4294901760
    %v4162 = vsub.f32 %v4089, %v4161
    %4163 = vmatmul.f32.gmra.mxu0 %v4162
    %v4164 = vpop.f32.mrf.mxu0
    %v4165 = vadd.f32 %v4141, %v4164
    %4166 = vdwg.mxu0
    %4167 = vmatpush.msra.mxu0 0.0
    %4168 = vmatpush.msra.mxu0 0.0
    %4169 = vmatpush.msra.mxu0 0.0
    %4170 = vmatpush.msra.mxu0 0.0
    %4171 = vmatpush.msra.mxu0 0.0
    %4172 = vmatpush.msra.mxu0 0.0
    %4173 = vmatpush.msra.mxu0 0.0
    %4174 = vmatpush.msra.mxu0 0.0
    %4175 = vmatpush.msra.mxu0 0.0
    %4176 = vmatpush.msra.mxu0 0.0
    %4177 = vmatpush.msra.mxu0 0.0
    %4178 = vmatpush.msra.mxu0 0.0
    %4179 = vmatpush.msra.mxu0 0.0
    %4180 = vmatpush.msra.mxu0 0.0
    %4181 = vmatpush.msra.mxu0 0.0
    %v4182 = vand.u32 %v1626, 4294901760
    %4183 = vmatpush.msra.mxu0 %v4182
    %v4184 = vand.u32 %v4089, 4294901760
    %v4185 = vsub.f32 %v4089, %v4184
    %v4186 = vand.u32 %v4185, 4294901760
    %4187 = vmatmul.f32.gmra.mxu0 %v4186
    %v4188 = vpop.f32.mrf.mxu0
    %v4189 = vadd.f32 %v4165, %v4188
    %4190 = vdwg.mxu0
    %4191 = vmatpush.msra.mxu0 0.0
    %4192 = vmatpush.msra.mxu0 0.0
    %4193 = vmatpush.msra.mxu0 0.0
    %4194 = vmatpush.msra.mxu0 0.0
    %4195 = vmatpush.msra.mxu0 0.0
    %4196 = vmatpush.msra.mxu0 0.0
    %4197 = vmatpush.msra.mxu0 0.0
    %4198 = vmatpush.msra.mxu0 0.0
    %4199 = vmatpush.msra.mxu0 0.0
    %4200 = vmatpush.msra.mxu0 0.0
    %4201 = vmatpush.msra.mxu0 0.0
    %4202 = vmatpush.msra.mxu0 0.0
    %4203 = vmatpush.msra.mxu0 0.0
    %4204 = vmatpush.msra.mxu0 0.0
    %4205 = vmatpush.msra.mxu0 0.0
    %v4206 = vand.u32 %v1626, 4294901760
    %v4207 = vsub.f32 %v1626, %v4206
    %v4208 = vand.u32 %v4207, 4294901760
    %4209 = vmatpush.msra.mxu0 %v4208
    %v4210 = vand.u32 %v4089, 4294901760
    %4211 = vmatmul.f32.gmra.mxu0 %v4210
    %v4212 = vpop.f32.mrf.mxu0
    %v4213 = vadd.f32 %v4189, %v4212
    %4214 = vdwg.mxu0
    %4215 = vmatpush.msra.mxu0 0.0
    %4216 = vmatpush.msra.mxu0 0.0
    %4217 = vmatpush.msra.mxu0 0.0
    %4218 = vmatpush.msra.mxu0 0.0
    %4219 = vmatpush.msra.mxu0 0.0
    %4220 = vmatpush.msra.mxu0 0.0
    %4221 = vmatpush.msra.mxu0 0.0
    %4222 = vmatpush.msra.mxu0 0.0
    %4223 = vmatpush.msra.mxu0 0.0
    %4224 = vmatpush.msra.mxu0 0.0
    %4225 = vmatpush.msra.mxu0 0.0
    %4226 = vmatpush.msra.mxu0 0.0
    %4227 = vmatpush.msra.mxu0 0.0
    %4228 = vmatpush.msra.mxu0 0.0
    %4229 = vmatpush.msra.mxu0 0.0
    %v4230 = vand.u32 %v1626, 4294901760
    %4231 = vmatpush.msra.mxu0 %v4230
    %v4232 = vand.u32 %v4089, 4294901760
    %4233 = vmatmul.f32.gmra.mxu0 %v4232
    %v4234 = vpop.f32.mrf.mxu0
    %v4235 = vadd.f32 %v4213, %v4234
    %4236 = vdwg.mxu0
    %v4238 = vsel %vm70, %v4081, 0
    %4240 = vmatpush.msra.mxu0 0.0
    %4241 = vmatpush.msra.mxu0 0.0
    %4242 = vmatpush.msra.mxu0 0.0
    %4243 = vmatpush.msra.mxu0 0.0
    %4244 = vmatpush.msra.mxu0 0.0
    %4245 = vmatpush.msra.mxu0 0.0
    %4246 = vmatpush.msra.mxu0 0.0
    %4247 = vmatpush.msra.mxu0 0.0
    %4248 = vmatpush.msra.mxu0 0.0
    %4249 = vmatpush.msra.mxu0 0.0
    %4250 = vmatpush.msra.mxu0 0.0
    %4251 = vmatpush.msra.mxu0 0.0
    %4252 = vmatpush.msra.mxu0 0.0
    %4253 = vmatpush.msra.mxu0 0.0
    %4254 = vmatpush.msra.mxu0 0.0
    %v4255 = vand.u32 %v1775, 4294901760
    %4256 = vmatpush.msra.mxu0 %v4255
    %v4257 = vand.u32 %v4238, 4294901760
    %v4258 = vsub.f32 %v4238, %v4257
    %v4259 = vand.u32 %v4258, 4294901760
    %v4260 = vsub.f32 %v4258, %v4259
    %v4261 = vand.u32 %v4260, 4294901760
    %4262 = vmatmul.f32.gmra.mxu0 %v4261
    %v4263 = vpop.f32.mrf.mxu0
    %v4264 = vadd.f32 0.0, %v4263
    %4265 = vdwg.mxu0
    %4266 = vmatpush.msra.mxu0 0.0
    %4267 = vmatpush.msra.mxu0 0.0
    %4268 = vmatpush.msra.mxu0 0.0
    %4269 = vmatpush.msra.mxu0 0.0
    %4270 = vmatpush.msra.mxu0 0.0
    %4271 = vmatpush.msra.mxu0 0.0
    %4272 = vmatpush.msra.mxu0 0.0
    %4273 = vmatpush.msra.mxu0 0.0
    %4274 = vmatpush.msra.mxu0 0.0
    %4275 = vmatpush.msra.mxu0 0.0
    %4276 = vmatpush.msra.mxu0 0.0
    %4277 = vmatpush.msra.mxu0 0.0
    %4278 = vmatpush.msra.mxu0 0.0
    %4279 = vmatpush.msra.mxu0 0.0
    %4280 = vmatpush.msra.mxu0 0.0
    %v4281 = vand.u32 %v1775, 4294901760
    %v4282 = vsub.f32 %v1775, %v4281
    %v4283 = vand.u32 %v4282, 4294901760
    %v4284 = vsub.f32 %v4282, %v4283
    %v4285 = vand.u32 %v4284, 4294901760
    %4286 = vmatpush.msra.mxu0 %v4285
    %v4287 = vand.u32 %v4238, 4294901760
    %4288 = vmatmul.f32.gmra.mxu0 %v4287
    %v4289 = vpop.f32.mrf.mxu0
    %v4290 = vadd.f32 %v4264, %v4289
    %4291 = vdwg.mxu0
    %4292 = vmatpush.msra.mxu0 0.0
    %4293 = vmatpush.msra.mxu0 0.0
    %4294 = vmatpush.msra.mxu0 0.0
    %4295 = vmatpush.msra.mxu0 0.0
    %4296 = vmatpush.msra.mxu0 0.0
    %4297 = vmatpush.msra.mxu0 0.0
    %4298 = vmatpush.msra.mxu0 0.0
    %4299 = vmatpush.msra.mxu0 0.0
    %4300 = vmatpush.msra.mxu0 0.0
    %4301 = vmatpush.msra.mxu0 0.0
    %4302 = vmatpush.msra.mxu0 0.0
    %4303 = vmatpush.msra.mxu0 0.0
    %4304 = vmatpush.msra.mxu0 0.0
    %4305 = vmatpush.msra.mxu0 0.0
    %4306 = vmatpush.msra.mxu0 0.0
    %v4307 = vand.u32 %v1775, 4294901760
    %v4308 = vsub.f32 %v1775, %v4307
    %4309 = vmatpush.msra.mxu0 %v4308
    %v4310 = vand.u32 %v4238, 4294901760
    %v4311 = vsub.f32 %v4238, %v4310
    %4312 = vmatmul.f32.gmra.mxu0 %v4311
    %v4313 = vpop.f32.mrf.mxu0
    %v4314 = vadd.f32 %v4290, %v4313
    %4315 = vdwg.mxu0
    %4316 = vmatpush.msra.mxu0 0.0
    %4317 = vmatpush.msra.mxu0 0.0
    %4318 = vmatpush.msra.mxu0 0.0
    %4319 = vmatpush.msra.mxu0 0.0
    %4320 = vmatpush.msra.mxu0 0.0
    %4321 = vmatpush.msra.mxu0 0.0
    %4322 = vmatpush.msra.mxu0 0.0
    %4323 = vmatpush.msra.mxu0 0.0
    %4324 = vmatpush.msra.mxu0 0.0
    %4325 = vmatpush.msra.mxu0 0.0
    %4326 = vmatpush.msra.mxu0 0.0
    %4327 = vmatpush.msra.mxu0 0.0
    %4328 = vmatpush.msra.mxu0 0.0
    %4329 = vmatpush.msra.mxu0 0.0
    %4330 = vmatpush.msra.mxu0 0.0
    %v4331 = vand.u32 %v1775, 4294901760
    %4332 = vmatpush.msra.mxu0 %v4331
    %v4333 = vand.u32 %v4238, 4294901760
    %v4334 = vsub.f32 %v4238, %v4333
    %v4335 = vand.u32 %v4334, 4294901760
    %4336 = vmatmul.f32.gmra.mxu0 %v4335
    %v4337 = vpop.f32.mrf.mxu0
    %v4338 = vadd.f32 %v4314, %v4337
    %4339 = vdwg.mxu0
    %4340 = vmatpush.msra.mxu0 0.0
    %4341 = vmatpush.msra.mxu0 0.0
    %4342 = vmatpush.msra.mxu0 0.0
    %4343 = vmatpush.msra.mxu0 0.0
    %4344 = vmatpush.msra.mxu0 0.0
    %4345 = vmatpush.msra.mxu0 0.0
    %4346 = vmatpush.msra.mxu0 0.0
    %4347 = vmatpush.msra.mxu0 0.0
    %4348 = vmatpush.msra.mxu0 0.0
    %4349 = vmatpush.msra.mxu0 0.0
    %4350 = vmatpush.msra.mxu0 0.0
    %4351 = vmatpush.msra.mxu0 0.0
    %4352 = vmatpush.msra.mxu0 0.0
    %4353 = vmatpush.msra.mxu0 0.0
    %4354 = vmatpush.msra.mxu0 0.0
    %v4355 = vand.u32 %v1775, 4294901760
    %v4356 = vsub.f32 %v1775, %v4355
    %v4357 = vand.u32 %v4356, 4294901760
    %4358 = vmatpush.msra.mxu0 %v4357
    %v4359 = vand.u32 %v4238, 4294901760
    %4360 = vmatmul.f32.gmra.mxu0 %v4359
    %v4361 = vpop.f32.mrf.mxu0
    %v4362 = vadd.f32 %v4338, %v4361
    %4363 = vdwg.mxu0
    %4364 = vmatpush.msra.mxu0 0.0
    %4365 = vmatpush.msra.mxu0 0.0
    %4366 = vmatpush.msra.mxu0 0.0
    %4367 = vmatpush.msra.mxu0 0.0
    %4368 = vmatpush.msra.mxu0 0.0
    %4369 = vmatpush.msra.mxu0 0.0
    %4370 = vmatpush.msra.mxu0 0.0
    %4371 = vmatpush.msra.mxu0 0.0
    %4372 = vmatpush.msra.mxu0 0.0
    %4373 = vmatpush.msra.mxu0 0.0
    %4374 = vmatpush.msra.mxu0 0.0
    %4375 = vmatpush.msra.mxu0 0.0
    %4376 = vmatpush.msra.mxu0 0.0
    %4377 = vmatpush.msra.mxu0 0.0
    %4378 = vmatpush.msra.mxu0 0.0
    %v4379 = vand.u32 %v1775, 4294901760
    %4380 = vmatpush.msra.mxu0 %v4379
    %v4381 = vand.u32 %v4238, 4294901760
    %4382 = vmatmul.f32.gmra.mxu0 %v4381
    %v4383 = vpop.f32.mrf.mxu0
    %v4384 = vadd.f32 %v4362, %v4383
    %4385 = vdwg.mxu0
    %v4387 = vsel %vm70, %v4082, 0
    %4389 = vmatpush.msra.mxu0 0.0
    %4390 = vmatpush.msra.mxu0 0.0
    %4391 = vmatpush.msra.mxu0 0.0
    %4392 = vmatpush.msra.mxu0 0.0
    %4393 = vmatpush.msra.mxu0 0.0
    %4394 = vmatpush.msra.mxu0 0.0
    %4395 = vmatpush.msra.mxu0 0.0
    %4396 = vmatpush.msra.mxu0 0.0
    %4397 = vmatpush.msra.mxu0 0.0
    %4398 = vmatpush.msra.mxu0 0.0
    %4399 = vmatpush.msra.mxu0 0.0
    %4400 = vmatpush.msra.mxu0 0.0
    %4401 = vmatpush.msra.mxu0 0.0
    %4402 = vmatpush.msra.mxu0 0.0
    %4403 = vmatpush.msra.mxu0 0.0
    %v4404 = vand.u32 %v1924, 4294901760
    %4405 = vmatpush.msra.mxu0 %v4404
    %v4406 = vand.u32 %v4387, 4294901760
    %v4407 = vsub.f32 %v4387, %v4406
    %v4408 = vand.u32 %v4407, 4294901760
    %v4409 = vsub.f32 %v4407, %v4408
    %v4410 = vand.u32 %v4409, 4294901760
    %4411 = vmatmul.f32.gmra.mxu0 %v4410
    %v4412 = vpop.f32.mrf.mxu0
    %v4413 = vadd.f32 0.0, %v4412
    %4414 = vdwg.mxu0
    %4415 = vmatpush.msra.mxu0 0.0
    %4416 = vmatpush.msra.mxu0 0.0
    %4417 = vmatpush.msra.mxu0 0.0
    %4418 = vmatpush.msra.mxu0 0.0
    %4419 = vmatpush.msra.mxu0 0.0
    %4420 = vmatpush.msra.mxu0 0.0
    %4421 = vmatpush.msra.mxu0 0.0
    %4422 = vmatpush.msra.mxu0 0.0
    %4423 = vmatpush.msra.mxu0 0.0
    %4424 = vmatpush.msra.mxu0 0.0
    %4425 = vmatpush.msra.mxu0 0.0
    %4426 = vmatpush.msra.mxu0 0.0
    %4427 = vmatpush.msra.mxu0 0.0
    %4428 = vmatpush.msra.mxu0 0.0
    %4429 = vmatpush.msra.mxu0 0.0
    %v4430 = vand.u32 %v1924, 4294901760
    %v4431 = vsub.f32 %v1924, %v4430
    %v4432 = vand.u32 %v4431, 4294901760
    %v4433 = vsub.f32 %v4431, %v4432
    %v4434 = vand.u32 %v4433, 4294901760
    %4435 = vmatpush.msra.mxu0 %v4434
    %v4436 = vand.u32 %v4387, 4294901760
    %4437 = vmatmul.f32.gmra.mxu0 %v4436
    %v4438 = vpop.f32.mrf.mxu0
    %v4439 = vadd.f32 %v4413, %v4438
    %4440 = vdwg.mxu0
    %4441 = vmatpush.msra.mxu0 0.0
    %4442 = vmatpush.msra.mxu0 0.0
    %4443 = vmatpush.msra.mxu0 0.0
    %4444 = vmatpush.msra.mxu0 0.0
    %4445 = vmatpush.msra.mxu0 0.0
    %4446 = vmatpush.msra.mxu0 0.0
    %4447 = vmatpush.msra.mxu0 0.0
    %4448 = vmatpush.msra.mxu0 0.0
    %4449 = vmatpush.msra.mxu0 0.0
    %4450 = vmatpush.msra.mxu0 0.0
    %4451 = vmatpush.msra.mxu0 0.0
    %4452 = vmatpush.msra.mxu0 0.0
    %4453 = vmatpush.msra.mxu0 0.0
    %4454 = vmatpush.msra.mxu0 0.0
    %4455 = vmatpush.msra.mxu0 0.0
    %v4456 = vand.u32 %v1924, 4294901760
    %v4457 = vsub.f32 %v1924, %v4456
    %4458 = vmatpush.msra.mxu0 %v4457
    %v4459 = vand.u32 %v4387, 4294901760
    %v4460 = vsub.f32 %v4387, %v4459
    %4461 = vmatmul.f32.gmra.mxu0 %v4460
    %v4462 = vpop.f32.mrf.mxu0
    %v4463 = vadd.f32 %v4439, %v4462
    %4464 = vdwg.mxu0
    %4465 = vmatpush.msra.mxu0 0.0
    %4466 = vmatpush.msra.mxu0 0.0
    %4467 = vmatpush.msra.mxu0 0.0
    %4468 = vmatpush.msra.mxu0 0.0
    %4469 = vmatpush.msra.mxu0 0.0
    %4470 = vmatpush.msra.mxu0 0.0
    %4471 = vmatpush.msra.mxu0 0.0
    %4472 = vmatpush.msra.mxu0 0.0
    %4473 = vmatpush.msra.mxu0 0.0
    %4474 = vmatpush.msra.mxu0 0.0
    %4475 = vmatpush.msra.mxu0 0.0
    %4476 = vmatpush.msra.mxu0 0.0
    %4477 = vmatpush.msra.mxu0 0.0
    %4478 = vmatpush.msra.mxu0 0.0
    %4479 = vmatpush.msra.mxu0 0.0
    %v4480 = vand.u32 %v1924, 4294901760
    %4481 = vmatpush.msra.mxu0 %v4480
    %v4482 = vand.u32 %v4387, 4294901760
    %v4483 = vsub.f32 %v4387, %v4482
    %v4484 = vand.u32 %v4483, 4294901760
    %4485 = vmatmul.f32.gmra.mxu0 %v4484
    %v4486 = vpop.f32.mrf.mxu0
    %v4487 = vadd.f32 %v4463, %v4486
    %4488 = vdwg.mxu0
    %4489 = vmatpush.msra.mxu0 0.0
    %4490 = vmatpush.msra.mxu0 0.0
    %4491 = vmatpush.msra.mxu0 0.0
    %4492 = vmatpush.msra.mxu0 0.0
    %4493 = vmatpush.msra.mxu0 0.0
    %4494 = vmatpush.msra.mxu0 0.0
    %4495 = vmatpush.msra.mxu0 0.0
    %4496 = vmatpush.msra.mxu0 0.0
    %4497 = vmatpush.msra.mxu0 0.0
    %4498 = vmatpush.msra.mxu0 0.0
    %4499 = vmatpush.msra.mxu0 0.0
    %4500 = vmatpush.msra.mxu0 0.0
    %4501 = vmatpush.msra.mxu0 0.0
    %4502 = vmatpush.msra.mxu0 0.0
    %4503 = vmatpush.msra.mxu0 0.0
    %v4504 = vand.u32 %v1924, 4294901760
    %v4505 = vsub.f32 %v1924, %v4504
    %v4506 = vand.u32 %v4505, 4294901760
    %4507 = vmatpush.msra.mxu0 %v4506
    %v4508 = vand.u32 %v4387, 4294901760
    %4509 = vmatmul.f32.gmra.mxu0 %v4508
    %v4510 = vpop.f32.mrf.mxu0
    %v4511 = vadd.f32 %v4487, %v4510
    %4512 = vdwg.mxu0
    %4513 = vmatpush.msra.mxu0 0.0
    %4514 = vmatpush.msra.mxu0 0.0
    %4515 = vmatpush.msra.mxu0 0.0
    %4516 = vmatpush.msra.mxu0 0.0
    %4517 = vmatpush.msra.mxu0 0.0
    %4518 = vmatpush.msra.mxu0 0.0
    %4519 = vmatpush.msra.mxu0 0.0
    %4520 = vmatpush.msra.mxu0 0.0
    %4521 = vmatpush.msra.mxu0 0.0
    %4522 = vmatpush.msra.mxu0 0.0
    %4523 = vmatpush.msra.mxu0 0.0
    %4524 = vmatpush.msra.mxu0 0.0
    %4525 = vmatpush.msra.mxu0 0.0
    %4526 = vmatpush.msra.mxu0 0.0
    %4527 = vmatpush.msra.mxu0 0.0
    %v4528 = vand.u32 %v1924, 4294901760
    %4529 = vmatpush.msra.mxu0 %v4528
    %v4530 = vand.u32 %v4387, 4294901760
    %4531 = vmatmul.f32.gmra.mxu0 %v4530
    %v4532 = vpop.f32.mrf.mxu0
    %v4533 = vadd.f32 %v4511, %v4532
    %4534 = vdwg.mxu0
    %v4536 = vsel %vm70, %v4083, 0
    %4538 = vmatpush.msra.mxu0 0.0
    %4539 = vmatpush.msra.mxu0 0.0
    %4540 = vmatpush.msra.mxu0 0.0
    %4541 = vmatpush.msra.mxu0 0.0
    %4542 = vmatpush.msra.mxu0 0.0
    %4543 = vmatpush.msra.mxu0 0.0
    %4544 = vmatpush.msra.mxu0 0.0
    %4545 = vmatpush.msra.mxu0 0.0
    %4546 = vmatpush.msra.mxu0 0.0
    %4547 = vmatpush.msra.mxu0 0.0
    %4548 = vmatpush.msra.mxu0 0.0
    %4549 = vmatpush.msra.mxu0 0.0
    %4550 = vmatpush.msra.mxu0 0.0
    %4551 = vmatpush.msra.mxu0 0.0
    %4552 = vmatpush.msra.mxu0 0.0
    %v4553 = vand.u32 %v2073, 4294901760
    %4554 = vmatpush.msra.mxu0 %v4553
    %v4555 = vand.u32 %v4536, 4294901760
    %v4556 = vsub.f32 %v4536, %v4555
    %v4557 = vand.u32 %v4556, 4294901760
    %v4558 = vsub.f32 %v4556, %v4557
    %v4559 = vand.u32 %v4558, 4294901760
    %4560 = vmatmul.f32.gmra.mxu0 %v4559
    %v4561 = vpop.f32.mrf.mxu0
    %v4562 = vadd.f32 0.0, %v4561
    %4563 = vdwg.mxu0
    %4564 = vmatpush.msra.mxu0 0.0
    %4565 = vmatpush.msra.mxu0 0.0
    %4566 = vmatpush.msra.mxu0 0.0
    %4567 = vmatpush.msra.mxu0 0.0
    %4568 = vmatpush.msra.mxu0 0.0
    %4569 = vmatpush.msra.mxu0 0.0
    %4570 = vmatpush.msra.mxu0 0.0
    %4571 = vmatpush.msra.mxu0 0.0
    %4572 = vmatpush.msra.mxu0 0.0
    %4573 = vmatpush.msra.mxu0 0.0
    %4574 = vmatpush.msra.mxu0 0.0
    %4575 = vmatpush.msra.mxu0 0.0
    %4576 = vmatpush.msra.mxu0 0.0
    %4577 = vmatpush.msra.mxu0 0.0
    %4578 = vmatpush.msra.mxu0 0.0
    %v4579 = vand.u32 %v2073, 4294901760
    %v4580 = vsub.f32 %v2073, %v4579
    %v4581 = vand.u32 %v4580, 4294901760
    %v4582 = vsub.f32 %v4580, %v4581
    %v4583 = vand.u32 %v4582, 4294901760
    %4584 = vmatpush.msra.mxu0 %v4583
    %v4585 = vand.u32 %v4536, 4294901760
    %4586 = vmatmul.f32.gmra.mxu0 %v4585
    %v4587 = vpop.f32.mrf.mxu0
    %v4588 = vadd.f32 %v4562, %v4587
    %4589 = vdwg.mxu0
    %4590 = vmatpush.msra.mxu0 0.0
    %4591 = vmatpush.msra.mxu0 0.0
    %4592 = vmatpush.msra.mxu0 0.0
    %4593 = vmatpush.msra.mxu0 0.0
    %4594 = vmatpush.msra.mxu0 0.0
    %4595 = vmatpush.msra.mxu0 0.0
    %4596 = vmatpush.msra.mxu0 0.0
    %4597 = vmatpush.msra.mxu0 0.0
    %4598 = vmatpush.msra.mxu0 0.0
    %4599 = vmatpush.msra.mxu0 0.0
    %4600 = vmatpush.msra.mxu0 0.0
    %4601 = vmatpush.msra.mxu0 0.0
    %4602 = vmatpush.msra.mxu0 0.0
    %4603 = vmatpush.msra.mxu0 0.0
    %4604 = vmatpush.msra.mxu0 0.0
    %v4605 = vand.u32 %v2073, 4294901760
    %v4606 = vsub.f32 %v2073, %v4605
    %4607 = vmatpush.msra.mxu0 %v4606
    %v4608 = vand.u32 %v4536, 4294901760
    %v4609 = vsub.f32 %v4536, %v4608
    %4610 = vmatmul.f32.gmra.mxu0 %v4609
    %v4611 = vpop.f32.mrf.mxu0
    %v4612 = vadd.f32 %v4588, %v4611
    %4613 = vdwg.mxu0
    %4614 = vmatpush.msra.mxu0 0.0
    %4615 = vmatpush.msra.mxu0 0.0
    %4616 = vmatpush.msra.mxu0 0.0
    %4617 = vmatpush.msra.mxu0 0.0
    %4618 = vmatpush.msra.mxu0 0.0
    %4619 = vmatpush.msra.mxu0 0.0
    %4620 = vmatpush.msra.mxu0 0.0
    %4621 = vmatpush.msra.mxu0 0.0
    %4622 = vmatpush.msra.mxu0 0.0
    %4623 = vmatpush.msra.mxu0 0.0
    %4624 = vmatpush.msra.mxu0 0.0
    %4625 = vmatpush.msra.mxu0 0.0
    %4626 = vmatpush.msra.mxu0 0.0
    %4627 = vmatpush.msra.mxu0 0.0
    %4628 = vmatpush.msra.mxu0 0.0
    %v4629 = vand.u32 %v2073, 4294901760
    %4630 = vmatpush.msra.mxu0 %v4629
    %v4631 = vand.u32 %v4536, 4294901760
    %v4632 = vsub.f32 %v4536, %v4631
    %v4633 = vand.u32 %v4632, 4294901760
    %4634 = vmatmul.f32.gmra.mxu0 %v4633
    %v4635 = vpop.f32.mrf.mxu0
    %v4636 = vadd.f32 %v4612, %v4635
    %4637 = vdwg.mxu0
    %4638 = vmatpush.msra.mxu0 0.0
    %4639 = vmatpush.msra.mxu0 0.0
    %4640 = vmatpush.msra.mxu0 0.0
    %4641 = vmatpush.msra.mxu0 0.0
    %4642 = vmatpush.msra.mxu0 0.0
    %4643 = vmatpush.msra.mxu0 0.0
    %4644 = vmatpush.msra.mxu0 0.0
    %4645 = vmatpush.msra.mxu0 0.0
    %4646 = vmatpush.msra.mxu0 0.0
    %4647 = vmatpush.msra.mxu0 0.0
    %4648 = vmatpush.msra.mxu0 0.0
    %4649 = vmatpush.msra.mxu0 0.0
    %4650 = vmatpush.msra.mxu0 0.0
    %4651 = vmatpush.msra.mxu0 0.0
    %4652 = vmatpush.msra.mxu0 0.0
    %v4653 = vand.u32 %v2073, 4294901760
    %v4654 = vsub.f32 %v2073, %v4653
    %v4655 = vand.u32 %v4654, 4294901760
    %4656 = vmatpush.msra.mxu0 %v4655
    %v4657 = vand.u32 %v4536, 4294901760
    %4658 = vmatmul.f32.gmra.mxu0 %v4657
    %v4659 = vpop.f32.mrf.mxu0
    %v4660 = vadd.f32 %v4636, %v4659
    %4661 = vdwg.mxu0
    %4662 = vmatpush.msra.mxu0 0.0
    %4663 = vmatpush.msra.mxu0 0.0
    %4664 = vmatpush.msra.mxu0 0.0
    %4665 = vmatpush.msra.mxu0 0.0
    %4666 = vmatpush.msra.mxu0 0.0
    %4667 = vmatpush.msra.mxu0 0.0
    %4668 = vmatpush.msra.mxu0 0.0
    %4669 = vmatpush.msra.mxu0 0.0
    %4670 = vmatpush.msra.mxu0 0.0
    %4671 = vmatpush.msra.mxu0 0.0
    %4672 = vmatpush.msra.mxu0 0.0
    %4673 = vmatpush.msra.mxu0 0.0
    %4674 = vmatpush.msra.mxu0 0.0
    %4675 = vmatpush.msra.mxu0 0.0
    %4676 = vmatpush.msra.mxu0 0.0
    %v4677 = vand.u32 %v2073, 4294901760
    %4678 = vmatpush.msra.mxu0 %v4677
    %v4679 = vand.u32 %v4536, 4294901760
    %4680 = vmatmul.f32.gmra.mxu0 %v4679
    %v4681 = vpop.f32.mrf.mxu0
    %v4682 = vadd.f32 %v4660, %v4681
    %4683 = vdwg.mxu0
    %v4685 = vsel %vm70, %v4084, 0
    %4687 = vmatpush.msra.mxu0 0.0
    %4688 = vmatpush.msra.mxu0 0.0
    %4689 = vmatpush.msra.mxu0 0.0
    %4690 = vmatpush.msra.mxu0 0.0
    %4691 = vmatpush.msra.mxu0 0.0
    %4692 = vmatpush.msra.mxu0 0.0
    %4693 = vmatpush.msra.mxu0 0.0
    %4694 = vmatpush.msra.mxu0 0.0
    %4695 = vmatpush.msra.mxu0 0.0
    %4696 = vmatpush.msra.mxu0 0.0
    %4697 = vmatpush.msra.mxu0 0.0
    %4698 = vmatpush.msra.mxu0 0.0
    %4699 = vmatpush.msra.mxu0 0.0
    %4700 = vmatpush.msra.mxu0 0.0
    %4701 = vmatpush.msra.mxu0 0.0
    %v4702 = vand.u32 %v2222, 4294901760
    %4703 = vmatpush.msra.mxu0 %v4702
    %v4704 = vand.u32 %v4685, 4294901760
    %v4705 = vsub.f32 %v4685, %v4704
    %v4706 = vand.u32 %v4705, 4294901760
    %v4707 = vsub.f32 %v4705, %v4706
    %v4708 = vand.u32 %v4707, 4294901760
    %4709 = vmatmul.f32.gmra.mxu0 %v4708
    %v4710 = vpop.f32.mrf.mxu0
    %v4711 = vadd.f32 0.0, %v4710
    %4712 = vdwg.mxu0
    %4713 = vmatpush.msra.mxu0 0.0
    %4714 = vmatpush.msra.mxu0 0.0
    %4715 = vmatpush.msra.mxu0 0.0
    %4716 = vmatpush.msra.mxu0 0.0
    %4717 = vmatpush.msra.mxu0 0.0
    %4718 = vmatpush.msra.mxu0 0.0
    %4719 = vmatpush.msra.mxu0 0.0
    %4720 = vmatpush.msra.mxu0 0.0
    %4721 = vmatpush.msra.mxu0 0.0
    %4722 = vmatpush.msra.mxu0 0.0
    %4723 = vmatpush.msra.mxu0 0.0
    %4724 = vmatpush.msra.mxu0 0.0
    %4725 = vmatpush.msra.mxu0 0.0
    %4726 = vmatpush.msra.mxu0 0.0
    %4727 = vmatpush.msra.mxu0 0.0
    %v4728 = vand.u32 %v2222, 4294901760
    %v4729 = vsub.f32 %v2222, %v4728
    %v4730 = vand.u32 %v4729, 4294901760
    %v4731 = vsub.f32 %v4729, %v4730
    %v4732 = vand.u32 %v4731, 4294901760
    %4733 = vmatpush.msra.mxu0 %v4732
    %v4734 = vand.u32 %v4685, 4294901760
    %4735 = vmatmul.f32.gmra.mxu0 %v4734
    %v4736 = vpop.f32.mrf.mxu0
    %v4737 = vadd.f32 %v4711, %v4736
    %4738 = vdwg.mxu0
    %4739 = vmatpush.msra.mxu0 0.0
    %4740 = vmatpush.msra.mxu0 0.0
    %4741 = vmatpush.msra.mxu0 0.0
    %4742 = vmatpush.msra.mxu0 0.0
    %4743 = vmatpush.msra.mxu0 0.0
    %4744 = vmatpush.msra.mxu0 0.0
    %4745 = vmatpush.msra.mxu0 0.0
    %4746 = vmatpush.msra.mxu0 0.0
    %4747 = vmatpush.msra.mxu0 0.0
    %4748 = vmatpush.msra.mxu0 0.0
    %4749 = vmatpush.msra.mxu0 0.0
    %4750 = vmatpush.msra.mxu0 0.0
    %4751 = vmatpush.msra.mxu0 0.0
    %4752 = vmatpush.msra.mxu0 0.0
    %4753 = vmatpush.msra.mxu0 0.0
    %v4754 = vand.u32 %v2222, 4294901760
    %v4755 = vsub.f32 %v2222, %v4754
    %4756 = vmatpush.msra.mxu0 %v4755
    %v4757 = vand.u32 %v4685, 4294901760
    %v4758 = vsub.f32 %v4685, %v4757
    %4759 = vmatmul.f32.gmra.mxu0 %v4758
    %v4760 = vpop.f32.mrf.mxu0
    %v4761 = vadd.f32 %v4737, %v4760
    %4762 = vdwg.mxu0
    %4763 = vmatpush.msra.mxu0 0.0
    %4764 = vmatpush.msra.mxu0 0.0
    %4765 = vmatpush.msra.mxu0 0.0
    %4766 = vmatpush.msra.mxu0 0.0
    %4767 = vmatpush.msra.mxu0 0.0
    %4768 = vmatpush.msra.mxu0 0.0
    %4769 = vmatpush.msra.mxu0 0.0
    %4770 = vmatpush.msra.mxu0 0.0
    %4771 = vmatpush.msra.mxu0 0.0
    %4772 = vmatpush.msra.mxu0 0.0
    %4773 = vmatpush.msra.mxu0 0.0
    %4774 = vmatpush.msra.mxu0 0.0
    %4775 = vmatpush.msra.mxu0 0.0
    %4776 = vmatpush.msra.mxu0 0.0
    %4777 = vmatpush.msra.mxu0 0.0
    %v4778 = vand.u32 %v2222, 4294901760
    %4779 = vmatpush.msra.mxu0 %v4778
    %v4780 = vand.u32 %v4685, 4294901760
    %v4781 = vsub.f32 %v4685, %v4780
    %v4782 = vand.u32 %v4781, 4294901760
    %4783 = vmatmul.f32.gmra.mxu0 %v4782
    %v4784 = vpop.f32.mrf.mxu0
    %v4785 = vadd.f32 %v4761, %v4784
    %4786 = vdwg.mxu0
    %4787 = vmatpush.msra.mxu0 0.0
    %4788 = vmatpush.msra.mxu0 0.0
    %4789 = vmatpush.msra.mxu0 0.0
    %4790 = vmatpush.msra.mxu0 0.0
    %4791 = vmatpush.msra.mxu0 0.0
    %4792 = vmatpush.msra.mxu0 0.0
    %4793 = vmatpush.msra.mxu0 0.0
    %4794 = vmatpush.msra.mxu0 0.0
    %4795 = vmatpush.msra.mxu0 0.0
    %4796 = vmatpush.msra.mxu0 0.0
    %4797 = vmatpush.msra.mxu0 0.0
    %4798 = vmatpush.msra.mxu0 0.0
    %4799 = vmatpush.msra.mxu0 0.0
    %4800 = vmatpush.msra.mxu0 0.0
    %4801 = vmatpush.msra.mxu0 0.0
    %v4802 = vand.u32 %v2222, 4294901760
    %v4803 = vsub.f32 %v2222, %v4802
    %v4804 = vand.u32 %v4803, 4294901760
    %4805 = vmatpush.msra.mxu0 %v4804
    %v4806 = vand.u32 %v4685, 4294901760
    %4807 = vmatmul.f32.gmra.mxu0 %v4806
    %v4808 = vpop.f32.mrf.mxu0
    %v4809 = vadd.f32 %v4785, %v4808
    %4810 = vdwg.mxu0
    %4811 = vmatpush.msra.mxu0 0.0
    %4812 = vmatpush.msra.mxu0 0.0
    %4813 = vmatpush.msra.mxu0 0.0
    %4814 = vmatpush.msra.mxu0 0.0
    %4815 = vmatpush.msra.mxu0 0.0
    %4816 = vmatpush.msra.mxu0 0.0
    %4817 = vmatpush.msra.mxu0 0.0
    %4818 = vmatpush.msra.mxu0 0.0
    %4819 = vmatpush.msra.mxu0 0.0
    %4820 = vmatpush.msra.mxu0 0.0
    %4821 = vmatpush.msra.mxu0 0.0
    %4822 = vmatpush.msra.mxu0 0.0
    %4823 = vmatpush.msra.mxu0 0.0
    %4824 = vmatpush.msra.mxu0 0.0
    %4825 = vmatpush.msra.mxu0 0.0
    %v4826 = vand.u32 %v2222, 4294901760
    %4827 = vmatpush.msra.mxu0 %v4826
    %v4828 = vand.u32 %v4685, 4294901760
    %4829 = vmatmul.f32.gmra.mxu0 %v4828
    %v4830 = vpop.f32.mrf.mxu0
    %v4831 = vadd.f32 %v4809, %v4830
    %4832 = vdwg.mxu0
    %v4834 = vsel %vm70, %v4085, 0
    %4836 = vmatpush.msra.mxu0 0.0
    %4837 = vmatpush.msra.mxu0 0.0
    %4838 = vmatpush.msra.mxu0 0.0
    %4839 = vmatpush.msra.mxu0 0.0
    %4840 = vmatpush.msra.mxu0 0.0
    %4841 = vmatpush.msra.mxu0 0.0
    %4842 = vmatpush.msra.mxu0 0.0
    %4843 = vmatpush.msra.mxu0 0.0
    %4844 = vmatpush.msra.mxu0 0.0
    %4845 = vmatpush.msra.mxu0 0.0
    %4846 = vmatpush.msra.mxu0 0.0
    %4847 = vmatpush.msra.mxu0 0.0
    %4848 = vmatpush.msra.mxu0 0.0
    %4849 = vmatpush.msra.mxu0 0.0
    %4850 = vmatpush.msra.mxu0 0.0
    %v4851 = vand.u32 %v2371, 4294901760
    %4852 = vmatpush.msra.mxu0 %v4851
    %v4853 = vand.u32 %v4834, 4294901760
    %v4854 = vsub.f32 %v4834, %v4853
    %v4855 = vand.u32 %v4854, 4294901760
    %v4856 = vsub.f32 %v4854, %v4855
    %v4857 = vand.u32 %v4856, 4294901760
    %4858 = vmatmul.f32.gmra.mxu0 %v4857
    %v4859 = vpop.f32.mrf.mxu0
    %v4860 = vadd.f32 0.0, %v4859
    %4861 = vdwg.mxu0
    %4862 = vmatpush.msra.mxu0 0.0
    %4863 = vmatpush.msra.mxu0 0.0
    %4864 = vmatpush.msra.mxu0 0.0
    %4865 = vmatpush.msra.mxu0 0.0
    %4866 = vmatpush.msra.mxu0 0.0
    %4867 = vmatpush.msra.mxu0 0.0
    %4868 = vmatpush.msra.mxu0 0.0
    %4869 = vmatpush.msra.mxu0 0.0
    %4870 = vmatpush.msra.mxu0 0.0
    %4871 = vmatpush.msra.mxu0 0.0
    %4872 = vmatpush.msra.mxu0 0.0
    %4873 = vmatpush.msra.mxu0 0.0
    %4874 = vmatpush.msra.mxu0 0.0
    %4875 = vmatpush.msra.mxu0 0.0
    %4876 = vmatpush.msra.mxu0 0.0
    %v4877 = vand.u32 %v2371, 4294901760
    %v4878 = vsub.f32 %v2371, %v4877
    %v4879 = vand.u32 %v4878, 4294901760
    %v4880 = vsub.f32 %v4878, %v4879
    %v4881 = vand.u32 %v4880, 4294901760
    %4882 = vmatpush.msra.mxu0 %v4881
    %v4883 = vand.u32 %v4834, 4294901760
    %4884 = vmatmul.f32.gmra.mxu0 %v4883
    %v4885 = vpop.f32.mrf.mxu0
    %v4886 = vadd.f32 %v4860, %v4885
    %4887 = vdwg.mxu0
    %4888 = vmatpush.msra.mxu0 0.0
    %4889 = vmatpush.msra.mxu0 0.0
    %4890 = vmatpush.msra.mxu0 0.0
    %4891 = vmatpush.msra.mxu0 0.0
    %4892 = vmatpush.msra.mxu0 0.0
    %4893 = vmatpush.msra.mxu0 0.0
    %4894 = vmatpush.msra.mxu0 0.0
    %4895 = vmatpush.msra.mxu0 0.0
    %4896 = vmatpush.msra.mxu0 0.0
    %4897 = vmatpush.msra.mxu0 0.0
    %4898 = vmatpush.msra.mxu0 0.0
    %4899 = vmatpush.msra.mxu0 0.0
    %4900 = vmatpush.msra.mxu0 0.0
    %4901 = vmatpush.msra.mxu0 0.0
    %4902 = vmatpush.msra.mxu0 0.0
    %v4903 = vand.u32 %v2371, 4294901760
    %v4904 = vsub.f32 %v2371, %v4903
    %4905 = vmatpush.msra.mxu0 %v4904
    %v4906 = vand.u32 %v4834, 4294901760
    %v4907 = vsub.f32 %v4834, %v4906
    %4908 = vmatmul.f32.gmra.mxu0 %v4907
    %v4909 = vpop.f32.mrf.mxu0
    %v4910 = vadd.f32 %v4886, %v4909
    %4911 = vdwg.mxu0
    %4912 = vmatpush.msra.mxu0 0.0
    %4913 = vmatpush.msra.mxu0 0.0
    %4914 = vmatpush.msra.mxu0 0.0
    %4915 = vmatpush.msra.mxu0 0.0
    %4916 = vmatpush.msra.mxu0 0.0
    %4917 = vmatpush.msra.mxu0 0.0
    %4918 = vmatpush.msra.mxu0 0.0
    %4919 = vmatpush.msra.mxu0 0.0
    %4920 = vmatpush.msra.mxu0 0.0
    %4921 = vmatpush.msra.mxu0 0.0
    %4922 = vmatpush.msra.mxu0 0.0
    %4923 = vmatpush.msra.mxu0 0.0
    %4924 = vmatpush.msra.mxu0 0.0
    %4925 = vmatpush.msra.mxu0 0.0
    %4926 = vmatpush.msra.mxu0 0.0
    %v4927 = vand.u32 %v2371, 4294901760
    %4928 = vmatpush.msra.mxu0 %v4927
    %v4929 = vand.u32 %v4834, 4294901760
    %v4930 = vsub.f32 %v4834, %v4929
    %v4931 = vand.u32 %v4930, 4294901760
    %4932 = vmatmul.f32.gmra.mxu0 %v4931
    %v4933 = vpop.f32.mrf.mxu0
    %v4934 = vadd.f32 %v4910, %v4933
    %4935 = vdwg.mxu0
    %4936 = vmatpush.msra.mxu0 0.0
    %4937 = vmatpush.msra.mxu0 0.0
    %4938 = vmatpush.msra.mxu0 0.0
    %4939 = vmatpush.msra.mxu0 0.0
    %4940 = vmatpush.msra.mxu0 0.0
    %4941 = vmatpush.msra.mxu0 0.0
    %4942 = vmatpush.msra.mxu0 0.0
    %4943 = vmatpush.msra.mxu0 0.0
    %4944 = vmatpush.msra.mxu0 0.0
    %4945 = vmatpush.msra.mxu0 0.0
    %4946 = vmatpush.msra.mxu0 0.0
    %4947 = vmatpush.msra.mxu0 0.0
    %4948 = vmatpush.msra.mxu0 0.0
    %4949 = vmatpush.msra.mxu0 0.0
    %4950 = vmatpush.msra.mxu0 0.0
    %v4951 = vand.u32 %v2371, 4294901760
    %v4952 = vsub.f32 %v2371, %v4951
    %v4953 = vand.u32 %v4952, 4294901760
    %4954 = vmatpush.msra.mxu0 %v4953
    %v4955 = vand.u32 %v4834, 4294901760
    %4956 = vmatmul.f32.gmra.mxu0 %v4955
    %v4957 = vpop.f32.mrf.mxu0
    %v4958 = vadd.f32 %v4934, %v4957
    %4959 = vdwg.mxu0
    %4960 = vmatpush.msra.mxu0 0.0
    %4961 = vmatpush.msra.mxu0 0.0
    %4962 = vmatpush.msra.mxu0 0.0
    %4963 = vmatpush.msra.mxu0 0.0
    %4964 = vmatpush.msra.mxu0 0.0
    %4965 = vmatpush.msra.mxu0 0.0
    %4966 = vmatpush.msra.mxu0 0.0
    %4967 = vmatpush.msra.mxu0 0.0
    %4968 = vmatpush.msra.mxu0 0.0
    %4969 = vmatpush.msra.mxu0 0.0
    %4970 = vmatpush.msra.mxu0 0.0
    %4971 = vmatpush.msra.mxu0 0.0
    %4972 = vmatpush.msra.mxu0 0.0
    %4973 = vmatpush.msra.mxu0 0.0
    %4974 = vmatpush.msra.mxu0 0.0
    %v4975 = vand.u32 %v2371, 4294901760
    %4976 = vmatpush.msra.mxu0 %v4975
    %v4977 = vand.u32 %v4834, 4294901760
    %4978 = vmatmul.f32.gmra.mxu0 %v4977
    %v4979 = vpop.f32.mrf.mxu0
    %v4980 = vadd.f32 %v4958, %v4979
    %4981 = vdwg.mxu0
    %v4983 = vsel %vm70, %v4086, 0
    %4985 = vmatpush.msra.mxu0 0.0
    %4986 = vmatpush.msra.mxu0 0.0
    %4987 = vmatpush.msra.mxu0 0.0
    %4988 = vmatpush.msra.mxu0 0.0
    %4989 = vmatpush.msra.mxu0 0.0
    %4990 = vmatpush.msra.mxu0 0.0
    %4991 = vmatpush.msra.mxu0 0.0
    %4992 = vmatpush.msra.mxu0 0.0
    %4993 = vmatpush.msra.mxu0 0.0
    %4994 = vmatpush.msra.mxu0 0.0
    %4995 = vmatpush.msra.mxu0 0.0
    %4996 = vmatpush.msra.mxu0 0.0
    %4997 = vmatpush.msra.mxu0 0.0
    %4998 = vmatpush.msra.mxu0 0.0
    %4999 = vmatpush.msra.mxu0 0.0
    %v5000 = vand.u32 %v2520, 4294901760
    %5001 = vmatpush.msra.mxu0 %v5000
    %v5002 = vand.u32 %v4983, 4294901760
    %v5003 = vsub.f32 %v4983, %v5002
    %v5004 = vand.u32 %v5003, 4294901760
    %v5005 = vsub.f32 %v5003, %v5004
    %v5006 = vand.u32 %v5005, 4294901760
    %5007 = vmatmul.f32.gmra.mxu0 %v5006
    %v5008 = vpop.f32.mrf.mxu0
    %v5009 = vadd.f32 0.0, %v5008
    %5010 = vdwg.mxu0
    %5011 = vmatpush.msra.mxu0 0.0
    %5012 = vmatpush.msra.mxu0 0.0
    %5013 = vmatpush.msra.mxu0 0.0
    %5014 = vmatpush.msra.mxu0 0.0
    %5015 = vmatpush.msra.mxu0 0.0
    %5016 = vmatpush.msra.mxu0 0.0
    %5017 = vmatpush.msra.mxu0 0.0
    %5018 = vmatpush.msra.mxu0 0.0
    %5019 = vmatpush.msra.mxu0 0.0
    %5020 = vmatpush.msra.mxu0 0.0
    %5021 = vmatpush.msra.mxu0 0.0
    %5022 = vmatpush.msra.mxu0 0.0
    %5023 = vmatpush.msra.mxu0 0.0
    %5024 = vmatpush.msra.mxu0 0.0
    %5025 = vmatpush.msra.mxu0 0.0
    %v5026 = vand.u32 %v2520, 4294901760
    %v5027 = vsub.f32 %v2520, %v5026
    %v5028 = vand.u32 %v5027, 4294901760
    %v5029 = vsub.f32 %v5027, %v5028
    %v5030 = vand.u32 %v5029, 4294901760
    %5031 = vmatpush.msra.mxu0 %v5030
    %v5032 = vand.u32 %v4983, 4294901760
    %5033 = vmatmul.f32.gmra.mxu0 %v5032
    %v5034 = vpop.f32.mrf.mxu0
    %v5035 = vadd.f32 %v5009, %v5034
    %5036 = vdwg.mxu0
    %5037 = vmatpush.msra.mxu0 0.0
    %5038 = vmatpush.msra.mxu0 0.0
    %5039 = vmatpush.msra.mxu0 0.0
    %5040 = vmatpush.msra.mxu0 0.0
    %5041 = vmatpush.msra.mxu0 0.0
    %5042 = vmatpush.msra.mxu0 0.0
    %5043 = vmatpush.msra.mxu0 0.0
    %5044 = vmatpush.msra.mxu0 0.0
    %5045 = vmatpush.msra.mxu0 0.0
    %5046 = vmatpush.msra.mxu0 0.0
    %5047 = vmatpush.msra.mxu0 0.0
    %5048 = vmatpush.msra.mxu0 0.0
    %5049 = vmatpush.msra.mxu0 0.0
    %5050 = vmatpush.msra.mxu0 0.0
    %5051 = vmatpush.msra.mxu0 0.0
    %v5052 = vand.u32 %v2520, 4294901760
    %v5053 = vsub.f32 %v2520, %v5052
    %5054 = vmatpush.msra.mxu0 %v5053
    %v5055 = vand.u32 %v4983, 4294901760
    %v5056 = vsub.f32 %v4983, %v5055
    %5057 = vmatmul.f32.gmra.mxu0 %v5056
    %v5058 = vpop.f32.mrf.mxu0
    %v5059 = vadd.f32 %v5035, %v5058
    %5060 = vdwg.mxu0
    %5061 = vmatpush.msra.mxu0 0.0
    %5062 = vmatpush.msra.mxu0 0.0
    %5063 = vmatpush.msra.mxu0 0.0
    %5064 = vmatpush.msra.mxu0 0.0
    %5065 = vmatpush.msra.mxu0 0.0
    %5066 = vmatpush.msra.mxu0 0.0
    %5067 = vmatpush.msra.mxu0 0.0
    %5068 = vmatpush.msra.mxu0 0.0
    %5069 = vmatpush.msra.mxu0 0.0
    %5070 = vmatpush.msra.mxu0 0.0
    %5071 = vmatpush.msra.mxu0 0.0
    %5072 = vmatpush.msra.mxu0 0.0
    %5073 = vmatpush.msra.mxu0 0.0
    %5074 = vmatpush.msra.mxu0 0.0
    %5075 = vmatpush.msra.mxu0 0.0
    %v5076 = vand.u32 %v2520, 4294901760
    %5077 = vmatpush.msra.mxu0 %v5076
    %v5078 = vand.u32 %v4983, 4294901760
    %v5079 = vsub.f32 %v4983, %v5078
    %v5080 = vand.u32 %v5079, 4294901760
    %5081 = vmatmul.f32.gmra.mxu0 %v5080
    %v5082 = vpop.f32.mrf.mxu0
    %v5083 = vadd.f32 %v5059, %v5082
    %5084 = vdwg.mxu0
    %5085 = vmatpush.msra.mxu0 0.0
    %5086 = vmatpush.msra.mxu0 0.0
    %5087 = vmatpush.msra.mxu0 0.0
    %5088 = vmatpush.msra.mxu0 0.0
    %5089 = vmatpush.msra.mxu0 0.0
    %5090 = vmatpush.msra.mxu0 0.0
    %5091 = vmatpush.msra.mxu0 0.0
    %5092 = vmatpush.msra.mxu0 0.0
    %5093 = vmatpush.msra.mxu0 0.0
    %5094 = vmatpush.msra.mxu0 0.0
    %5095 = vmatpush.msra.mxu0 0.0
    %5096 = vmatpush.msra.mxu0 0.0
    %5097 = vmatpush.msra.mxu0 0.0
    %5098 = vmatpush.msra.mxu0 0.0
    %5099 = vmatpush.msra.mxu0 0.0
    %v5100 = vand.u32 %v2520, 4294901760
    %v5101 = vsub.f32 %v2520, %v5100
    %v5102 = vand.u32 %v5101, 4294901760
    %5103 = vmatpush.msra.mxu0 %v5102
    %v5104 = vand.u32 %v4983, 4294901760
    %5105 = vmatmul.f32.gmra.mxu0 %v5104
    %v5106 = vpop.f32.mrf.mxu0
    %v5107 = vadd.f32 %v5083, %v5106
    %5108 = vdwg.mxu0
    %5109 = vmatpush.msra.mxu0 0.0
    %5110 = vmatpush.msra.mxu0 0.0
    %5111 = vmatpush.msra.mxu0 0.0
    %5112 = vmatpush.msra.mxu0 0.0
    %5113 = vmatpush.msra.mxu0 0.0
    %5114 = vmatpush.msra.mxu0 0.0
    %5115 = vmatpush.msra.mxu0 0.0
    %5116 = vmatpush.msra.mxu0 0.0
    %5117 = vmatpush.msra.mxu0 0.0
    %5118 = vmatpush.msra.mxu0 0.0
    %5119 = vmatpush.msra.mxu0 0.0
    %5120 = vmatpush.msra.mxu0 0.0
    %5121 = vmatpush.msra.mxu0 0.0
    %5122 = vmatpush.msra.mxu0 0.0
    %5123 = vmatpush.msra.mxu0 0.0
    %v5124 = vand.u32 %v2520, 4294901760
    %5125 = vmatpush.msra.mxu0 %v5124
    %v5126 = vand.u32 %v4983, 4294901760
    %5127 = vmatmul.f32.gmra.mxu0 %v5126
    %v5128 = vpop.f32.mrf.mxu0
    %v5129 = vadd.f32 %v5107, %v5128
    %5130 = vdwg.mxu0
    %v5132 = vsel %vm70, %v4087, 0
    %5134 = vmatpush.msra.mxu0 0.0
    %5135 = vmatpush.msra.mxu0 0.0
    %5136 = vmatpush.msra.mxu0 0.0
    %5137 = vmatpush.msra.mxu0 0.0
    %5138 = vmatpush.msra.mxu0 0.0
    %5139 = vmatpush.msra.mxu0 0.0
    %5140 = vmatpush.msra.mxu0 0.0
    %5141 = vmatpush.msra.mxu0 0.0
    %5142 = vmatpush.msra.mxu0 0.0
    %5143 = vmatpush.msra.mxu0 0.0
    %5144 = vmatpush.msra.mxu0 0.0
    %5145 = vmatpush.msra.mxu0 0.0
    %5146 = vmatpush.msra.mxu0 0.0
    %5147 = vmatpush.msra.mxu0 0.0
    %5148 = vmatpush.msra.mxu0 0.0
    %v5149 = vand.u32 %v2669, 4294901760
    %5150 = vmatpush.msra.mxu0 %v5149
    %v5151 = vand.u32 %v5132, 4294901760
    %v5152 = vsub.f32 %v5132, %v5151
    %v5153 = vand.u32 %v5152, 4294901760
    %v5154 = vsub.f32 %v5152, %v5153
    %v5155 = vand.u32 %v5154, 4294901760
    %5156 = vmatmul.f32.gmra.mxu0 %v5155
    %v5157 = vpop.f32.mrf.mxu0
    %v5158 = vadd.f32 0.0, %v5157
    %5159 = vdwg.mxu0
    %5160 = vmatpush.msra.mxu0 0.0
    %5161 = vmatpush.msra.mxu0 0.0
    %5162 = vmatpush.msra.mxu0 0.0
    %5163 = vmatpush.msra.mxu0 0.0
    %5164 = vmatpush.msra.mxu0 0.0
    %5165 = vmatpush.msra.mxu0 0.0
    %5166 = vmatpush.msra.mxu0 0.0
    %5167 = vmatpush.msra.mxu0 0.0
    %5168 = vmatpush.msra.mxu0 0.0
    %5169 = vmatpush.msra.mxu0 0.0
    %5170 = vmatpush.msra.mxu0 0.0
    %5171 = vmatpush.msra.mxu0 0.0
    %5172 = vmatpush.msra.mxu0 0.0
    %5173 = vmatpush.msra.mxu0 0.0
    %5174 = vmatpush.msra.mxu0 0.0
    %v5175 = vand.u32 %v2669, 4294901760
    %v5176 = vsub.f32 %v2669, %v5175
    %v5177 = vand.u32 %v5176, 4294901760
    %v5178 = vsub.f32 %v5176, %v5177
    %v5179 = vand.u32 %v5178, 4294901760
    %5180 = vmatpush.msra.mxu0 %v5179
    %v5181 = vand.u32 %v5132, 4294901760
    %5182 = vmatmul.f32.gmra.mxu0 %v5181
    %v5183 = vpop.f32.mrf.mxu0
    %v5184 = vadd.f32 %v5158, %v5183
    %5185 = vdwg.mxu0
    %5186 = vmatpush.msra.mxu0 0.0
    %5187 = vmatpush.msra.mxu0 0.0
    %5188 = vmatpush.msra.mxu0 0.0
    %5189 = vmatpush.msra.mxu0 0.0
    %5190 = vmatpush.msra.mxu0 0.0
    %5191 = vmatpush.msra.mxu0 0.0
    %5192 = vmatpush.msra.mxu0 0.0
    %5193 = vmatpush.msra.mxu0 0.0
    %5194 = vmatpush.msra.mxu0 0.0
    %5195 = vmatpush.msra.mxu0 0.0
    %5196 = vmatpush.msra.mxu0 0.0
    %5197 = vmatpush.msra.mxu0 0.0
    %5198 = vmatpush.msra.mxu0 0.0
    %5199 = vmatpush.msra.mxu0 0.0
    %5200 = vmatpush.msra.mxu0 0.0
    %v5201 = vand.u32 %v2669, 4294901760
    %v5202 = vsub.f32 %v2669, %v5201
    %5203 = vmatpush.msra.mxu0 %v5202
    %v5204 = vand.u32 %v5132, 4294901760
    %v5205 = vsub.f32 %v5132, %v5204
    %5206 = vmatmul.f32.gmra.mxu0 %v5205
    %v5207 = vpop.f32.mrf.mxu0
    %v5208 = vadd.f32 %v5184, %v5207
    %5209 = vdwg.mxu0
    %5210 = vmatpush.msra.mxu0 0.0
    %5211 = vmatpush.msra.mxu0 0.0
    %5212 = vmatpush.msra.mxu0 0.0
    %5213 = vmatpush.msra.mxu0 0.0
    %5214 = vmatpush.msra.mxu0 0.0
    %5215 = vmatpush.msra.mxu0 0.0
    %5216 = vmatpush.msra.mxu0 0.0
    %5217 = vmatpush.msra.mxu0 0.0
    %5218 = vmatpush.msra.mxu0 0.0
    %5219 = vmatpush.msra.mxu0 0.0
    %5220 = vmatpush.msra.mxu0 0.0
    %5221 = vmatpush.msra.mxu0 0.0
    %5222 = vmatpush.msra.mxu0 0.0
    %5223 = vmatpush.msra.mxu0 0.0
    %5224 = vmatpush.msra.mxu0 0.0
    %v5225 = vand.u32 %v2669, 4294901760
    %5226 = vmatpush.msra.mxu0 %v5225
    %v5227 = vand.u32 %v5132, 4294901760
    %v5228 = vsub.f32 %v5132, %v5227
    %v5229 = vand.u32 %v5228, 4294901760
    %5230 = vmatmul.f32.gmra.mxu0 %v5229
    %v5231 = vpop.f32.mrf.mxu0
    %v5232 = vadd.f32 %v5208, %v5231
    %5233 = vdwg.mxu0
    %5234 = vmatpush.msra.mxu0 0.0
    %5235 = vmatpush.msra.mxu0 0.0
    %5236 = vmatpush.msra.mxu0 0.0
    %5237 = vmatpush.msra.mxu0 0.0
    %5238 = vmatpush.msra.mxu0 0.0
    %5239 = vmatpush.msra.mxu0 0.0
    %5240 = vmatpush.msra.mxu0 0.0
    %5241 = vmatpush.msra.mxu0 0.0
    %5242 = vmatpush.msra.mxu0 0.0
    %5243 = vmatpush.msra.mxu0 0.0
    %5244 = vmatpush.msra.mxu0 0.0
    %5245 = vmatpush.msra.mxu0 0.0
    %5246 = vmatpush.msra.mxu0 0.0
    %5247 = vmatpush.msra.mxu0 0.0
    %5248 = vmatpush.msra.mxu0 0.0
    %v5249 = vand.u32 %v2669, 4294901760
    %v5250 = vsub.f32 %v2669, %v5249
    %v5251 = vand.u32 %v5250, 4294901760
    %5252 = vmatpush.msra.mxu0 %v5251
    %v5253 = vand.u32 %v5132, 4294901760
    %5254 = vmatmul.f32.gmra.mxu0 %v5253
    %v5255 = vpop.f32.mrf.mxu0
    %v5256 = vadd.f32 %v5232, %v5255
    %5257 = vdwg.mxu0
    %5258 = vmatpush.msra.mxu0 0.0
    %5259 = vmatpush.msra.mxu0 0.0
    %5260 = vmatpush.msra.mxu0 0.0
    %5261 = vmatpush.msra.mxu0 0.0
    %5262 = vmatpush.msra.mxu0 0.0
    %5263 = vmatpush.msra.mxu0 0.0
    %5264 = vmatpush.msra.mxu0 0.0
    %5265 = vmatpush.msra.mxu0 0.0
    %5266 = vmatpush.msra.mxu0 0.0
    %5267 = vmatpush.msra.mxu0 0.0
    %5268 = vmatpush.msra.mxu0 0.0
    %5269 = vmatpush.msra.mxu0 0.0
    %5270 = vmatpush.msra.mxu0 0.0
    %5271 = vmatpush.msra.mxu0 0.0
    %5272 = vmatpush.msra.mxu0 0.0
    %v5273 = vand.u32 %v2669, 4294901760
    %5274 = vmatpush.msra.mxu0 %v5273
    %v5275 = vand.u32 %v5132, 4294901760
    %5276 = vmatmul.f32.gmra.mxu0 %v5275
    %v5277 = vpop.f32.mrf.mxu0
    %v5278 = vadd.f32 %v5256, %v5277
    %5279 = vdwg.mxu0
    %5282 = vrot.lane.b32.xlu0 %v4533, 8
    %v5283 = vpop.permute.xlu0 %5282
    %5284 = vrot.lane.b32.xlu0 %v4682, 8
    %v5285 = vpop.permute.xlu0 %5284
    %5290 = vrot.lane.b32.xlu0 %v4831, 16
    %v5291 = vpop.permute.xlu0 %5290
    %5292 = vrot.lane.b32.xlu0 %v4980, 16
    %v5293 = vpop.permute.xlu0 %5292
    %5298 = vrot.lane.b32.xlu0 %v5129, 24
    %v5299 = vpop.permute.xlu0 %5298
    %5300 = vrot.lane.b32.xlu0 %v5278, 24
    %v5301 = vpop.permute.xlu0 %5300
    %v5304 = vsel %vm70, %v4235, %v5283
    %v5305 = vsel %vm70, %v4384, %v5285
    %vm5306 = vcmask 130048
    %v5307 = vsel %vm5306, %v5304, %v5291
    %v5308 = vsel %vm5306, %v5305, %v5293
    %vm5309 = vcmask 195584
    %v5310 = vsel %vm5309, %v5307, %v5299
    %v5311 = vsel %vm5309, %v5308, %v5301
    %vm5312 = vcmask 261120
    %5313 = vst.msk [vmem:[#allocation7] sm:$0xff] %vm5312, %v5310
    %5314 = vst.msk [vmem:[#allocation7 + $0x8] sm:$0xff] %vm5312, %v5311
    // Predicated region
    $region18: #{tpu_custom_call.1} parent=1 // pred_check
      _
    $region19: #{tpu_custom_call.1} parent=1 // pred_check_branch
      %5316 = sbr.rel (0) target = $region21
    $region20: #{tpu_custom_call.1} parent=1 // pred_region
      %5318 = vsyncadd [#allocation4], 0
      %s5319 = sshll.u32 [#allocation7], 4
      %s5320 = int_to_ptr.vmem [resolvable:$true] %s5319
      %s5321 = sshll.u32 %s2, 4
      %s5322 = int_to_ptr.hbm [resolvable:$true] %s5321
      %5327 = dma.vmem_to_hbm [thread:$0]  %s5320, 256, %s5322, [#allocation4], 128, 128, 8
    $region21: #{tpu_custom_call.1} parent=1 // pred_fallthru
      _
    // Predicated region
    $region22: #{tpu_custom_call.1} parent=1 // pred_check
      _
    $region23: #{tpu_custom_call.1} parent=1 // pred_check_branch
      %5329 = sbr.rel (0) target = $region25
    $region24: #{tpu_custom_call.1} parent=1 // pred_region
      %5331 = dma.done [#allocation4], 256
    $region25: #{tpu_custom_call.1} parent=1 // pred_fallthru
      _
    %5332 = vsyncpa [#allocation3], 1
    %5333 = vsyncpa [#allocation6], 1
    %5334 = vsyncpa [#allocation4], 1

</llo_original>
